<compile_context>
chip_gen: v5e
topology: v5e:2x2
jax: 0.10.0
libtpu: 0.0.40
codegen_flags: <defaults>
</compile_context>

<pallas_src>
import numpy as np
import jax
import jax.numpy as jnp
from jax import lax
from jax.experimental import pallas as pl
from jax.experimental.pallas import tpu as pltpu

NUM_CLASSES = 10
HIDDEN_DIM = 32                 # CNN.__init__ default hidden_dim
LANE = 128                      # TPU lane width; fc / fold padding target
N2 = 16                         # 4x4 anchor positions feeding conv_block_3
MAX_BATCH_TILE = 32             # samples per grid step (multiple of 8)
COMPUTE_DTYPE = jnp.bfloat16    # matmul operand dtype (f32 accumulation);
                                # set to jnp.float32 for exact validation.

_COMPILER_PARAMS = pltpu.CompilerParams(dimension_semantics=("parallel",))

# Fold matrix for conv_block_3: AvgPool2d(2) of its 3x3 conv output collapses
# to 16 taps over the 4x4 block of conv_block_2's pooled output:
#   G[u*4+v] = 0.25 * sum_{kh in {u-1,u} & [0,2]} sum_{kw in {v-1,v} & [0,2]} W3[kh, kw]
_FOLD = np.zeros((16, 9), np.float32)
for _u in range(4):
    for _v in range(4):
        for _kh in range(3):
            for _kw in range(3):
                if _kh in (_u - 1, _u) and _kw in (_v - 1, _v):
                    _FOLD[_u * 4 + _v, _kh * 3 + _kw] = 0.25


def _round_up(x, m):
    return (x + m - 1) // m * m


def _batch_tile(batch):
    return min(MAX_BATCH_TILE, _round_up(batch, 8))


def _nbytes(a):
    return a.size * a.dtype.itemsize


def _pad_last(a, n):
    pad = n - a.shape[-1]
    if pad < 0:
        raise ValueError("last dim exceeds lane padding target")
    if pad == 0:
        return a
    return jnp.pad(a, [(0, 0)] * (a.ndim - 1) + [(0, pad)])


# ----------------------------- Pallas kernels ------------------------------

def _make_block1_kernel(tb, rows_per_sample):
    """Conv2d(1->32, 3x3) -> AvgPool2d(2) -> ReLU on pre-smoothed patches.

    One grid step covers `tb` samples (tb * rows_per_sample patch rows).  The
    matmul is evaluated per sublane-aligned sample slab so the 32-lane-wide
    f32 intermediate stays within the vreg file (no spills); the batch tiling
    itself is what amortizes the grid-step overhead and DMA sizes.
    """
    def kernel(p_ref, w_ref, b_ref, o_ref):
        for t in range(tb):
            sl = pl.ds(t * rows_per_sample, rows_per_sample)
            y = jnp.dot(p_ref[sl, :], w_ref[...],
                        preferred_element_type=jnp.float32)
            o_ref[sl, :] = jnp.maximum(y + b_ref[...], 0.0).astype(o_ref.dtype)
    return kernel


def _make_block23_fc_kernel(tb):
    """Fused conv_block_2 (4x4 anchors) -> conv_block_3 -> flatten -> fc.

    Rows of p2_ref are position-major (row = p * tb + sample).  Each of the 16
    anchor positions yields a (tb, 128) relu slab; the 16 slabs are
    lane-concatenated (128-aligned) into a (tb, 2048) operand so the pooled
    conv_block_3 collapses into ONE K = 2048 matmul against the packed fold
    weight -- no VMEM scratch round-trip, no per-tap accumulation chain.
    """
    def kernel(p2_ref, w2_ref, b2_ref, g3_ref, b3_ref, wfc_ref, bfc_ref,
               o_ref):
        pieces = []
        for p in range(N2):
            sl = pl.ds(p * tb, tb)
            y2 = jnp.dot(p2_ref[sl, :], w2_ref[...],
                         preferred_element_type=jnp.float32)
            pieces.append(
                jnp.maximum(y2 + b2_ref[...], 0.0).astype(w2_ref.dtype))
        slab = jnp.concatenate(pieces, axis=-1)            # (tb, 16*128)

        h3 = jnp.dot(slab, g3_ref[...], preferred_element_type=jnp.float32)
        h3 = jnp.maximum(h3 + b3_ref[...], 0.0).astype(wfc_ref.dtype)

        # flatten is identity (1x1 spatial); fc columns >= num_classes are 0.
        o_ref[...] = jnp.dot(h3, wfc_ref[...],
                             preferred_element_type=jnp.float32) + bfc_ref[...]
    return kernel


# ------------------------------ pallas_call wrappers ------------------------

def _conv_block1(p1_rows, w1, b1, tb, rows_per_sample):
    rows, k = p1_rows.shape                    # rows = B_pad * rows_per_sample
    cout = w1.shape[-1]
    block_rows = tb * rows_per_sample
    grid = rows // block_rows
    cost = pl.CostEstimate(
        flops=2 * rows * k * cout, transcendentals=0,
        bytes_accessed=_nbytes(p1_rows) + _nbytes(w1) + _nbytes(b1)
        + rows * cout * jnp.dtype(w1.dtype).itemsize)
    return pl.pallas_call(
        _make_block1_kernel(tb, rows_per_sample),
        out_shape=jax.ShapeDtypeStruct((rows, cout), w1.dtype),
        grid=(grid,),
        in_specs=[pl.BlockSpec((block_rows, k), lambda i: (i, 0)),
                  pl.BlockSpec(w1.shape, lambda i: (0, 0)),
                  pl.BlockSpec(b1.shape, lambda i: (0, 0))],
        out_specs=pl.BlockSpec((block_rows, cout), lambda i: (i, 0)),
        compiler_params=_COMPILER_PARAMS,
        cost_estimate=cost,
    )(p1_rows, w1, b1)


def _conv_blocks23_fc(p2_rows, packed, tb):
    rows, k = p2_rows.shape                    # rows = B_pad * 16
    b_pad = rows // N2
    grid = b_pad // tb
    w2, b2 = packed["w2"], packed["b2"]
    g3, b3 = packed["g3"], packed["b3"]
    wfc, bfc = packed["wfc"], packed["bfc"]
    flops = 2 * (rows * k * w2.shape[-1]
                 + b_pad * g3.shape[0] * g3.shape[-1]
                 + b_pad * wfc.shape[0] * wfc.shape[-1])
    byts = (sum(_nbytes(a) for a in (p2_rows, w2, b2, g3, b3, wfc, bfc))
            + b_pad * LANE * 4)
    return pl.pallas_call(
        _make_block23_fc_kernel(tb),
        out_shape=jax.ShapeDtypeStruct((b_pad, LANE), jnp.float32),
        grid=(grid,),
        in_specs=[pl.BlockSpec((tb * N2, k), lambda g: (g, 0)),
                  pl.BlockSpec(w2.shape, lambda g: (0, 0)),
                  pl.BlockSpec(b2.shape, lambda g: (0, 0)),
                  pl.BlockSpec(g3.shape, lambda g: (0, 0)),
                  pl.BlockSpec(b3.shape, lambda g: (0, 0)),
                  pl.BlockSpec(wfc.shape, lambda g: (0, 0)),
                  pl.BlockSpec(bfc.shape, lambda g: (0, 0))],
        out_specs=pl.BlockSpec((tb, LANE), lambda g: (g, 0)),
        compiler_params=_COMPILER_PARAMS,
        cost_estimate=pl.CostEstimate(flops=flops, transcendentals=0,
                                      bytes_accessed=byts),
    )(p2_rows, w2, b2, g3, b3, wfc, bfc)


# --------------------------- parameters / packing ---------------------------

def init_params(key, hidden_dim=HIDDEN_DIM, num_classes=NUM_CLASSES):
    """Deterministic init mirroring the module's parameter shapes."""
    conv_dims = [(1, hidden_dim), (hidden_dim, 2 * hidden_dim),
                 (2 * hidden_dim, 4 * hidden_dim)]
    params = {"convs": []}
    for cin, cout in conv_dims:
        key, kw_, kb_ = jax.random.split(key, 3)
        bound = 1.0 / np.sqrt(9 * cin)
        w = jax.random.uniform(kw_, (3, 3, cin, cout), jnp.float32, -bound, bound)
        b = jax.random.uniform(kb_, (cout,), jnp.float32, -bound, bound)
        params["convs"].append((w, b))
    key, kw_, kb_ = jax.random.split(key, 3)
    fan_in = 4 * hidden_dim
    bound = 1.0 / np.sqrt(fan_in)
    params["fc_w"] = jax.random.uniform(kw_, (fan_in, num_classes),
                                        jnp.float32, -bound, bound)
    params["fc_b"] = jax.random.uniform(kb_, (num_classes,),
                                        jnp.float32, -bound, bound)
    return params


def pack_params(params, compute_dtype=COMPUTE_DTYPE):
    """One-time repack of module-layout params into kernel-ready matrices."""
    (w1, b1), (w2, b2), (w3, b3) = params["convs"]
    c0, c1 = w1.shape[2], w1.shape[3]          # 1, 32
    c2, c3 = w2.shape[3], w3.shape[3]          # 64, 128
    c2p = _round_up(c2, LANE)                  # lane-aligned block-2 channels
    fold = jnp.asarray(_FOLD)                  # (16, 9): AvgPool folded into W3
    g3 = jnp.tensordot(fold, w3.reshape(9, c2, c3), axes=1)     # (16, c2, c3)
    g3 = jnp.pad(g3, ((0, 0), (0, c2p - c2), (0, 0))).reshape(N2 * c2p, c3)
    return {
        "w1": w1.reshape(9 * c0, c1).astype(compute_dtype),
        "b1": b1.reshape(1, c1).astype(jnp.float32),
        "w2": _pad_last(w2.reshape(9 * c1, c2), c2p).astype(compute_dtype),
        "b2": _pad_last(b2.reshape(1, c2), c2p).astype(jnp.float32),
        "g3": g3.astype(compute_dtype),
        "b3": b3.reshape(1, c3).astype(jnp.float32),
        "wfc": _pad_last(params["fc_w"], LANE).astype(compute_dtype),
        "bfc": _pad_last(params["fc_b"].reshape(1, -1), LANE).astype(jnp.float32),
    }


# ------------------------------ XLA glue ------------------------------------

def _smoothed_stride2_patches(x, hp, wp):
    """im2col for Conv2d(3x3, VALID) -> AvgPool2d(2).

    P[b, i*wp + j, k*C + c] = smooth2x2(x)[b, 2i+kh, 2j+kw, c], k = kh*3+kw.
    Pooling the conv output equals conv of the 2x2 stride-1 average of x
    sampled at stride-2 anchors (conv is linear), so one patch matrix suffices.
    """
    xs = 0.25 * (x[:, :-1, :-1, :] + x[:, :-1, 1:, :]
                 + x[:, 1:, :-1, :] + x[:, 1:, 1:, :])
    taps = [xs[:, kh:kh + 2 * hp:2, kw:kw + 2 * wp:2, :]
            for kh in range(3) for kw in range(3)]
    pat = jnp.stack(taps, axis=-2)                          # (B, hp, wp, 9, C)
    return pat.reshape(x.shape[0], hp * wp, 9 * x.shape[-1])


# --------------------------------- forward ----------------------------------

@jax.jit
def cnn_forward(packed, x_nchw):
    x = jnp.transpose(x_nchw, (0, 2, 3, 1)).astype(jnp.float32)  # NCHW -> NHWC
    B, H, W, _ = x.shape
    c1 = packed["w1"].shape[-1]
    tb = _batch_tile(B)
    b_pad = _round_up(B, tb)
    g = b_pad // tb

    # ---- conv_block_1 : Conv2d(1->32, 3x3) -> AvgPool2d(2) -> ReLU ---------
    hp1, wp1 = (H - 2) // 2, (W - 2) // 2
    assert hp1 == 13 and wp1 == 13, "model expects 28x28 MNIST inputs"
    n1 = hp1 * wp1
    n1_pad = _round_up(n1, 8)                  # sublane-align per-sample slab
    p1 = _smoothed_stride2_patches(x, hp1, wp1)                 # (B, 169, 9)
    p1 = jnp.pad(p1, ((0, b_pad - B), (0, n1_pad - n1), (0, 0)))
    p1 = p1.reshape(b_pad * n1_pad, 9).astype(packed["w1"].dtype)
    a1 = _conv_block1(p1, packed["w1"], packed["b1"], tb, n1_pad)
    a1 = a1.reshape(b_pad, n1_pad, c1)[:, :n1, :]
    a1 = a1.reshape(b_pad, hp1, wp1, c1).astype(jnp.float32)

    # ---- conv_block_2 (4x4 anchors) + conv_block_3 + flatten + fc ----------
    # Only the top-left 4x4 block of conv_block_2's 5x5 pooled output feeds
    # conv_block_3's pooled 1x1 output, so only those 16 anchors are built.
    p2 = _smoothed_stride2_patches(a1, 4, 4)                    # (b_pad, 16, 9*c1)
    p2 = p2.reshape(g, tb, N2, 9 * c1).transpose(0, 2, 1, 3)    # position-major
    p2 = p2.reshape(b_pad * N2, 9 * c1).astype(packed["w2"].dtype)
    out = _conv_blocks23_fc(p2, packed, tb)                     # (b_pad, 128)
    return out[:B, :NUM_CLASSES]


def reference_forward(params, x_nchw):
    """Pure-JAX f32 reference with the original op order (for validation)."""
    x = jnp.transpose(x_nchw, (0, 2, 3, 1)).astype(jnp.float32)
    for w, b in params["convs"]:
        y = lax.conv_general_dilated(
            x, w, window_strides=(1, 1), padding="VALID",
            dimension_numbers=("NHWC", "HWIO", "NHWC"),
            precision=lax.Precision.HIGHEST) + b
        B, H, W, C = y.shape
        hp, wp = H // 2, W // 2
        y = y[:, :2 * hp, :2 * wp, :].reshape(B, hp, 2, wp, 2, C).mean(axis=(2, 4))
        x = jnp.maximum(y, 0.0)
    flat = x.reshape(x.shape[0], -1)
    return flat @ params["fc_w"] + params["fc_b"]


if __name__ == "__main__":
    key = jax.random.PRNGKey(0)
    pkey, xkey = jax.random.split(key)
    params = init_params(pkey)
    packed = pack_params(params)

    # MNIST-shaped input: 28x28 is what makes Flatten -> Linear(128, 10) line
    # up (the three conv+pool blocks reduce 28 -> 13 -> 5 -> 1).
    x = jax.random.normal(xkey, (2, 1, 28, 28), dtype=jnp.float32)   # NCHW

    out = jax.block_until_ready(cnn_forward(packed, x))
    assert out.shape == (2, NUM_CLASSES) and out.dtype == jnp.float32

    ref = reference_forward(params, x)
    # bf16 matmul operands (f32 accumulation) deviate <~1% from the f32
    # reference; with COMPUTE_DTYPE = jnp.float32 the check tightens to 1e-3.
    tol = 5e-2 if COMPUTE_DTYPE == jnp.bfloat16 else 1e-3
    if not np.allclose(np.asarray(out), np.asarray(ref), rtol=tol, atol=tol):
        raise AssertionError("Pallas CNN output mismatch vs JAX reference")

    print("KERNEL_OK")
</pallas_src>

<mosaic_0001>
module attributes {stable_mosaic.version = 11 : i64} {
  func.func @kernel(%arg0: i32, %arg1: memref<1408x9xbf16, #tpu.memory_space<vmem>>, %arg2: memref<9x32xbf16, #tpu.memory_space<vmem>>, %arg3: memref<1x32xf32, #tpu.memory_space<vmem>>, %arg4: memref<1408x32xbf16, #tpu.memory_space<vmem>>) attributes {dimension_semantics = [#tpu.dimension_semantics<parallel>], iteration_bounds = array<i64: 1>, scalar_prefetch = 0 : i64, scratch_operands = 0 : i64, tpu.core_type = #tpu.core_type<tc>, window_params = [{transform_indices = @transform_0, window_bounds = array<i64: 1408, 9>}, {pipeline_mode = #tpu.pipeline_mode<synchronous>, transform_indices = @transform_1, window_bounds = array<i64: 9, 32>}, {pipeline_mode = #tpu.pipeline_mode<synchronous>, transform_indices = @transform_2, window_bounds = array<i64: 1, 32>}, {transform_indices = @transform_3, window_bounds = array<i64: 1408, 32>}]} {
    %c0 = arith.constant 0 : index
    %c0_0 = arith.constant 0 : index
    %0 = vector.load %arg1[%c0, %c0_0] : memref<1408x9xbf16, #tpu.memory_space<vmem>>, vector<176x9xbf16>
    %c0_1 = arith.constant 0 : index
    %c0_2 = arith.constant 0 : index
    %1 = vector.load %arg2[%c0_1, %c0_2] : memref<9x32xbf16, #tpu.memory_space<vmem>>, vector<9x32xbf16>
    %cst = arith.constant dense<0.000000e+00> : vector<176x32xf32>
    %2 = tpu.matmul %0, %1, %cst {dimension_numbers = #tpu.dot_dimension_numbers<[1], [0], [0], [1], [0, 0, 1, 1], [], []>} : vector<176x9xbf16>, vector<9x32xbf16>, vector<176x32xf32> -> vector<176x32xf32>
    %c0_3 = arith.constant 0 : index
    %c0_4 = arith.constant 0 : index
    %3 = vector.load %arg3[%c0_3, %c0_4] : memref<1x32xf32, #tpu.memory_space<vmem>>, vector<1x32xf32>
    %4 = vector.broadcast %3 : vector<1x32xf32> to vector<176x32xf32>
    %5 = arith.addf %2, %4 : vector<176x32xf32>
    %cst_5 = arith.constant 0.000000e+00 : f32
    %6 = vector.broadcast %cst_5 : f32 to vector<176x32xf32>
    %7 = arith.maximumf %5, %6 : vector<176x32xf32>
    %8 = arith.truncf %7 : vector<176x32xf32> to vector<176x32xbf16>
    %c0_6 = arith.constant 0 : index
    %c0_7 = arith.constant 0 : index
    %9 = vector.load %arg4[%c0_6, %c0_7] : memref<1408x32xbf16, #tpu.memory_space<vmem>>, vector<176x32xbf16>
    tpu.vector_store %arg4[%c0_6, %c0_7], %8 {strides = array<i32>} : memref<1408x32xbf16, #tpu.memory_space<vmem>>, vector<176x32xbf16>,
    %c176 = arith.constant 176 : index
    %c0_8 = arith.constant 0 : index
    %10 = vector.load %arg1[%c176, %c0_8] : memref<1408x9xbf16, #tpu.memory_space<vmem>>, vector<176x9xbf16>
    %c0_9 = arith.constant 0 : index
    %c0_10 = arith.constant 0 : index
    %11 = vector.load %arg2[%c0_9, %c0_10] : memref<9x32xbf16, #tpu.memory_space<vmem>>, vector<9x32xbf16>
    %cst_11 = arith.constant dense<0.000000e+00> : vector<176x32xf32>
    %12 = tpu.matmul %10, %11, %cst_11 {dimension_numbers = #tpu.dot_dimension_numbers<[1], [0], [0], [1], [0, 0, 1, 1], [], []>} : vector<176x9xbf16>, vector<9x32xbf16>, vector<176x32xf32> -> vector<176x32xf32>
    %c0_12 = arith.constant 0 : index
    %c0_13 = arith.constant 0 : index
    %13 = vector.load %arg3[%c0_12, %c0_13] : memref<1x32xf32, #tpu.memory_space<vmem>>, vector<1x32xf32>
    %14 = vector.broadcast %13 : vector<1x32xf32> to vector<176x32xf32>
    %15 = arith.addf %12, %14 : vector<176x32xf32>
    %cst_14 = arith.constant 0.000000e+00 : f32
    %16 = vector.broadcast %cst_14 : f32 to vector<176x32xf32>
    %17 = arith.maximumf %15, %16 : vector<176x32xf32>
    %18 = arith.truncf %17 : vector<176x32xf32> to vector<176x32xbf16>
    %c176_15 = arith.constant 176 : index
    %c0_16 = arith.constant 0 : index
    %19 = vector.load %arg4[%c176_15, %c0_16] : memref<1408x32xbf16, #tpu.memory_space<vmem>>, vector<176x32xbf16>
    tpu.vector_store %arg4[%c176_15, %c0_16], %18 {strides = array<i32>} : memref<1408x32xbf16, #tpu.memory_space<vmem>>, vector<176x32xbf16>,
    %c352 = arith.constant 352 : index
    %c0_17 = arith.constant 0 : index
    %20 = vector.load %arg1[%c352, %c0_17] : memref<1408x9xbf16, #tpu.memory_space<vmem>>, vector<176x9xbf16>
    %c0_18 = arith.constant 0 : index
    %c0_19 = arith.constant 0 : index
    %21 = vector.load %arg2[%c0_18, %c0_19] : memref<9x32xbf16, #tpu.memory_space<vmem>>, vector<9x32xbf16>
    %cst_20 = arith.constant dense<0.000000e+00> : vector<176x32xf32>
    %22 = tpu.matmul %20, %21, %cst_20 {dimension_numbers = #tpu.dot_dimension_numbers<[1], [0], [0], [1], [0, 0, 1, 1], [], []>} : vector<176x9xbf16>, vector<9x32xbf16>, vector<176x32xf32> -> vector<176x32xf32>
    %c0_21 = arith.constant 0 : index
    %c0_22 = arith.constant 0 : index
    %23 = vector.load %arg3[%c0_21, %c0_22] : memref<1x32xf32, #tpu.memory_space<vmem>>, vector<1x32xf32>
    %24 = vector.broadcast %23 : vector<1x32xf32> to vector<176x32xf32>
    %25 = arith.addf %22, %24 : vector<176x32xf32>
    %cst_23 = arith.constant 0.000000e+00 : f32
    %26 = vector.broadcast %cst_23 : f32 to vector<176x32xf32>
    %27 = arith.maximumf %25, %26 : vector<176x32xf32>
    %28 = arith.truncf %27 : vector<176x32xf32> to vector<176x32xbf16>
    %c352_24 = arith.constant 352 : index
    %c0_25 = arith.constant 0 : index
    %29 = vector.load %arg4[%c352_24, %c0_25] : memref<1408x32xbf16, #tpu.memory_space<vmem>>, vector<176x32xbf16>
    tpu.vector_store %arg4[%c352_24, %c0_25], %28 {strides = array<i32>} : memref<1408x32xbf16, #tpu.memory_space<vmem>>, vector<176x32xbf16>,
    %c528 = arith.constant 528 : index
    %c0_26 = arith.constant 0 : index
    %30 = vector.load %arg1[%c528, %c0_26] : memref<1408x9xbf16, #tpu.memory_space<vmem>>, vector<176x9xbf16>
    %c0_27 = arith.constant 0 : index
    %c0_28 = arith.constant 0 : index
    %31 = vector.load %arg2[%c0_27, %c0_28] : memref<9x32xbf16, #tpu.memory_space<vmem>>, vector<9x32xbf16>
    %cst_29 = arith.constant dense<0.000000e+00> : vector<176x32xf32>
    %32 = tpu.matmul %30, %31, %cst_29 {dimension_numbers = #tpu.dot_dimension_numbers<[1], [0], [0], [1], [0, 0, 1, 1], [], []>} : vector<176x9xbf16>, vector<9x32xbf16>, vector<176x32xf32> -> vector<176x32xf32>
    %c0_30 = arith.constant 0 : index
    %c0_31 = arith.constant 0 : index
    %33 = vector.load %arg3[%c0_30, %c0_31] : memref<1x32xf32, #tpu.memory_space<vmem>>, vector<1x32xf32>
    %34 = vector.broadcast %33 : vector<1x32xf32> to vector<176x32xf32>
    %35 = arith.addf %32, %34 : vector<176x32xf32>
    %cst_32 = arith.constant 0.000000e+00 : f32
    %36 = vector.broadcast %cst_32 : f32 to vector<176x32xf32>
    %37 = arith.maximumf %35, %36 : vector<176x32xf32>
    %38 = arith.truncf %37 : vector<176x32xf32> to vector<176x32xbf16>
    %c528_33 = arith.constant 528 : index
    %c0_34 = arith.constant 0 : index
    %39 = vector.load %arg4[%c528_33, %c0_34] : memref<1408x32xbf16, #tpu.memory_space<vmem>>, vector<176x32xbf16>
    tpu.vector_store %arg4[%c528_33, %c0_34], %38 {strides = array<i32>} : memref<1408x32xbf16, #tpu.memory_space<vmem>>, vector<176x32xbf16>,
    %c704 = arith.constant 704 : index
    %c0_35 = arith.constant 0 : index
    %40 = vector.load %arg1[%c704, %c0_35] : memref<1408x9xbf16, #tpu.memory_space<vmem>>, vector<176x9xbf16>
    %c0_36 = arith.constant 0 : index
    %c0_37 = arith.constant 0 : index
    %41 = vector.load %arg2[%c0_36, %c0_37] : memref<9x32xbf16, #tpu.memory_space<vmem>>, vector<9x32xbf16>
    %cst_38 = arith.constant dense<0.000000e+00> : vector<176x32xf32>
    %42 = tpu.matmul %40, %41, %cst_38 {dimension_numbers = #tpu.dot_dimension_numbers<[1], [0], [0], [1], [0, 0, 1, 1], [], []>} : vector<176x9xbf16>, vector<9x32xbf16>, vector<176x32xf32> -> vector<176x32xf32>
    %c0_39 = arith.constant 0 : index
    %c0_40 = arith.constant 0 : index
    %43 = vector.load %arg3[%c0_39, %c0_40] : memref<1x32xf32, #tpu.memory_space<vmem>>, vector<1x32xf32>
    %44 = vector.broadcast %43 : vector<1x32xf32> to vector<176x32xf32>
    %45 = arith.addf %42, %44 : vector<176x32xf32>
    %cst_41 = arith.constant 0.000000e+00 : f32
    %46 = vector.broadcast %cst_41 : f32 to vector<176x32xf32>
    %47 = arith.maximumf %45, %46 : vector<176x32xf32>
    %48 = arith.truncf %47 : vector<176x32xf32> to vector<176x32xbf16>
    %c704_42 = arith.constant 704 : index
    %c0_43 = arith.constant 0 : index
    %49 = vector.load %arg4[%c704_42, %c0_43] : memref<1408x32xbf16, #tpu.memory_space<vmem>>, vector<176x32xbf16>
    tpu.vector_store %arg4[%c704_42, %c0_43], %48 {strides = array<i32>} : memref<1408x32xbf16, #tpu.memory_space<vmem>>, vector<176x32xbf16>,
    %c880 = arith.constant 880 : index
    %c0_44 = arith.constant 0 : index
    %50 = vector.load %arg1[%c880, %c0_44] : memref<1408x9xbf16, #tpu.memory_space<vmem>>, vector<176x9xbf16>
    %c0_45 = arith.constant 0 : index
    %c0_46 = arith.constant 0 : index
    %51 = vector.load %arg2[%c0_45, %c0_46] : memref<9x32xbf16, #tpu.memory_space<vmem>>, vector<9x32xbf16>
    %cst_47 = arith.constant dense<0.000000e+00> : vector<176x32xf32>
    %52 = tpu.matmul %50, %51, %cst_47 {dimension_numbers = #tpu.dot_dimension_numbers<[1], [0], [0], [1], [0, 0, 1, 1], [], []>} : vector<176x9xbf16>, vector<9x32xbf16>, vector<176x32xf32> -> vector<176x32xf32>
    %c0_48 = arith.constant 0 : index
    %c0_49 = arith.constant 0 : index
    %53 = vector.load %arg3[%c0_48, %c0_49] : memref<1x32xf32, #tpu.memory_space<vmem>>, vector<1x32xf32>
    %54 = vector.broadcast %53 : vector<1x32xf32> to vector<176x32xf32>
    %55 = arith.addf %52, %54 : vector<176x32xf32>
    %cst_50 = arith.constant 0.000000e+00 : f32
    %56 = vector.broadcast %cst_50 : f32 to vector<176x32xf32>
    %57 = arith.maximumf %55, %56 : vector<176x32xf32>
    %58 = arith.truncf %57 : vector<176x32xf32> to vector<176x32xbf16>
    %c880_51 = arith.constant 880 : index
    %c0_52 = arith.constant 0 : index
    %59 = vector.load %arg4[%c880_51, %c0_52] : memref<1408x32xbf16, #tpu.memory_space<vmem>>, vector<176x32xbf16>
    tpu.vector_store %arg4[%c880_51, %c0_52], %58 {strides = array<i32>} : memref<1408x32xbf16, #tpu.memory_space<vmem>>, vector<176x32xbf16>,
    %c1056 = arith.constant 1056 : index
    %c0_53 = arith.constant 0 : index
    %60 = vector.load %arg1[%c1056, %c0_53] : memref<1408x9xbf16, #tpu.memory_space<vmem>>, vector<176x9xbf16>
    %c0_54 = arith.constant 0 : index
    %c0_55 = arith.constant 0 : index
    %61 = vector.load %arg2[%c0_54, %c0_55] : memref<9x32xbf16, #tpu.memory_space<vmem>>, vector<9x32xbf16>
    %cst_56 = arith.constant dense<0.000000e+00> : vector<176x32xf32>
    %62 = tpu.matmul %60, %61, %cst_56 {dimension_numbers = #tpu.dot_dimension_numbers<[1], [0], [0], [1], [0, 0, 1, 1], [], []>} : vector<176x9xbf16>, vector<9x32xbf16>, vector<176x32xf32> -> vector<176x32xf32>
    %c0_57 = arith.constant 0 : index
    %c0_58 = arith.constant 0 : index
    %63 = vector.load %arg3[%c0_57, %c0_58] : memref<1x32xf32, #tpu.memory_space<vmem>>, vector<1x32xf32>
    %64 = vector.broadcast %63 : vector<1x32xf32> to vector<176x32xf32>
    %65 = arith.addf %62, %64 : vector<176x32xf32>
    %cst_59 = arith.constant 0.000000e+00 : f32
    %66 = vector.broadcast %cst_59 : f32 to vector<176x32xf32>
    %67 = arith.maximumf %65, %66 : vector<176x32xf32>
    %68 = arith.truncf %67 : vector<176x32xf32> to vector<176x32xbf16>
    %c1056_60 = arith.constant 1056 : index
    %c0_61 = arith.constant 0 : index
    %69 = vector.load %arg4[%c1056_60, %c0_61] : memref<1408x32xbf16, #tpu.memory_space<vmem>>, vector<176x32xbf16>
    tpu.vector_store %arg4[%c1056_60, %c0_61], %68 {strides = array<i32>} : memref<1408x32xbf16, #tpu.memory_space<vmem>>, vector<176x32xbf16>,
    %c1232 = arith.constant 1232 : index
    %c0_62 = arith.constant 0 : index
    %70 = vector.load %arg1[%c1232, %c0_62] : memref<1408x9xbf16, #tpu.memory_space<vmem>>, vector<176x9xbf16>
    %c0_63 = arith.constant 0 : index
    %c0_64 = arith.constant 0 : index
    %71 = vector.load %arg2[%c0_63, %c0_64] : memref<9x32xbf16, #tpu.memory_space<vmem>>, vector<9x32xbf16>
    %cst_65 = arith.constant dense<0.000000e+00> : vector<176x32xf32>
    %72 = tpu.matmul %70, %71, %cst_65 {dimension_numbers = #tpu.dot_dimension_numbers<[1], [0], [0], [1], [0, 0, 1, 1], [], []>} : vector<176x9xbf16>, vector<9x32xbf16>, vector<176x32xf32> -> vector<176x32xf32>
    %c0_66 = arith.constant 0 : index
    %c0_67 = arith.constant 0 : index
    %73 = vector.load %arg3[%c0_66, %c0_67] : memref<1x32xf32, #tpu.memory_space<vmem>>, vector<1x32xf32>
    %74 = vector.broadcast %73 : vector<1x32xf32> to vector<176x32xf32>
    %75 = arith.addf %72, %74 : vector<176x32xf32>
    %cst_68 = arith.constant 0.000000e+00 : f32
    %76 = vector.broadcast %cst_68 : f32 to vector<176x32xf32>
    %77 = arith.maximumf %75, %76 : vector<176x32xf32>
    %78 = arith.truncf %77 : vector<176x32xf32> to vector<176x32xbf16>
    %c1232_69 = arith.constant 1232 : index
    %c0_70 = arith.constant 0 : index
    %79 = vector.load %arg4[%c1232_69, %c0_70] : memref<1408x32xbf16, #tpu.memory_space<vmem>>, vector<176x32xbf16>
    tpu.vector_store %arg4[%c1232_69, %c0_70], %78 {strides = array<i32>} : memref<1408x32xbf16, #tpu.memory_space<vmem>>, vector<176x32xbf16>,
    return
  }
  func.func @transform_0(%arg0: i32) -> (i32, i32) {
    %c0_i32 = arith.constant 0 : i32
    %c0_i32_0 = arith.constant 0 : i32
    return %arg0, %c0_i32 : i32, i32
  }
  func.func @transform_1(%arg0: i32) -> (i32, i32) {
    %c0_i32 = arith.constant 0 : i32
    %c0_i32_0 = arith.constant 0 : i32
    %c0_i32_1 = arith.constant 0 : i32
    return %c0_i32, %c0_i32_0 : i32, i32
  }
  func.func @transform_2(%arg0: i32) -> (i32, i32) {
    %c0_i32 = arith.constant 0 : i32
    %c0_i32_0 = arith.constant 0 : i32
    %c0_i32_1 = arith.constant 0 : i32
    return %c0_i32, %c0_i32_0 : i32, i32
  }
  func.func @transform_3(%arg0: i32) -> (i32, i32) {
    %c0_i32 = arith.constant 0 : i32
    %c0_i32_0 = arith.constant 0 : i32
    return %arg0, %c0_i32 : i32, i32
  }
}

module attributes {stable_mosaic.version = 11 : i64} {
  func.func @kernel(%arg0: i32, %arg1: memref<128x288xbf16, #tpu.memory_space<vmem>>, %arg2: memref<288x128xbf16, #tpu.memory_space<vmem>>, %arg3: memref<1x128xf32, #tpu.memory_space<vmem>>, %arg4: memref<2048x128xbf16, #tpu.memory_space<vmem>>, %arg5: memref<1x128xf32, #tpu.memory_space<vmem>>, %arg6: memref<128x128xbf16, #tpu.memory_space<vmem>>, %arg7: memref<1x128xf32, #tpu.memory_space<vmem>>, %arg8: memref<8x128xf32, #tpu.memory_space<vmem>>) attributes {dimension_semantics = [#tpu.dimension_semantics<parallel>], iteration_bounds = array<i64: 1>, scalar_prefetch = 0 : i64, scratch_operands = 0 : i64, tpu.core_type = #tpu.core_type<tc>, window_params = [{transform_indices = @transform_0, window_bounds = array<i64: 128, 288>}, {pipeline_mode = #tpu.pipeline_mode<synchronous>, transform_indices = @transform_1, window_bounds = array<i64: 288, 128>}, {pipeline_mode = #tpu.pipeline_mode<synchronous>, transform_indices = @transform_2, window_bounds = array<i64: 1, 128>}, {pipeline_mode = #tpu.pipeline_mode<synchronous>, transform_indices = @transform_3, window_bounds = array<i64: 2048, 128>}, {pipeline_mode = #tpu.pipeline_mode<synchronous>, transform_indices = @transform_4, window_bounds = array<i64: 1, 128>}, {pipeline_mode = #tpu.pipeline_mode<synchronous>, transform_indices = @transform_5, window_bounds = array<i64: 128, 128>}, {pipeline_mode = #tpu.pipeline_mode<synchronous>, transform_indices = @transform_6, window_bounds = array<i64: 1, 128>}, {transform_indices = @transform_7, window_bounds = array<i64: 8, 128>}]} {
    %c0 = arith.constant 0 : index
    %c0_0 = arith.constant 0 : index
    %0 = vector.load %arg1[%c0, %c0_0] : memref<128x288xbf16, #tpu.memory_space<vmem>>, vector<8x288xbf16>
    %c0_1 = arith.constant 0 : index
    %c0_2 = arith.constant 0 : index
    %1 = vector.load %arg2[%c0_1, %c0_2] : memref<288x128xbf16, #tpu.memory_space<vmem>>, vector<288x128xbf16>
    %cst = arith.constant dense<0.000000e+00> : vector<8x128xf32>
    %2 = tpu.matmul %0, %1, %cst {dimension_numbers = #tpu.dot_dimension_numbers<[1], [0], [0], [1], [0, 0, 1, 1], [], []>} : vector<8x288xbf16>, vector<288x128xbf16>, vector<8x128xf32> -> vector<8x128xf32>
    %c0_3 = arith.constant 0 : index
    %c0_4 = arith.constant 0 : index
    %3 = vector.load %arg3[%c0_3, %c0_4] : memref<1x128xf32, #tpu.memory_space<vmem>>, vector<1x128xf32>
    %4 = vector.broadcast %3 : vector<1x128xf32> to vector<8x128xf32>
    %5 = arith.addf %2, %4 : vector<8x128xf32>
    %cst_5 = arith.constant 0.000000e+00 : f32
    %6 = vector.broadcast %cst_5 : f32 to vector<8x128xf32>
    %7 = arith.maximumf %5, %6 : vector<8x128xf32>
    %8 = arith.truncf %7 : vector<8x128xf32> to vector<8x128xbf16>
    %c8 = arith.constant 8 : index
    %c0_6 = arith.constant 0 : index
    %9 = vector.load %arg1[%c8, %c0_6] : memref<128x288xbf16, #tpu.memory_space<vmem>>, vector<8x288xbf16>
    %c0_7 = arith.constant 0 : index
    %c0_8 = arith.constant 0 : index
    %10 = vector.load %arg2[%c0_7, %c0_8] : memref<288x128xbf16, #tpu.memory_space<vmem>>, vector<288x128xbf16>
    %cst_9 = arith.constant dense<0.000000e+00> : vector<8x128xf32>
    %11 = tpu.matmul %9, %10, %cst_9 {dimension_numbers = #tpu.dot_dimension_numbers<[1], [0], [0], [1], [0, 0, 1, 1], [], []>} : vector<8x288xbf16>, vector<288x128xbf16>, vector<8x128xf32> -> vector<8x128xf32>
    %c0_10 = arith.constant 0 : index
    %c0_11 = arith.constant 0 : index
    %12 = vector.load %arg3[%c0_10, %c0_11] : memref<1x128xf32, #tpu.memory_space<vmem>>, vector<1x128xf32>
    %13 = vector.broadcast %12 : vector<1x128xf32> to vector<8x128xf32>
    %14 = arith.addf %11, %13 : vector<8x128xf32>
    %cst_12 = arith.constant 0.000000e+00 : f32
    %15 = vector.broadcast %cst_12 : f32 to vector<8x128xf32>
    %16 = arith.maximumf %14, %15 : vector<8x128xf32>
    %17 = arith.truncf %16 : vector<8x128xf32> to vector<8x128xbf16>
    %c16 = arith.constant 16 : index
    %c0_13 = arith.constant 0 : index
    %18 = vector.load %arg1[%c16, %c0_13] : memref<128x288xbf16, #tpu.memory_space<vmem>>, vector<8x288xbf16>
    %c0_14 = arith.constant 0 : index
    %c0_15 = arith.constant 0 : index
    %19 = vector.load %arg2[%c0_14, %c0_15] : memref<288x128xbf16, #tpu.memory_space<vmem>>, vector<288x128xbf16>
    %cst_16 = arith.constant dense<0.000000e+00> : vector<8x128xf32>
    %20 = tpu.matmul %18, %19, %cst_16 {dimension_numbers = #tpu.dot_dimension_numbers<[1], [0], [0], [1], [0, 0, 1, 1], [], []>} : vector<8x288xbf16>, vector<288x128xbf16>, vector<8x128xf32> -> vector<8x128xf32>
    %c0_17 = arith.constant 0 : index
    %c0_18 = arith.constant 0 : index
    %21 = vector.load %arg3[%c0_17, %c0_18] : memref<1x128xf32, #tpu.memory_space<vmem>>, vector<1x128xf32>
    %22 = vector.broadcast %21 : vector<1x128xf32> to vector<8x128xf32>
    %23 = arith.addf %20, %22 : vector<8x128xf32>
    %cst_19 = arith.constant 0.000000e+00 : f32
    %24 = vector.broadcast %cst_19 : f32 to vector<8x128xf32>
    %25 = arith.maximumf %23, %24 : vector<8x128xf32>
    %26 = arith.truncf %25 : vector<8x128xf32> to vector<8x128xbf16>
    %c24 = arith.constant 24 : index
    %c0_20 = arith.constant 0 : index
    %27 = vector.load %arg1[%c24, %c0_20] : memref<128x288xbf16, #tpu.memory_space<vmem>>, vector<8x288xbf16>
    %c0_21 = arith.constant 0 : index
    %c0_22 = arith.constant 0 : index
    %28 = vector.load %arg2[%c0_21, %c0_22] : memref<288x128xbf16, #tpu.memory_space<vmem>>, vector<288x128xbf16>
    %cst_23 = arith.constant dense<0.000000e+00> : vector<8x128xf32>
    %29 = tpu.matmul %27, %28, %cst_23 {dimension_numbers = #tpu.dot_dimension_numbers<[1], [0], [0], [1], [0, 0, 1, 1], [], []>} : vector<8x288xbf16>, vector<288x128xbf16>, vector<8x128xf32> -> vector<8x128xf32>
    %c0_24 = arith.constant 0 : index
    %c0_25 = arith.constant 0 : index
    %30 = vector.load %arg3[%c0_24, %c0_25] : memref<1x128xf32, #tpu.memory_space<vmem>>, vector<1x128xf32>
    %31 = vector.broadcast %30 : vector<1x128xf32> to vector<8x128xf32>
    %32 = arith.addf %29, %31 : vector<8x128xf32>
    %cst_26 = arith.constant 0.000000e+00 : f32
    %33 = vector.broadcast %cst_26 : f32 to vector<8x128xf32>
    %34 = arith.maximumf %32, %33 : vector<8x128xf32>
    %35 = arith.truncf %34 : vector<8x128xf32> to vector<8x128xbf16>
    %c32 = arith.constant 32 : index
    %c0_27 = arith.constant 0 : index
    %36 = vector.load %arg1[%c32, %c0_27] : memref<128x288xbf16, #tpu.memory_space<vmem>>, vector<8x288xbf16>
    %c0_28 = arith.constant 0 : index
    %c0_29 = arith.constant 0 : index
    %37 = vector.load %arg2[%c0_28, %c0_29] : memref<288x128xbf16, #tpu.memory_space<vmem>>, vector<288x128xbf16>
    %cst_30 = arith.constant dense<0.000000e+00> : vector<8x128xf32>
    %38 = tpu.matmul %36, %37, %cst_30 {dimension_numbers = #tpu.dot_dimension_numbers<[1], [0], [0], [1], [0, 0, 1, 1], [], []>} : vector<8x288xbf16>, vector<288x128xbf16>, vector<8x128xf32> -> vector<8x128xf32>
    %c0_31 = arith.constant 0 : index
    %c0_32 = arith.constant 0 : index
    %39 = vector.load %arg3[%c0_31, %c0_32] : memref<1x128xf32, #tpu.memory_space<vmem>>, vector<1x128xf32>
    %40 = vector.broadcast %39 : vector<1x128xf32> to vector<8x128xf32>
    %41 = arith.addf %38, %40 : vector<8x128xf32>
    %cst_33 = arith.constant 0.000000e+00 : f32
    %42 = vector.broadcast %cst_33 : f32 to vector<8x128xf32>
    %43 = arith.maximumf %41, %42 : vector<8x128xf32>
    %44 = arith.truncf %43 : vector<8x128xf32> to vector<8x128xbf16>
    %c40 = arith.constant 40 : index
    %c0_34 = arith.constant 0 : index
    %45 = vector.load %arg1[%c40, %c0_34] : memref<128x288xbf16, #tpu.memory_space<vmem>>, vector<8x288xbf16>
    %c0_35 = arith.constant 0 : index
    %c0_36 = arith.constant 0 : index
    %46 = vector.load %arg2[%c0_35, %c0_36] : memref<288x128xbf16, #tpu.memory_space<vmem>>, vector<288x128xbf16>
    %cst_37 = arith.constant dense<0.000000e+00> : vector<8x128xf32>
    %47 = tpu.matmul %45, %46, %cst_37 {dimension_numbers = #tpu.dot_dimension_numbers<[1], [0], [0], [1], [0, 0, 1, 1], [], []>} : vector<8x288xbf16>, vector<288x128xbf16>, vector<8x128xf32> -> vector<8x128xf32>
    %c0_38 = arith.constant 0 : index
    %c0_39 = arith.constant 0 : index
    %48 = vector.load %arg3[%c0_38, %c0_39] : memref<1x128xf32, #tpu.memory_space<vmem>>, vector<1x128xf32>
    %49 = vector.broadcast %48 : vector<1x128xf32> to vector<8x128xf32>
    %50 = arith.addf %47, %49 : vector<8x128xf32>
    %cst_40 = arith.constant 0.000000e+00 : f32
    %51 = vector.broadcast %cst_40 : f32 to vector<8x128xf32>
    %52 = arith.maximumf %50, %51 : vector<8x128xf32>
    %53 = arith.truncf %52 : vector<8x128xf32> to vector<8x128xbf16>
    %c48 = arith.constant 48 : index
    %c0_41 = arith.constant 0 : index
    %54 = vector.load %arg1[%c48, %c0_41] : memref<128x288xbf16, #tpu.memory_space<vmem>>, vector<8x288xbf16>
    %c0_42 = arith.constant 0 : index
    %c0_43 = arith.constant 0 : index
    %55 = vector.load %arg2[%c0_42, %c0_43] : memref<288x128xbf16, #tpu.memory_space<vmem>>, vector<288x128xbf16>
    %cst_44 = arith.constant dense<0.000000e+00> : vector<8x128xf32>
    %56 = tpu.matmul %54, %55, %cst_44 {dimension_numbers = #tpu.dot_dimension_numbers<[1], [0], [0], [1], [0, 0, 1, 1], [], []>} : vector<8x288xbf16>, vector<288x128xbf16>, vector<8x128xf32> -> vector<8x128xf32>
    %c0_45 = arith.constant 0 : index
    %c0_46 = arith.constant 0 : index
    %57 = vector.load %arg3[%c0_45, %c0_46] : memref<1x128xf32, #tpu.memory_space<vmem>>, vector<1x128xf32>
    %58 = vector.broadcast %57 : vector<1x128xf32> to vector<8x128xf32>
    %59 = arith.addf %56, %58 : vector<8x128xf32>
    %cst_47 = arith.constant 0.000000e+00 : f32
    %60 = vector.broadcast %cst_47 : f32 to vector<8x128xf32>
    %61 = arith.maximumf %59, %60 : vector<8x128xf32>
    %62 = arith.truncf %61 : vector<8x128xf32> to vector<8x128xbf16>
    %c56 = arith.constant 56 : index
    %c0_48 = arith.constant 0 : index
    %63 = vector.load %arg1[%c56, %c0_48] : memref<128x288xbf16, #tpu.memory_space<vmem>>, vector<8x288xbf16>
    %c0_49 = arith.constant 0 : index
    %c0_50 = arith.constant 0 : index
    %64 = vector.load %arg2[%c0_49, %c0_50] : memref<288x128xbf16, #tpu.memory_space<vmem>>, vector<288x128xbf16>
    %cst_51 = arith.constant dense<0.000000e+00> : vector<8x128xf32>
    %65 = tpu.matmul %63, %64, %cst_51 {dimension_numbers = #tpu.dot_dimension_numbers<[1], [0], [0], [1], [0, 0, 1, 1], [], []>} : vector<8x288xbf16>, vector<288x128xbf16>, vector<8x128xf32> -> vector<8x128xf32>
    %c0_52 = arith.constant 0 : index
    %c0_53 = arith.constant 0 : index
    %66 = vector.load %arg3[%c0_52, %c0_53] : memref<1x128xf32, #tpu.memory_space<vmem>>, vector<1x128xf32>
    %67 = vector.broadcast %66 : vector<1x128xf32> to vector<8x128xf32>
    %68 = arith.addf %65, %67 : vector<8x128xf32>
    %cst_54 = arith.constant 0.000000e+00 : f32
    %69 = vector.broadcast %cst_54 : f32 to vector<8x128xf32>
    %70 = arith.maximumf %68, %69 : vector<8x128xf32>
    %71 = arith.truncf %70 : vector<8x128xf32> to vector<8x128xbf16>
    %c64 = arith.constant 64 : index
    %c0_55 = arith.constant 0 : index
    %72 = vector.load %arg1[%c64, %c0_55] : memref<128x288xbf16, #tpu.memory_space<vmem>>, vector<8x288xbf16>
    %c0_56 = arith.constant 0 : index
    %c0_57 = arith.constant 0 : index
    %73 = vector.load %arg2[%c0_56, %c0_57] : memref<288x128xbf16, #tpu.memory_space<vmem>>, vector<288x128xbf16>
    %cst_58 = arith.constant dense<0.000000e+00> : vector<8x128xf32>
    %74 = tpu.matmul %72, %73, %cst_58 {dimension_numbers = #tpu.dot_dimension_numbers<[1], [0], [0], [1], [0, 0, 1, 1], [], []>} : vector<8x288xbf16>, vector<288x128xbf16>, vector<8x128xf32> -> vector<8x128xf32>
    %c0_59 = arith.constant 0 : index
    %c0_60 = arith.constant 0 : index
    %75 = vector.load %arg3[%c0_59, %c0_60] : memref<1x128xf32, #tpu.memory_space<vmem>>, vector<1x128xf32>
    %76 = vector.broadcast %75 : vector<1x128xf32> to vector<8x128xf32>
    %77 = arith.addf %74, %76 : vector<8x128xf32>
    %cst_61 = arith.constant 0.000000e+00 : f32
    %78 = vector.broadcast %cst_61 : f32 to vector<8x128xf32>
    %79 = arith.maximumf %77, %78 : vector<8x128xf32>
    %80 = arith.truncf %79 : vector<8x128xf32> to vector<8x128xbf16>
    %c72 = arith.constant 72 : index
    %c0_62 = arith.constant 0 : index
    %81 = vector.load %arg1[%c72, %c0_62] : memref<128x288xbf16, #tpu.memory_space<vmem>>, vector<8x288xbf16>
    %c0_63 = arith.constant 0 : index
    %c0_64 = arith.constant 0 : index
    %82 = vector.load %arg2[%c0_63, %c0_64] : memref<288x128xbf16, #tpu.memory_space<vmem>>, vector<288x128xbf16>
    %cst_65 = arith.constant dense<0.000000e+00> : vector<8x128xf32>
    %83 = tpu.matmul %81, %82, %cst_65 {dimension_numbers = #tpu.dot_dimension_numbers<[1], [0], [0], [1], [0, 0, 1, 1], [], []>} : vector<8x288xbf16>, vector<288x128xbf16>, vector<8x128xf32> -> vector<8x128xf32>
    %c0_66 = arith.constant 0 : index
    %c0_67 = arith.constant 0 : index
    %84 = vector.load %arg3[%c0_66, %c0_67] : memref<1x128xf32, #tpu.memory_space<vmem>>, vector<1x128xf32>
    %85 = vector.broadcast %84 : vector<1x128xf32> to vector<8x128xf32>
    %86 = arith.addf %83, %85 : vector<8x128xf32>
    %cst_68 = arith.constant 0.000000e+00 : f32
    %87 = vector.broadcast %cst_68 : f32 to vector<8x128xf32>
    %88 = arith.maximumf %86, %87 : vector<8x128xf32>
    %89 = arith.truncf %88 : vector<8x128xf32> to vector<8x128xbf16>
    %c80 = arith.constant 80 : index
    %c0_69 = arith.constant 0 : index
    %90 = vector.load %arg1[%c80, %c0_69] : memref<128x288xbf16, #tpu.memory_space<vmem>>, vector<8x288xbf16>
    %c0_70 = arith.constant 0 : index
    %c0_71 = arith.constant 0 : index
    %91 = vector.load %arg2[%c0_70, %c0_71] : memref<288x128xbf16, #tpu.memory_space<vmem>>, vector<288x128xbf16>
    %cst_72 = arith.constant dense<0.000000e+00> : vector<8x128xf32>
    %92 = tpu.matmul %90, %91, %cst_72 {dimension_numbers = #tpu.dot_dimension_numbers<[1], [0], [0], [1], [0, 0, 1, 1], [], []>} : vector<8x288xbf16>, vector<288x128xbf16>, vector<8x128xf32> -> vector<8x128xf32>
    %c0_73 = arith.constant 0 : index
    %c0_74 = arith.constant 0 : index
    %93 = vector.load %arg3[%c0_73, %c0_74] : memref<1x128xf32, #tpu.memory_space<vmem>>, vector<1x128xf32>
    %94 = vector.broadcast %93 : vector<1x128xf32> to vector<8x128xf32>
    %95 = arith.addf %92, %94 : vector<8x128xf32>
    %cst_75 = arith.constant 0.000000e+00 : f32
    %96 = vector.broadcast %cst_75 : f32 to vector<8x128xf32>
    %97 = arith.maximumf %95, %96 : vector<8x128xf32>
    %98 = arith.truncf %97 : vector<8x128xf32> to vector<8x128xbf16>
    %c88 = arith.constant 88 : index
    %c0_76 = arith.constant 0 : index
    %99 = vector.load %arg1[%c88, %c0_76] : memref<128x288xbf16, #tpu.memory_space<vmem>>, vector<8x288xbf16>
    %c0_77 = arith.constant 0 : index
    %c0_78 = arith.constant 0 : index
    %100 = vector.load %arg2[%c0_77, %c0_78] : memref<288x128xbf16, #tpu.memory_space<vmem>>, vector<288x128xbf16>
    %cst_79 = arith.constant dense<0.000000e+00> : vector<8x128xf32>
    %101 = tpu.matmul %99, %100, %cst_79 {dimension_numbers = #tpu.dot_dimension_numbers<[1], [0], [0], [1], [0, 0, 1, 1], [], []>} : vector<8x288xbf16>, vector<288x128xbf16>, vector<8x128xf32> -> vector<8x128xf32>
    %c0_80 = arith.constant 0 : index
    %c0_81 = arith.constant 0 : index
    %102 = vector.load %arg3[%c0_80, %c0_81] : memref<1x128xf32, #tpu.memory_space<vmem>>, vector<1x128xf32>
    %103 = vector.broadcast %102 : vector<1x128xf32> to vector<8x128xf32>
    %104 = arith.addf %101, %103 : vector<8x128xf32>
    %cst_82 = arith.constant 0.000000e+00 : f32
    %105 = vector.broadcast %cst_82 : f32 to vector<8x128xf32>
    %106 = arith.maximumf %104, %105 : vector<8x128xf32>
    %107 = arith.truncf %106 : vector<8x128xf32> to vector<8x128xbf16>
    %c96 = arith.constant 96 : index
    %c0_83 = arith.constant 0 : index
    %108 = vector.load %arg1[%c96, %c0_83] : memref<128x288xbf16, #tpu.memory_space<vmem>>, vector<8x288xbf16>
    %c0_84 = arith.constant 0 : index
    %c0_85 = arith.constant 0 : index
    %109 = vector.load %arg2[%c0_84, %c0_85] : memref<288x128xbf16, #tpu.memory_space<vmem>>, vector<288x128xbf16>
    %cst_86 = arith.constant dense<0.000000e+00> : vector<8x128xf32>
    %110 = tpu.matmul %108, %109, %cst_86 {dimension_numbers = #tpu.dot_dimension_numbers<[1], [0], [0], [1], [0, 0, 1, 1], [], []>} : vector<8x288xbf16>, vector<288x128xbf16>, vector<8x128xf32> -> vector<8x128xf32>
    %c0_87 = arith.constant 0 : index
    %c0_88 = arith.constant 0 : index
    %111 = vector.load %arg3[%c0_87, %c0_88] : memref<1x128xf32, #tpu.memory_space<vmem>>, vector<1x128xf32>
    %112 = vector.broadcast %111 : vector<1x128xf32> to vector<8x128xf32>
    %113 = arith.addf %110, %112 : vector<8x128xf32>
    %cst_89 = arith.constant 0.000000e+00 : f32
    %114 = vector.broadcast %cst_89 : f32 to vector<8x128xf32>
    %115 = arith.maximumf %113, %114 : vector<8x128xf32>
    %116 = arith.truncf %115 : vector<8x128xf32> to vector<8x128xbf16>
    %c104 = arith.constant 104 : index
    %c0_90 = arith.constant 0 : index
    %117 = vector.load %arg1[%c104, %c0_90] : memref<128x288xbf16, #tpu.memory_space<vmem>>, vector<8x288xbf16>
    %c0_91 = arith.constant 0 : index
    %c0_92 = arith.constant 0 : index
    %118 = vector.load %arg2[%c0_91, %c0_92] : memref<288x128xbf16, #tpu.memory_space<vmem>>, vector<288x128xbf16>
    %cst_93 = arith.constant dense<0.000000e+00> : vector<8x128xf32>
    %119 = tpu.matmul %117, %118, %cst_93 {dimension_numbers = #tpu.dot_dimension_numbers<[1], [0], [0], [1], [0, 0, 1, 1], [], []>} : vector<8x288xbf16>, vector<288x128xbf16>, vector<8x128xf32> -> vector<8x128xf32>
    %c0_94 = arith.constant 0 : index
    %c0_95 = arith.constant 0 : index
    %120 = vector.load %arg3[%c0_94, %c0_95] : memref<1x128xf32, #tpu.memory_space<vmem>>, vector<1x128xf32>
    %121 = vector.broadcast %120 : vector<1x128xf32> to vector<8x128xf32>
    %122 = arith.addf %119, %121 : vector<8x128xf32>
    %cst_96 = arith.constant 0.000000e+00 : f32
    %123 = vector.broadcast %cst_96 : f32 to vector<8x128xf32>
    %124 = arith.maximumf %122, %123 : vector<8x128xf32>
    %125 = arith.truncf %124 : vector<8x128xf32> to vector<8x128xbf16>
    %c112 = arith.constant 112 : index
    %c0_97 = arith.constant 0 : index
    %126 = vector.load %arg1[%c112, %c0_97] : memref<128x288xbf16, #tpu.memory_space<vmem>>, vector<8x288xbf16>
    %c0_98 = arith.constant 0 : index
    %c0_99 = arith.constant 0 : index
    %127 = vector.load %arg2[%c0_98, %c0_99] : memref<288x128xbf16, #tpu.memory_space<vmem>>, vector<288x128xbf16>
    %cst_100 = arith.constant dense<0.000000e+00> : vector<8x128xf32>
    %128 = tpu.matmul %126, %127, %cst_100 {dimension_numbers = #tpu.dot_dimension_numbers<[1], [0], [0], [1], [0, 0, 1, 1], [], []>} : vector<8x288xbf16>, vector<288x128xbf16>, vector<8x128xf32> -> vector<8x128xf32>
    %c0_101 = arith.constant 0 : index
    %c0_102 = arith.constant 0 : index
    %129 = vector.load %arg3[%c0_101, %c0_102] : memref<1x128xf32, #tpu.memory_space<vmem>>, vector<1x128xf32>
    %130 = vector.broadcast %129 : vector<1x128xf32> to vector<8x128xf32>
    %131 = arith.addf %128, %130 : vector<8x128xf32>
    %cst_103 = arith.constant 0.000000e+00 : f32
    %132 = vector.broadcast %cst_103 : f32 to vector<8x128xf32>
    %133 = arith.maximumf %131, %132 : vector<8x128xf32>
    %134 = arith.truncf %133 : vector<8x128xf32> to vector<8x128xbf16>
    %c120 = arith.constant 120 : index
    %c0_104 = arith.constant 0 : index
    %135 = vector.load %arg1[%c120, %c0_104] : memref<128x288xbf16, #tpu.memory_space<vmem>>, vector<8x288xbf16>
    %c0_105 = arith.constant 0 : index
    %c0_106 = arith.constant 0 : index
    %136 = vector.load %arg2[%c0_105, %c0_106] : memref<288x128xbf16, #tpu.memory_space<vmem>>, vector<288x128xbf16>
    %cst_107 = arith.constant dense<0.000000e+00> : vector<8x128xf32>
    %137 = tpu.matmul %135, %136, %cst_107 {dimension_numbers = #tpu.dot_dimension_numbers<[1], [0], [0], [1], [0, 0, 1, 1], [], []>} : vector<8x288xbf16>, vector<288x128xbf16>, vector<8x128xf32> -> vector<8x128xf32>
    %c0_108 = arith.constant 0 : index
    %c0_109 = arith.constant 0 : index
    %138 = vector.load %arg3[%c0_108, %c0_109] : memref<1x128xf32, #tpu.memory_space<vmem>>, vector<1x128xf32>
    %139 = vector.broadcast %138 : vector<1x128xf32> to vector<8x128xf32>
    %140 = arith.addf %137, %139 : vector<8x128xf32>
    %cst_110 = arith.constant 0.000000e+00 : f32
    %141 = vector.broadcast %cst_110 : f32 to vector<8x128xf32>
    %142 = arith.maximumf %140, %141 : vector<8x128xf32>
    %143 = arith.truncf %142 : vector<8x128xf32> to vector<8x128xbf16>
    %144 = tpu.concatenate %8, %17, %26, %35, %44, %53, %62, %71, %80, %89, %98, %107, %116, %125, %134, %143 in 1 : vector<8x128xbf16>, vector<8x128xbf16>, vector<8x128xbf16>, vector<8x128xbf16>, vector<8x128xbf16>, vector<8x128xbf16>, vector<8x128xbf16>, vector<8x128xbf16>, vector<8x128xbf16>, vector<8x128xbf16>, vector<8x128xbf16>, vector<8x128xbf16>, vector<8x128xbf16>, vector<8x128xbf16>, vector<8x128xbf16>, vector<8x128xbf16> -> vector<8x2048xbf16>
    %c0_111 = arith.constant 0 : index
    %c0_112 = arith.constant 0 : index
    %145 = vector.load %arg4[%c0_111, %c0_112] : memref<2048x128xbf16, #tpu.memory_space<vmem>>, vector<2048x128xbf16>
    %cst_113 = arith.constant dense<0.000000e+00> : vector<8x128xf32>
    %146 = tpu.matmul %144, %145, %cst_113 {dimension_numbers = #tpu.dot_dimension_numbers<[1], [0], [0], [1], [0, 0, 1, 1], [], []>} : vector<8x2048xbf16>, vector<2048x128xbf16>, vector<8x128xf32> -> vector<8x128xf32>
    %c0_114 = arith.constant 0 : index
    %c0_115 = arith.constant 0 : index
    %147 = vector.load %arg5[%c0_114, %c0_115] : memref<1x128xf32, #tpu.memory_space<vmem>>, vector<1x128xf32>
    %148 = vector.broadcast %147 : vector<1x128xf32> to vector<8x128xf32>
    %149 = arith.addf %146, %148 : vector<8x128xf32>
    %cst_116 = arith.constant 0.000000e+00 : f32
    %150 = vector.broadcast %cst_116 : f32 to vector<8x128xf32>
    %151 = arith.maximumf %149, %150 : vector<8x128xf32>
    %152 = arith.truncf %151 : vector<8x128xf32> to vector<8x128xbf16>
    %c0_117 = arith.constant 0 : index
    %c0_118 = arith.constant 0 : index
    %153 = vector.load %arg6[%c0_117, %c0_118] : memref<128x128xbf16, #tpu.memory_space<vmem>>, vector<128x128xbf16>
    %cst_119 = arith.constant dense<0.000000e+00> : vector<8x128xf32>
    %154 = tpu.matmul %152, %153, %cst_119 {dimension_numbers = #tpu.dot_dimension_numbers<[1], [0], [0], [1], [0, 0, 1, 1], [], []>} : vector<8x128xbf16>, vector<128x128xbf16>, vector<8x128xf32> -> vector<8x128xf32>
    %c0_120 = arith.constant 0 : index
    %c0_121 = arith.constant 0 : index
    %155 = vector.load %arg7[%c0_120, %c0_121] : memref<1x128xf32, #tpu.memory_space<vmem>>, vector<1x128xf32>
    %156 = vector.broadcast %155 : vector<1x128xf32> to vector<8x128xf32>
    %157 = arith.addf %154, %156 : vector<8x128xf32>
    %c0_122 = arith.constant 0 : index
    %c0_123 = arith.constant 0 : index
    %158 = vector.load %arg8[%c0_122, %c0_123] : memref<8x128xf32, #tpu.memory_space<vmem>>, vector<8x128xf32>
    tpu.vector_store %arg8[%c0_122, %c0_123], %157 {strides = array<i32>} : memref<8x128xf32, #tpu.memory_space<vmem>>, vector<8x128xf32>,
    return
  }
  func.func @transform_0(%arg0: i32) -> (i32, i32) {
    %c0_i32 = arith.constant 0 : i32
    %c0_i32_0 = arith.constant 0 : i32
    return %arg0, %c0_i32 : i32, i32
  }
  func.func @transform_1(%arg0: i32) -> (i32, i32) {
    %c0_i32 = arith.constant 0 : i32
    %c0_i32_0 = arith.constant 0 : i32
    %c0_i32_1 = arith.constant 0 : i32
    return %c0_i32, %c0_i32_0 : i32, i32
  }
  func.func @transform_2(%arg0: i32) -> (i32, i32) {
    %c0_i32 = arith.constant 0 : i32
    %c0_i32_0 = arith.constant 0 : i32
    %c0_i32_1 = arith.constant 0 : i32
    return %c0_i32, %c0_i32_0 : i32, i32
  }
  func.func @transform_3(%arg0: i32) -> (i32, i32) {
    %c0_i32 = arith.constant 0 : i32
    %c0_i32_0 = arith.constant 0 : i32
    %c0_i32_1 = arith.constant 0 : i32
    return %c0_i32, %c0_i32_0 : i32, i32
  }
  func.func @transform_4(%arg0: i32) -> (i32, i32) {
    %c0_i32 = arith.constant 0 : i32
    %c0_i32_0 = arith.constant 0 : i32
    %c0_i32_1 = arith.constant 0 : i32
    return %c0_i32, %c0_i32_0 : i32, i32
  }
  func.func @transform_5(%arg0: i32) -> (i32, i32) {
    %c0_i32 = arith.constant 0 : i32
    %c0_i32_0 = arith.constant 0 : i32
    %c0_i32_1 = arith.constant 0 : i32
    return %c0_i32, %c0_i32_0 : i32, i32
  }
  func.func @transform_6(%arg0: i32) -> (i32, i32) {
    %c0_i32 = arith.constant 0 : i32
    %c0_i32_0 = arith.constant 0 : i32
    %c0_i32_1 = arith.constant 0 : i32
    return %c0_i32, %c0_i32_0 : i32, i32
  }
  func.func @transform_7(%arg0: i32) -> (i32, i32) {
    %c0_i32 = arith.constant 0 : i32
    %c0_i32_0 = arith.constant 0 : i32
    return %arg0, %c0_i32 : i32, i32
  }
}

</mosaic_0001>

<llo_original>
// kernel: cnn_forward.2
$region0: #{cnn_forward.2}
  #allocation0 [shape = 'u32[]', space=smem, size = 0x4, offset = 0x4, fixed_abs, tag = 'smem constant byte address 0x4 - core index']
  #allocation1 [shape = 'u32[72,128]{1,0:T(1,128)}', space=vmem, size = 0x9000, scoped, tag = 'internal scratch']
  %s0 = inlined_call_operand.vmem [shape: bf16[1408,9], index: 0, kind: input, shape index: {}]
  %s1 = inlined_call_operand.vmem [shape: bf16[9,32], index: 1, kind: input, shape index: {}]
  %s2 = inlined_call_operand.vmem [shape: f32[1,32], index: 2, kind: input, shape index: {}]
  %s3 = inlined_call_operand.vmem [shape: bf16[1408,32], index: 3, kind: output, shape index: {}]
  %s4 = sld [smem:[#allocation0]]
  $region22: #{cnn_forward.2} parent=0
    _
  %s6 = ssub.s32 1, %s4
  %s7 = scalar_select 0, %s6, %s4
  // Predicated region
  $region2: #{cnn_forward.2} parent=0 // pred_check
    _
  $region3: #{cnn_forward.2} parent=0 // pred_check_branch
    %9 = sbr.rel (0) target = $region5
  $region4: #{cnn_forward.2} parent=0 // pred_region
    _
  $region5: #{cnn_forward.2} parent=0 // pred_fallthru
    _
  // Predicated region
  $region6: #{cnn_forward.2} parent=0 // pred_check
    _
  $region7: #{cnn_forward.2} parent=0 // pred_check_branch
    %11 = sbr.rel (0) target = $region9
  $region8: #{cnn_forward.2} parent=0 // pred_region
    _
  $region9: #{cnn_forward.2} parent=0 // pred_fallthru
    _
  // Predicated region
  $region10: #{cnn_forward.2} parent=0 // pred_check
    _
  $region11: #{cnn_forward.2} parent=0 // pred_check_branch
    %13 = sbr.rel (0) target = $region13
  $region12: #{cnn_forward.2} parent=0 // pred_region
    _
  $region13: #{cnn_forward.2} parent=0 // pred_fallthru
    _
  %v15 = vld [vmem:[%s0] sm:$0xf]
  %v16 = vld [vmem:[%s0 + $0x4] sm:$0xf]
  %v17 = vld [vmem:[%s0 + $0x8] sm:$0xf]
  %v18 = vld [vmem:[%s0 + $0xc] sm:$0xf]
  %v19 = vld [vmem:[%s0 + $0x10] sm:$0xf]
  %v20 = vld [vmem:[%s0 + $0x14] sm:$0xf]
  %v21 = vld [vmem:[%s0 + $0x18] sm:$0xf]
  %v22 = vld [vmem:[%s0 + $0x1c] sm:$0xf]
  %v23 = vld [vmem:[%s0 + $0x20] sm:$0xf]
  %v24 = vld [vmem:[%s0 + $0x24] sm:$0xf]
  %v25 = vld [vmem:[%s0 + $0x28] sm:$0xf]
  %v26 = vld [vmem:[%s0 + $0x2c] sm:$0xf]
  %v27 = vld [vmem:[%s0 + $0x30] sm:$0xf]
  %v28 = vld [vmem:[%s0 + $0x34] sm:$0xf]
  %v29 = vld [vmem:[%s0 + $0x38] sm:$0xf]
  %v30 = vld [vmem:[%s0 + $0x3c] sm:$0xf]
  %v31 = vld [vmem:[%s0 + $0x40] sm:$0xf]
  %v32 = vld [vmem:[%s0 + $0x44] sm:$0xf]
  %v33 = vld [vmem:[%s0 + $0x48] sm:$0xf]
  %v34 = vld [vmem:[%s0 + $0x4c] sm:$0xf]
  %v35 = vld [vmem:[%s0 + $0x50] sm:$0xf]
  %v36 = vld [vmem:[%s0 + $0x54] sm:$0xf]
  %v37 = vld [vmem:[%s1] sm:$0xf]
  %v38 = vld [vmem:[%s1 + $0x4] sm:$0x1]
  %v39 = vld [vmem:[%s2] sm:$0x1]
  %v41 = vperm.slane %v39, 0
  %v65 = vunpack.c.l.b16 %v15
  %v66 = vunpack.c.l.b16 %v16
  %v67 = vunpack.c.l.b16 %v17
  %v68 = vunpack.c.l.b16 %v18
  %v69 = vunpack.c.l.b16 %v19
  %v70 = vunpack.c.l.b16 %v20
  %v71 = vunpack.c.l.b16 %v21
  %v72 = vunpack.c.l.b16 %v22
  %v73 = vunpack.c.l.b16 %v23
  %v74 = vunpack.c.l.b16 %v24
  %v75 = vunpack.c.l.b16 %v25
  %v76 = vunpack.c.l.b16 %v26
  %v77 = vunpack.c.l.b16 %v27
  %v78 = vunpack.c.l.b16 %v28
  %v79 = vunpack.c.l.b16 %v29
  %v80 = vunpack.c.l.b16 %v30
  %v81 = vunpack.c.l.b16 %v31
  %v82 = vunpack.c.l.b16 %v32
  %v83 = vunpack.c.l.b16 %v33
  %v84 = vunpack.c.l.b16 %v34
  %v85 = vunpack.c.l.b16 %v35
  %v86 = vunpack.c.l.b16 %v36
  %v87 = vpack.c.b16 %v66, %v65
  %v88 = vpack.c.b16 %v68, %v67
  %v89 = vpack.c.b16 %v70, %v69
  %v90 = vpack.c.b16 %v72, %v71
  %v91 = vpack.c.b16 %v74, %v73
  %v92 = vpack.c.b16 %v76, %v75
  %v93 = vpack.c.b16 %v78, %v77
  %v94 = vpack.c.b16 %v80, %v79
  %v95 = vpack.c.b16 %v82, %v81
  %v96 = vpack.c.b16 %v84, %v83
  %v97 = vpack.c.b16 %v86, %v85
  %v100 = vunpack.c.l.b16 %v37
  %v101 = vunpack.c.l.b16 %v38
  %v102 = vpack.c.b16 %v101, %v100
  %vm103 = vcmask 72704
  %v105 = vsel %vm103, %v87, 0
  %v108 = vsel %vm103, %v88, 0
  %v111 = vsel %vm103, %v89, 0
  %v114 = vsel %vm103, %v90, 0
  %v117 = vsel %vm103, %v91, 0
  %v120 = vsel %vm103, %v92, 0
  %v123 = vsel %vm103, %v93, 0
  %v126 = vsel %vm103, %v94, 0
  %v129 = vsel %vm103, %v95, 0
  %v132 = vsel %vm103, %v96, 0
  %v135 = vsel %vm103, %v97, 0
  %vm137 = vcmask 1043456
  %vm138 = vcmask 1044480
  %v139 = vsel %vm137, 4294967295, 65535
  %v140 = vsel %vm138, %v139, 0
  %v142 = vand.u32 %v102, %v140
  %144 = vmatpush.bf16.msra.mxu0 0
  %145 = vmatpush.bf16.msra.mxu0 0
  %146 = vmatpush.bf16.msra.mxu0 0
  %147 = vmatpush.bf16.msra.mxu0 0
  %148 = vmatpush.bf16.msra.mxu0 0
  %149 = vmatpush.bf16.msra.mxu0 0
  %150 = vmatpush.bf16.msra.mxu0 0
  %151 = vmatpush.bf16.msra.mxu0 %v142
  %152 = vmatmul.bf16.gmra.mxu0 %v105
  %v153 = vpop.f32.mrf.mxu0
  %v154 = vadd.f32 %v41, %v153
  %v155 = vpop.f32.mrf.mxu0
  %v156 = vadd.f32 %v41, %v155
  %157 = vmatmul.bf16.gmra.mxu0 %v108
  %v158 = vpop.f32.mrf.mxu0
  %v159 = vadd.f32 %v41, %v158
  %v160 = vpop.f32.mrf.mxu0
  %v161 = vadd.f32 %v41, %v160
  %162 = vmatmul.bf16.gmra.mxu0 %v111
  %v163 = vpop.f32.mrf.mxu0
  %v164 = vadd.f32 %v41, %v163
  %v165 = vpop.f32.mrf.mxu0
  %v166 = vadd.f32 %v41, %v165
  %167 = vmatmul.bf16.gmra.mxu0 %v114
  %v168 = vpop.f32.mrf.mxu0
  %v169 = vadd.f32 %v41, %v168
  %v170 = vpop.f32.mrf.mxu0
  %v171 = vadd.f32 %v41, %v170
  %172 = vmatmul.bf16.gmra.mxu0 %v117
  %v173 = vpop.f32.mrf.mxu0
  %v174 = vadd.f32 %v41, %v173
  %v175 = vpop.f32.mrf.mxu0
  %v176 = vadd.f32 %v41, %v175
  %177 = vmatmul.bf16.gmra.mxu0 %v120
  %v178 = vpop.f32.mrf.mxu0
  %v179 = vadd.f32 %v41, %v178
  %v180 = vpop.f32.mrf.mxu0
  %v181 = vadd.f32 %v41, %v180
  %182 = vmatmul.bf16.gmra.mxu0 %v123
  %v183 = vpop.f32.mrf.mxu0
  %v184 = vadd.f32 %v41, %v183
  %v185 = vpop.f32.mrf.mxu0
  %v186 = vadd.f32 %v41, %v185
  %187 = vmatmul.bf16.gmra.mxu0 %v126
  %v188 = vpop.f32.mrf.mxu0
  %v189 = vadd.f32 %v41, %v188
  %v190 = vpop.f32.mrf.mxu0
  %v191 = vadd.f32 %v41, %v190
  %192 = vmatmul.bf16.gmra.mxu0 %v129
  %v193 = vpop.f32.mrf.mxu0
  %v194 = vadd.f32 %v41, %v193
  %v195 = vpop.f32.mrf.mxu0
  %v196 = vadd.f32 %v41, %v195
  %197 = vmatmul.bf16.gmra.mxu0 %v132
  %v198 = vpop.f32.mrf.mxu0
  %v199 = vadd.f32 %v41, %v198
  %v200 = vpop.f32.mrf.mxu0
  %v201 = vadd.f32 %v41, %v200
  %202 = vmatmul.bf16.gmra.mxu0 %v135
  %v203 = vpop.f32.mrf.mxu0
  %v204 = vadd.f32 %v41, %v203
  %v205 = vpop.f32.mrf.mxu0
  %v206 = vadd.f32 %v41, %v205
  %207 = vdwg.mxu0
  %v208 = vmax.f32 %v154, 0.0
  %v209 = vmax.f32 %v156, 0.0
  %v210 = vmax.f32 %v159, 0.0
  %v211 = vmax.f32 %v161, 0.0
  %v212 = vmax.f32 %v164, 0.0
  %v213 = vmax.f32 %v166, 0.0
  %v214 = vmax.f32 %v169, 0.0
  %v215 = vmax.f32 %v171, 0.0
  %v216 = vmax.f32 %v174, 0.0
  %v217 = vmax.f32 %v176, 0.0
  %v218 = vmax.f32 %v179, 0.0
  %v219 = vmax.f32 %v181, 0.0
  %v220 = vmax.f32 %v184, 0.0
  %v221 = vmax.f32 %v186, 0.0
  %v222 = vmax.f32 %v189, 0.0
  %v223 = vmax.f32 %v191, 0.0
  %v224 = vmax.f32 %v194, 0.0
  %v225 = vmax.f32 %v196, 0.0
  %v226 = vmax.f32 %v199, 0.0
  %v227 = vmax.f32 %v201, 0.0
  %v228 = vmax.f32 %v204, 0.0
  %v229 = vmax.f32 %v206, 0.0
  %v230 = vpack.c.bf16 %v208, %v208
  %v231 = vpack.c.bf16 %v209, %v209
  %v232 = vpack.c.bf16 %v210, %v210
  %v233 = vpack.c.bf16 %v211, %v211
  %v234 = vpack.c.bf16 %v212, %v212
  %v235 = vpack.c.bf16 %v213, %v213
  %v236 = vpack.c.bf16 %v214, %v214
  %v237 = vpack.c.bf16 %v215, %v215
  %v238 = vpack.c.bf16 %v216, %v216
  %v239 = vpack.c.bf16 %v217, %v217
  %v240 = vpack.c.bf16 %v218, %v218
  %v241 = vpack.c.bf16 %v219, %v219
  %v242 = vpack.c.bf16 %v220, %v220
  %v243 = vpack.c.bf16 %v221, %v221
  %v244 = vpack.c.bf16 %v222, %v222
  %v245 = vpack.c.bf16 %v223, %v223
  %v246 = vpack.c.bf16 %v224, %v224
  %v247 = vpack.c.bf16 %v225, %v225
  %v248 = vpack.c.bf16 %v226, %v226
  %v249 = vpack.c.bf16 %v227, %v227
  %v250 = vpack.c.bf16 %v228, %v228
  %v251 = vpack.c.bf16 %v229, %v229
  %vm252 = vcmask 257024
  %253 = vst.msk [vmem:[%s3] sm:$0xf] %vm252, %v230
  %254 = vst.msk [vmem:[%s3 + $0x4] sm:$0xf] %vm252, %v231
  %255 = vst.msk [vmem:[%s3 + $0x8] sm:$0xf] %vm252, %v232
  %256 = vst.msk [vmem:[%s3 + $0xc] sm:$0xf] %vm252, %v233
  %257 = vst.msk [vmem:[%s3 + $0x10] sm:$0xf] %vm252, %v234
  %258 = vst.msk [vmem:[%s3 + $0x14] sm:$0xf] %vm252, %v235
  %259 = vst.msk [vmem:[%s3 + $0x18] sm:$0xf] %vm252, %v236
  %260 = vst.msk [vmem:[%s3 + $0x1c] sm:$0xf] %vm252, %v237
  %261 = vst.msk [vmem:[%s3 + $0x20] sm:$0xf] %vm252, %v238
  %262 = vst.msk [vmem:[%s3 + $0x24] sm:$0xf] %vm252, %v239
  %263 = vst.msk [vmem:[%s3 + $0x28] sm:$0xf] %vm252, %v240
  %264 = vst.msk [vmem:[%s3 + $0x2c] sm:$0xf] %vm252, %v241
  %265 = vst.msk [vmem:[%s3 + $0x30] sm:$0xf] %vm252, %v242
  %266 = vst.msk [vmem:[%s3 + $0x34] sm:$0xf] %vm252, %v243
  %267 = vst.msk [vmem:[%s3 + $0x38] sm:$0xf] %vm252, %v244
  %268 = vst.msk [vmem:[%s3 + $0x3c] sm:$0xf] %vm252, %v245
  %269 = vst.msk [vmem:[%s3 + $0x40] sm:$0xf] %vm252, %v246
  %270 = vst.msk [vmem:[%s3 + $0x44] sm:$0xf] %vm252, %v247
  %271 = vst.msk [vmem:[%s3 + $0x48] sm:$0xf] %vm252, %v248
  %272 = vst.msk [vmem:[%s3 + $0x4c] sm:$0xf] %vm252, %v249
  %273 = vst.msk [vmem:[%s3 + $0x50] sm:$0xf] %vm252, %v250
  %274 = vst.msk [vmem:[%s3 + $0x54] sm:$0xf] %vm252, %v251
  %v275 = vld [vmem:[%s0 + $0x58] sm:$0xf]
  %v276 = vld [vmem:[%s0 + $0x5c] sm:$0xf]
  %v277 = vld [vmem:[%s0 + $0x60] sm:$0xf]
  %v278 = vld [vmem:[%s0 + $0x64] sm:$0xf]
  %v279 = vld [vmem:[%s0 + $0x68] sm:$0xf]
  %v280 = vld [vmem:[%s0 + $0x6c] sm:$0xf]
  %v281 = vld [vmem:[%s0 + $0x70] sm:$0xf]
  %v282 = vld [vmem:[%s0 + $0x74] sm:$0xf]
  %v283 = vld [vmem:[%s0 + $0x78] sm:$0xf]
  %v284 = vld [vmem:[%s0 + $0x7c] sm:$0xf]
  %v285 = vld [vmem:[%s0 + $0x80] sm:$0xf]
  %v286 = vld [vmem:[%s0 + $0x84] sm:$0xf]
  %v287 = vld [vmem:[%s0 + $0x88] sm:$0xf]
  %v288 = vld [vmem:[%s0 + $0x8c] sm:$0xf]
  %v289 = vld [vmem:[%s0 + $0x90] sm:$0xf]
  %v290 = vld [vmem:[%s0 + $0x94] sm:$0xf]
  %v291 = vld [vmem:[%s0 + $0x98] sm:$0xf]
  %v292 = vld [vmem:[%s0 + $0x9c] sm:$0xf]
  %v293 = vld [vmem:[%s0 + $0xa0] sm:$0xf]
  %v294 = vld [vmem:[%s0 + $0xa4] sm:$0xf]
  %v295 = vld [vmem:[%s0 + $0xa8] sm:$0xf]
  %v296 = vld [vmem:[%s0 + $0xac] sm:$0xf]
  %v297 = vld [vmem:[%s1] sm:$0xf]
  %v298 = vld [vmem:[%s1 + $0x4] sm:$0x1]
  %v299 = vld [vmem:[%s2] sm:$0x1]
  %v301 = vperm.slane %v299, 0
  %v325 = vunpack.c.l.b16 %v275
  %v326 = vunpack.c.l.b16 %v276
  %v327 = vunpack.c.l.b16 %v277
  %v328 = vunpack.c.l.b16 %v278
  %v329 = vunpack.c.l.b16 %v279
  %v330 = vunpack.c.l.b16 %v280
  %v331 = vunpack.c.l.b16 %v281
  %v332 = vunpack.c.l.b16 %v282
  %v333 = vunpack.c.l.b16 %v283
  %v334 = vunpack.c.l.b16 %v284
  %v335 = vunpack.c.l.b16 %v285
  %v336 = vunpack.c.l.b16 %v286
  %v337 = vunpack.c.l.b16 %v287
  %v338 = vunpack.c.l.b16 %v288
  %v339 = vunpack.c.l.b16 %v289
  %v340 = vunpack.c.l.b16 %v290
  %v341 = vunpack.c.l.b16 %v291
  %v342 = vunpack.c.l.b16 %v292
  %v343 = vunpack.c.l.b16 %v293
  %v344 = vunpack.c.l.b16 %v294
  %v345 = vunpack.c.l.b16 %v295
  %v346 = vunpack.c.l.b16 %v296
  %v347 = vpack.c.b16 %v326, %v325
  %v348 = vpack.c.b16 %v328, %v327
  %v349 = vpack.c.b16 %v330, %v329
  %v350 = vpack.c.b16 %v332, %v331
  %v351 = vpack.c.b16 %v334, %v333
  %v352 = vpack.c.b16 %v336, %v335
  %v353 = vpack.c.b16 %v338, %v337
  %v354 = vpack.c.b16 %v340, %v339
  %v355 = vpack.c.b16 %v342, %v341
  %v356 = vpack.c.b16 %v344, %v343
  %v357 = vpack.c.b16 %v346, %v345
  %v360 = vunpack.c.l.b16 %v297
  %v361 = vunpack.c.l.b16 %v298
  %v362 = vpack.c.b16 %v361, %v360
  %v364 = vsel %vm103, %v347, 0
  %v367 = vsel %vm103, %v348, 0
  %v370 = vsel %vm103, %v349, 0
  %v373 = vsel %vm103, %v350, 0
  %v376 = vsel %vm103, %v351, 0
  %v379 = vsel %vm103, %v352, 0
  %v382 = vsel %vm103, %v353, 0
  %v385 = vsel %vm103, %v354, 0
  %v388 = vsel %vm103, %v355, 0
  %v391 = vsel %vm103, %v356, 0
  %v394 = vsel %vm103, %v357, 0
  %v397 = vand.u32 %v362, %v140
  %399 = vmatpush.bf16.msra.mxu0 0
  %400 = vmatpush.bf16.msra.mxu0 0
  %401 = vmatpush.bf16.msra.mxu0 0
  %402 = vmatpush.bf16.msra.mxu0 0
  %403 = vmatpush.bf16.msra.mxu0 0
  %404 = vmatpush.bf16.msra.mxu0 0
  %405 = vmatpush.bf16.msra.mxu0 0
  %406 = vmatpush.bf16.msra.mxu0 %v397
  %407 = vmatmul.bf16.gmra.mxu0 %v364
  %v408 = vpop.f32.mrf.mxu0
  %v409 = vadd.f32 %v301, %v408
  %v410 = vpop.f32.mrf.mxu0
  %v411 = vadd.f32 %v301, %v410
  %412 = vmatmul.bf16.gmra.mxu0 %v367
  %v413 = vpop.f32.mrf.mxu0
  %v414 = vadd.f32 %v301, %v413
  %v415 = vpop.f32.mrf.mxu0
  %v416 = vadd.f32 %v301, %v415
  %417 = vmatmul.bf16.gmra.mxu0 %v370
  %v418 = vpop.f32.mrf.mxu0
  %v419 = vadd.f32 %v301, %v418
  %v420 = vpop.f32.mrf.mxu0
  %v421 = vadd.f32 %v301, %v420
  %422 = vmatmul.bf16.gmra.mxu0 %v373
  %v423 = vpop.f32.mrf.mxu0
  %v424 = vadd.f32 %v301, %v423
  %v425 = vpop.f32.mrf.mxu0
  %v426 = vadd.f32 %v301, %v425
  %427 = vmatmul.bf16.gmra.mxu0 %v376
  %v428 = vpop.f32.mrf.mxu0
  %v429 = vadd.f32 %v301, %v428
  %v430 = vpop.f32.mrf.mxu0
  %v431 = vadd.f32 %v301, %v430
  %432 = vmatmul.bf16.gmra.mxu0 %v379
  %v433 = vpop.f32.mrf.mxu0
  %v434 = vadd.f32 %v301, %v433
  %v435 = vpop.f32.mrf.mxu0
  %v436 = vadd.f32 %v301, %v435
  %437 = vmatmul.bf16.gmra.mxu0 %v382
  %v438 = vpop.f32.mrf.mxu0
  %v439 = vadd.f32 %v301, %v438
  %v440 = vpop.f32.mrf.mxu0
  %v441 = vadd.f32 %v301, %v440
  %442 = vmatmul.bf16.gmra.mxu0 %v385
  %v443 = vpop.f32.mrf.mxu0
  %v444 = vadd.f32 %v301, %v443
  %v445 = vpop.f32.mrf.mxu0
  %v446 = vadd.f32 %v301, %v445
  %447 = vmatmul.bf16.gmra.mxu0 %v388
  %v448 = vpop.f32.mrf.mxu0
  %v449 = vadd.f32 %v301, %v448
  %v450 = vpop.f32.mrf.mxu0
  %v451 = vadd.f32 %v301, %v450
  %452 = vmatmul.bf16.gmra.mxu0 %v391
  %v453 = vpop.f32.mrf.mxu0
  %v454 = vadd.f32 %v301, %v453
  %v455 = vpop.f32.mrf.mxu0
  %v456 = vadd.f32 %v301, %v455
  %457 = vmatmul.bf16.gmra.mxu0 %v394
  %v458 = vpop.f32.mrf.mxu0
  %v459 = vadd.f32 %v301, %v458
  %v460 = vpop.f32.mrf.mxu0
  %v461 = vadd.f32 %v301, %v460
  %462 = vdwg.mxu0
  %v463 = vmax.f32 %v409, 0.0
  %v464 = vmax.f32 %v411, 0.0
  %v465 = vmax.f32 %v414, 0.0
  %v466 = vmax.f32 %v416, 0.0
  %v467 = vmax.f32 %v419, 0.0
  %v468 = vmax.f32 %v421, 0.0
  %v469 = vmax.f32 %v424, 0.0
  %v470 = vmax.f32 %v426, 0.0
  %v471 = vmax.f32 %v429, 0.0
  %v472 = vmax.f32 %v431, 0.0
  %v473 = vmax.f32 %v434, 0.0
  %v474 = vmax.f32 %v436, 0.0
  %v475 = vmax.f32 %v439, 0.0
  %v476 = vmax.f32 %v441, 0.0
  %v477 = vmax.f32 %v444, 0.0
  %v478 = vmax.f32 %v446, 0.0
  %v479 = vmax.f32 %v449, 0.0
  %v480 = vmax.f32 %v451, 0.0
  %v481 = vmax.f32 %v454, 0.0
  %v482 = vmax.f32 %v456, 0.0
  %v483 = vmax.f32 %v459, 0.0
  %v484 = vmax.f32 %v461, 0.0
  %v485 = vpack.c.bf16 %v463, %v463
  %v486 = vpack.c.bf16 %v464, %v464
  %v487 = vpack.c.bf16 %v465, %v465
  %v488 = vpack.c.bf16 %v466, %v466
  %v489 = vpack.c.bf16 %v467, %v467
  %v490 = vpack.c.bf16 %v468, %v468
  %v491 = vpack.c.bf16 %v469, %v469
  %v492 = vpack.c.bf16 %v470, %v470
  %v493 = vpack.c.bf16 %v471, %v471
  %v494 = vpack.c.bf16 %v472, %v472
  %v495 = vpack.c.bf16 %v473, %v473
  %v496 = vpack.c.bf16 %v474, %v474
  %v497 = vpack.c.bf16 %v475, %v475
  %v498 = vpack.c.bf16 %v476, %v476
  %v499 = vpack.c.bf16 %v477, %v477
  %v500 = vpack.c.bf16 %v478, %v478
  %v501 = vpack.c.bf16 %v479, %v479
  %v502 = vpack.c.bf16 %v480, %v480
  %v503 = vpack.c.bf16 %v481, %v481
  %v504 = vpack.c.bf16 %v482, %v482
  %v505 = vpack.c.bf16 %v483, %v483
  %v506 = vpack.c.bf16 %v484, %v484
  %507 = vst.msk [vmem:[%s3 + $0x58] sm:$0xf] %vm252, %v485
  %508 = vst.msk [vmem:[%s3 + $0x5c] sm:$0xf] %vm252, %v486
  %509 = vst.msk [vmem:[%s3 + $0x60] sm:$0xf] %vm252, %v487
  %510 = vst.msk [vmem:[%s3 + $0x64] sm:$0xf] %vm252, %v488
  %511 = vst.msk [vmem:[%s3 + $0x68] sm:$0xf] %vm252, %v489
  %512 = vst.msk [vmem:[%s3 + $0x6c] sm:$0xf] %vm252, %v490
  %513 = vst.msk [vmem:[%s3 + $0x70] sm:$0xf] %vm252, %v491
  %514 = vst.msk [vmem:[%s3 + $0x74] sm:$0xf] %vm252, %v492
  %515 = vst.msk [vmem:[%s3 + $0x78] sm:$0xf] %vm252, %v493
  %516 = vst.msk [vmem:[%s3 + $0x7c] sm:$0xf] %vm252, %v494
  %517 = vst.msk [vmem:[%s3 + $0x80] sm:$0xf] %vm252, %v495
  %518 = vst.msk [vmem:[%s3 + $0x84] sm:$0xf] %vm252, %v496
  %519 = vst.msk [vmem:[%s3 + $0x88] sm:$0xf] %vm252, %v497
  %520 = vst.msk [vmem:[%s3 + $0x8c] sm:$0xf] %vm252, %v498
  %521 = vst.msk [vmem:[%s3 + $0x90] sm:$0xf] %vm252, %v499
  %522 = vst.msk [vmem:[%s3 + $0x94] sm:$0xf] %vm252, %v500
  %523 = vst.msk [vmem:[%s3 + $0x98] sm:$0xf] %vm252, %v501
  %524 = vst.msk [vmem:[%s3 + $0x9c] sm:$0xf] %vm252, %v502
  %525 = vst.msk [vmem:[%s3 + $0xa0] sm:$0xf] %vm252, %v503
  %526 = vst.msk [vmem:[%s3 + $0xa4] sm:$0xf] %vm252, %v504
  %527 = vst.msk [vmem:[%s3 + $0xa8] sm:$0xf] %vm252, %v505
  %528 = vst.msk [vmem:[%s3 + $0xac] sm:$0xf] %vm252, %v506
  %v529 = vld [vmem:[%s0 + $0xb0] sm:$0xf]
  %v530 = vld [vmem:[%s0 + $0xb4] sm:$0xf]
  %v531 = vld [vmem:[%s0 + $0xb8] sm:$0xf]
  %v532 = vld [vmem:[%s0 + $0xbc] sm:$0xf]
  %v533 = vld [vmem:[%s0 + $0xc0] sm:$0xf]
  %v534 = vld [vmem:[%s0 + $0xc4] sm:$0xf]
  %v535 = vld [vmem:[%s0 + $0xc8] sm:$0xf]
  %v536 = vld [vmem:[%s0 + $0xcc] sm:$0xf]
  %v537 = vld [vmem:[%s0 + $0xd0] sm:$0xf]
  %v538 = vld [vmem:[%s0 + $0xd4] sm:$0xf]
  %v539 = vld [vmem:[%s0 + $0xd8] sm:$0xf]
  %v540 = vld [vmem:[%s0 + $0xdc] sm:$0xf]
  %v541 = vld [vmem:[%s0 + $0xe0] sm:$0xf]
  %v542 = vld [vmem:[%s0 + $0xe4] sm:$0xf]
  %v543 = vld [vmem:[%s0 + $0xe8] sm:$0xf]
  %v544 = vld [vmem:[%s0 + $0xec] sm:$0xf]
  %v545 = vld [vmem:[%s0 + $0xf0] sm:$0xf]
  %v546 = vld [vmem:[%s0 + $0xf4] sm:$0xf]
  %v547 = vld [vmem:[%s0 + $0xf8] sm:$0xf]
  %v548 = vld [vmem:[%s0 + $0xfc] sm:$0xf]
  %v549 = vld [vmem:[%s0 + $0x100] sm:$0xf]
  %v550 = vld [vmem:[%s0 + $0x104] sm:$0xf]
  %v551 = vld [vmem:[%s1] sm:$0xf]
  %v552 = vld [vmem:[%s1 + $0x4] sm:$0x1]
  %v553 = vld [vmem:[%s2] sm:$0x1]
  %v555 = vperm.slane %v553, 0
  %v579 = vunpack.c.l.b16 %v529
  %v580 = vunpack.c.l.b16 %v530
  %v581 = vunpack.c.l.b16 %v531
  %v582 = vunpack.c.l.b16 %v532
  %v583 = vunpack.c.l.b16 %v533
  %v584 = vunpack.c.l.b16 %v534
  %v585 = vunpack.c.l.b16 %v535
  %v586 = vunpack.c.l.b16 %v536
  %v587 = vunpack.c.l.b16 %v537
  %v588 = vunpack.c.l.b16 %v538
  %v589 = vunpack.c.l.b16 %v539
  %v590 = vunpack.c.l.b16 %v540
  %v591 = vunpack.c.l.b16 %v541
  %v592 = vunpack.c.l.b16 %v542
  %v593 = vunpack.c.l.b16 %v543
  %v594 = vunpack.c.l.b16 %v544
  %v595 = vunpack.c.l.b16 %v545
  %v596 = vunpack.c.l.b16 %v546
  %v597 = vunpack.c.l.b16 %v547
  %v598 = vunpack.c.l.b16 %v548
  %v599 = vunpack.c.l.b16 %v549
  %v600 = vunpack.c.l.b16 %v550
  %v601 = vpack.c.b16 %v580, %v579
  %v602 = vpack.c.b16 %v582, %v581
  %v603 = vpack.c.b16 %v584, %v583
  %v604 = vpack.c.b16 %v586, %v585
  %v605 = vpack.c.b16 %v588, %v587
  %v606 = vpack.c.b16 %v590, %v589
  %v607 = vpack.c.b16 %v592, %v591
  %v608 = vpack.c.b16 %v594, %v593
  %v609 = vpack.c.b16 %v596, %v595
  %v610 = vpack.c.b16 %v598, %v597
  %v611 = vpack.c.b16 %v600, %v599
  %v614 = vunpack.c.l.b16 %v551
  %v615 = vunpack.c.l.b16 %v552
  %v616 = vpack.c.b16 %v615, %v614
  %v618 = vsel %vm103, %v601, 0
  %v621 = vsel %vm103, %v602, 0
  %v624 = vsel %vm103, %v603, 0
  %v627 = vsel %vm103, %v604, 0
  %v630 = vsel %vm103, %v605, 0
  %v633 = vsel %vm103, %v606, 0
  %v636 = vsel %vm103, %v607, 0
  %v639 = vsel %vm103, %v608, 0
  %v642 = vsel %vm103, %v609, 0
  %v645 = vsel %vm103, %v610, 0
  %v648 = vsel %vm103, %v611, 0
  %v651 = vand.u32 %v616, %v140
  %653 = vmatpush.bf16.msra.mxu0 0
  %654 = vmatpush.bf16.msra.mxu0 0
  %655 = vmatpush.bf16.msra.mxu0 0
  %656 = vmatpush.bf16.msra.mxu0 0
  %657 = vmatpush.bf16.msra.mxu0 0
  %658 = vmatpush.bf16.msra.mxu0 0
  %659 = vmatpush.bf16.msra.mxu0 0
  %660 = vmatpush.bf16.msra.mxu0 %v651
  %661 = vmatmul.bf16.gmra.mxu0 %v618
  %v662 = vpop.f32.mrf.mxu0
  %v663 = vadd.f32 %v555, %v662
  %v664 = vpop.f32.mrf.mxu0
  %v665 = vadd.f32 %v555, %v664
  %666 = vmatmul.bf16.gmra.mxu0 %v621
  %v667 = vpop.f32.mrf.mxu0
  %v668 = vadd.f32 %v555, %v667
  %v669 = vpop.f32.mrf.mxu0
  %v670 = vadd.f32 %v555, %v669
  %671 = vmatmul.bf16.gmra.mxu0 %v624
  %v672 = vpop.f32.mrf.mxu0
  %v673 = vadd.f32 %v555, %v672
  %v674 = vpop.f32.mrf.mxu0
  %v675 = vadd.f32 %v555, %v674
  %676 = vmatmul.bf16.gmra.mxu0 %v627
  %v677 = vpop.f32.mrf.mxu0
  %v678 = vadd.f32 %v555, %v677
  %v679 = vpop.f32.mrf.mxu0
  %v680 = vadd.f32 %v555, %v679
  %681 = vmatmul.bf16.gmra.mxu0 %v630
  %v682 = vpop.f32.mrf.mxu0
  %v683 = vadd.f32 %v555, %v682
  %v684 = vpop.f32.mrf.mxu0
  %v685 = vadd.f32 %v555, %v684
  %686 = vmatmul.bf16.gmra.mxu0 %v633
  %v687 = vpop.f32.mrf.mxu0
  %v688 = vadd.f32 %v555, %v687
  %v689 = vpop.f32.mrf.mxu0
  %v690 = vadd.f32 %v555, %v689
  %691 = vmatmul.bf16.gmra.mxu0 %v636
  %v692 = vpop.f32.mrf.mxu0
  %v693 = vadd.f32 %v555, %v692
  %v694 = vpop.f32.mrf.mxu0
  %v695 = vadd.f32 %v555, %v694
  %696 = vmatmul.bf16.gmra.mxu0 %v639
  %v697 = vpop.f32.mrf.mxu0
  %v698 = vadd.f32 %v555, %v697
  %v699 = vpop.f32.mrf.mxu0
  %v700 = vadd.f32 %v555, %v699
  %701 = vmatmul.bf16.gmra.mxu0 %v642
  %v702 = vpop.f32.mrf.mxu0
  %v703 = vadd.f32 %v555, %v702
  %v704 = vpop.f32.mrf.mxu0
  %v705 = vadd.f32 %v555, %v704
  %706 = vmatmul.bf16.gmra.mxu0 %v645
  %v707 = vpop.f32.mrf.mxu0
  %v708 = vadd.f32 %v555, %v707
  %v709 = vpop.f32.mrf.mxu0
  %v710 = vadd.f32 %v555, %v709
  %711 = vmatmul.bf16.gmra.mxu0 %v648
  %v712 = vpop.f32.mrf.mxu0
  %v713 = vadd.f32 %v555, %v712
  %v714 = vpop.f32.mrf.mxu0
  %v715 = vadd.f32 %v555, %v714
  %716 = vdwg.mxu0
  %v717 = vmax.f32 %v663, 0.0
  %v718 = vmax.f32 %v665, 0.0
  %v719 = vmax.f32 %v668, 0.0
  %v720 = vmax.f32 %v670, 0.0
  %v721 = vmax.f32 %v673, 0.0
  %v722 = vmax.f32 %v675, 0.0
  %v723 = vmax.f32 %v678, 0.0
  %v724 = vmax.f32 %v680, 0.0
  %v725 = vmax.f32 %v683, 0.0
  %v726 = vmax.f32 %v685, 0.0
  %v727 = vmax.f32 %v688, 0.0
  %v728 = vmax.f32 %v690, 0.0
  %v729 = vmax.f32 %v693, 0.0
  %v730 = vmax.f32 %v695, 0.0
  %v731 = vmax.f32 %v698, 0.0
  %v732 = vmax.f32 %v700, 0.0
  %v733 = vmax.f32 %v703, 0.0
  %v734 = vmax.f32 %v705, 0.0
  %v735 = vmax.f32 %v708, 0.0
  %v736 = vmax.f32 %v710, 0.0
  %v737 = vmax.f32 %v713, 0.0
  %v738 = vmax.f32 %v715, 0.0
  %v739 = vpack.c.bf16 %v717, %v717
  %v740 = vpack.c.bf16 %v718, %v718
  %v741 = vpack.c.bf16 %v719, %v719
  %v742 = vpack.c.bf16 %v720, %v720
  %v743 = vpack.c.bf16 %v721, %v721
  %v744 = vpack.c.bf16 %v722, %v722
  %v745 = vpack.c.bf16 %v723, %v723
  %v746 = vpack.c.bf16 %v724, %v724
  %v747 = vpack.c.bf16 %v725, %v725
  %v748 = vpack.c.bf16 %v726, %v726
  %v749 = vpack.c.bf16 %v727, %v727
  %v750 = vpack.c.bf16 %v728, %v728
  %v751 = vpack.c.bf16 %v729, %v729
  %v752 = vpack.c.bf16 %v730, %v730
  %v753 = vpack.c.bf16 %v731, %v731
  %v754 = vpack.c.bf16 %v732, %v732
  %v755 = vpack.c.bf16 %v733, %v733
  %v756 = vpack.c.bf16 %v734, %v734
  %v757 = vpack.c.bf16 %v735, %v735
  %v758 = vpack.c.bf16 %v736, %v736
  %v759 = vpack.c.bf16 %v737, %v737
  %v760 = vpack.c.bf16 %v738, %v738
  %761 = vst.msk [vmem:[%s3 + $0xb0] sm:$0xf] %vm252, %v739
  %762 = vst.msk [vmem:[%s3 + $0xb4] sm:$0xf] %vm252, %v740
  %763 = vst.msk [vmem:[%s3 + $0xb8] sm:$0xf] %vm252, %v741
  %764 = vst.msk [vmem:[%s3 + $0xbc] sm:$0xf] %vm252, %v742
  %765 = vst.msk [vmem:[%s3 + $0xc0] sm:$0xf] %vm252, %v743
  %766 = vst.msk [vmem:[%s3 + $0xc4] sm:$0xf] %vm252, %v744
  %767 = vst.msk [vmem:[%s3 + $0xc8] sm:$0xf] %vm252, %v745
  %768 = vst.msk [vmem:[%s3 + $0xcc] sm:$0xf] %vm252, %v746
  %769 = vst.msk [vmem:[%s3 + $0xd0] sm:$0xf] %vm252, %v747
  %770 = vst.msk [vmem:[%s3 + $0xd4] sm:$0xf] %vm252, %v748
  %771 = vst.msk [vmem:[%s3 + $0xd8] sm:$0xf] %vm252, %v749
  %772 = vst.msk [vmem:[%s3 + $0xdc] sm:$0xf] %vm252, %v750
  %773 = vst.msk [vmem:[%s3 + $0xe0] sm:$0xf] %vm252, %v751
  %774 = vst.msk [vmem:[%s3 + $0xe4] sm:$0xf] %vm252, %v752
  %775 = vst.msk [vmem:[%s3 + $0xe8] sm:$0xf] %vm252, %v753
  %776 = vst.msk [vmem:[%s3 + $0xec] sm:$0xf] %vm252, %v754
  %777 = vst.msk [vmem:[%s3 + $0xf0] sm:$0xf] %vm252, %v755
  %778 = vst.msk [vmem:[%s3 + $0xf4] sm:$0xf] %vm252, %v756
  %779 = vst.msk [vmem:[%s3 + $0xf8] sm:$0xf] %vm252, %v757
  %780 = vst.msk [vmem:[%s3 + $0xfc] sm:$0xf] %vm252, %v758
  %781 = vst.msk [vmem:[%s3 + $0x100] sm:$0xf] %vm252, %v759
  %782 = vst.msk [vmem:[%s3 + $0x104] sm:$0xf] %vm252, %v760
  %v783 = vld [vmem:[%s0 + $0x108] sm:$0xf]
  %v784 = vld [vmem:[%s0 + $0x10c] sm:$0xf]
  %v785 = vld [vmem:[%s0 + $0x110] sm:$0xf]
  %v786 = vld [vmem:[%s0 + $0x114] sm:$0xf]
  %v787 = vld [vmem:[%s0 + $0x118] sm:$0xf]
  %v788 = vld [vmem:[%s0 + $0x11c] sm:$0xf]
  %v789 = vld [vmem:[%s0 + $0x120] sm:$0xf]
  %v790 = vld [vmem:[%s0 + $0x124] sm:$0xf]
  %v791 = vld [vmem:[%s0 + $0x128] sm:$0xf]
  %v792 = vld [vmem:[%s0 + $0x12c] sm:$0xf]
  %v793 = vld [vmem:[%s0 + $0x130] sm:$0xf]
  %v794 = vld [vmem:[%s0 + $0x134] sm:$0xf]
  %v795 = vld [vmem:[%s0 + $0x138] sm:$0xf]
  %v796 = vld [vmem:[%s0 + $0x13c] sm:$0xf]
  %v797 = vld [vmem:[%s0 + $0x140] sm:$0xf]
  %v798 = vld [vmem:[%s0 + $0x144] sm:$0xf]
  %v799 = vld [vmem:[%s0 + $0x148] sm:$0xf]
  %v800 = vld [vmem:[%s0 + $0x14c] sm:$0xf]
  %v801 = vld [vmem:[%s0 + $0x150] sm:$0xf]
  %v802 = vld [vmem:[%s0 + $0x154] sm:$0xf]
  %v803 = vld [vmem:[%s0 + $0x158] sm:$0xf]
  %v804 = vld [vmem:[%s0 + $0x15c] sm:$0xf]
  %v805 = vld [vmem:[%s1] sm:$0xf]
  %v806 = vld [vmem:[%s1 + $0x4] sm:$0x1]
  %v807 = vld [vmem:[%s2] sm:$0x1]
  %v809 = vperm.slane %v807, 0
  %v833 = vunpack.c.l.b16 %v783
  %v834 = vunpack.c.l.b16 %v784
  %v835 = vunpack.c.l.b16 %v785
  %v836 = vunpack.c.l.b16 %v786
  %v837 = vunpack.c.l.b16 %v787
  %v838 = vunpack.c.l.b16 %v788
  %v839 = vunpack.c.l.b16 %v789
  %v840 = vunpack.c.l.b16 %v790
  %v841 = vunpack.c.l.b16 %v791
  %v842 = vunpack.c.l.b16 %v792
  %v843 = vunpack.c.l.b16 %v793
  %v844 = vunpack.c.l.b16 %v794
  %v845 = vunpack.c.l.b16 %v795
  %v846 = vunpack.c.l.b16 %v796
  %v847 = vunpack.c.l.b16 %v797
  %v848 = vunpack.c.l.b16 %v798
  %v849 = vunpack.c.l.b16 %v799
  %v850 = vunpack.c.l.b16 %v800
  %v851 = vunpack.c.l.b16 %v801
  %v852 = vunpack.c.l.b16 %v802
  %v853 = vunpack.c.l.b16 %v803
  %v854 = vunpack.c.l.b16 %v804
  %v855 = vpack.c.b16 %v834, %v833
  %v856 = vpack.c.b16 %v836, %v835
  %v857 = vpack.c.b16 %v838, %v837
  %v858 = vpack.c.b16 %v840, %v839
  %v859 = vpack.c.b16 %v842, %v841
  %v860 = vpack.c.b16 %v844, %v843
  %v861 = vpack.c.b16 %v846, %v845
  %v862 = vpack.c.b16 %v848, %v847
  %v863 = vpack.c.b16 %v850, %v849
  %v864 = vpack.c.b16 %v852, %v851
  %v865 = vpack.c.b16 %v854, %v853
  %v868 = vunpack.c.l.b16 %v805
  %v869 = vunpack.c.l.b16 %v806
  %v870 = vpack.c.b16 %v869, %v868
  %v872 = vsel %vm103, %v855, 0
  %v875 = vsel %vm103, %v856, 0
  %v878 = vsel %vm103, %v857, 0
  %v881 = vsel %vm103, %v858, 0
  %v884 = vsel %vm103, %v859, 0
  %v887 = vsel %vm103, %v860, 0
  %v890 = vsel %vm103, %v861, 0
  %v893 = vsel %vm103, %v862, 0
  %v896 = vsel %vm103, %v863, 0
  %v899 = vsel %vm103, %v864, 0
  %v902 = vsel %vm103, %v865, 0
  %v905 = vand.u32 %v870, %v140
  %907 = vmatpush.bf16.msra.mxu0 0
  %908 = vmatpush.bf16.msra.mxu0 0
  %909 = vmatpush.bf16.msra.mxu0 0
  %910 = vmatpush.bf16.msra.mxu0 0
  %911 = vmatpush.bf16.msra.mxu0 0
  %912 = vmatpush.bf16.msra.mxu0 0
  %913 = vmatpush.bf16.msra.mxu0 0
  %914 = vmatpush.bf16.msra.mxu0 %v905
  %915 = vmatmul.bf16.gmra.mxu0 %v872
  %v916 = vpop.f32.mrf.mxu0
  %v917 = vadd.f32 %v809, %v916
  %v918 = vpop.f32.mrf.mxu0
  %v919 = vadd.f32 %v809, %v918
  %920 = vmatmul.bf16.gmra.mxu0 %v875
  %v921 = vpop.f32.mrf.mxu0
  %v922 = vadd.f32 %v809, %v921
  %v923 = vpop.f32.mrf.mxu0
  %v924 = vadd.f32 %v809, %v923
  %925 = vmatmul.bf16.gmra.mxu0 %v878
  %v926 = vpop.f32.mrf.mxu0
  %v927 = vadd.f32 %v809, %v926
  %v928 = vpop.f32.mrf.mxu0
  %v929 = vadd.f32 %v809, %v928
  %930 = vmatmul.bf16.gmra.mxu0 %v881
  %v931 = vpop.f32.mrf.mxu0
  %v932 = vadd.f32 %v809, %v931
  %v933 = vpop.f32.mrf.mxu0
  %v934 = vadd.f32 %v809, %v933
  %935 = vmatmul.bf16.gmra.mxu0 %v884
  %v936 = vpop.f32.mrf.mxu0
  %v937 = vadd.f32 %v809, %v936
  %v938 = vpop.f32.mrf.mxu0
  %v939 = vadd.f32 %v809, %v938
  %940 = vmatmul.bf16.gmra.mxu0 %v887
  %v941 = vpop.f32.mrf.mxu0
  %v942 = vadd.f32 %v809, %v941
  %v943 = vpop.f32.mrf.mxu0
  %v944 = vadd.f32 %v809, %v943
  %945 = vmatmul.bf16.gmra.mxu0 %v890
  %v946 = vpop.f32.mrf.mxu0
  %v947 = vadd.f32 %v809, %v946
  %v948 = vpop.f32.mrf.mxu0
  %v949 = vadd.f32 %v809, %v948
  %950 = vmatmul.bf16.gmra.mxu0 %v893
  %v951 = vpop.f32.mrf.mxu0
  %v952 = vadd.f32 %v809, %v951
  %v953 = vpop.f32.mrf.mxu0
  %v954 = vadd.f32 %v809, %v953
  %955 = vmatmul.bf16.gmra.mxu0 %v896
  %v956 = vpop.f32.mrf.mxu0
  %v957 = vadd.f32 %v809, %v956
  %v958 = vpop.f32.mrf.mxu0
  %v959 = vadd.f32 %v809, %v958
  %960 = vmatmul.bf16.gmra.mxu0 %v899
  %v961 = vpop.f32.mrf.mxu0
  %v962 = vadd.f32 %v809, %v961
  %v963 = vpop.f32.mrf.mxu0
  %v964 = vadd.f32 %v809, %v963
  %965 = vmatmul.bf16.gmra.mxu0 %v902
  %v966 = vpop.f32.mrf.mxu0
  %v967 = vadd.f32 %v809, %v966
  %v968 = vpop.f32.mrf.mxu0
  %v969 = vadd.f32 %v809, %v968
  %970 = vdwg.mxu0
  %v971 = vmax.f32 %v917, 0.0
  %v972 = vmax.f32 %v919, 0.0
  %v973 = vmax.f32 %v922, 0.0
  %v974 = vmax.f32 %v924, 0.0
  %v975 = vmax.f32 %v927, 0.0
  %v976 = vmax.f32 %v929, 0.0
  %v977 = vmax.f32 %v932, 0.0
  %v978 = vmax.f32 %v934, 0.0
  %v979 = vmax.f32 %v937, 0.0
  %v980 = vmax.f32 %v939, 0.0
  %v981 = vmax.f32 %v942, 0.0
  %v982 = vmax.f32 %v944, 0.0
  %v983 = vmax.f32 %v947, 0.0
  %v984 = vmax.f32 %v949, 0.0
  %v985 = vmax.f32 %v952, 0.0
  %v986 = vmax.f32 %v954, 0.0
  %v987 = vmax.f32 %v957, 0.0
  %v988 = vmax.f32 %v959, 0.0
  %v989 = vmax.f32 %v962, 0.0
  %v990 = vmax.f32 %v964, 0.0
  %v991 = vmax.f32 %v967, 0.0
  %v992 = vmax.f32 %v969, 0.0
  %v993 = vpack.c.bf16 %v971, %v971
  %v994 = vpack.c.bf16 %v972, %v972
  %v995 = vpack.c.bf16 %v973, %v973
  %v996 = vpack.c.bf16 %v974, %v974
  %v997 = vpack.c.bf16 %v975, %v975
  %v998 = vpack.c.bf16 %v976, %v976
  %v999 = vpack.c.bf16 %v977, %v977
  %v1000 = vpack.c.bf16 %v978, %v978
  %v1001 = vpack.c.bf16 %v979, %v979
  %v1002 = vpack.c.bf16 %v980, %v980
  %v1003 = vpack.c.bf16 %v981, %v981
  %v1004 = vpack.c.bf16 %v982, %v982
  %v1005 = vpack.c.bf16 %v983, %v983
  %v1006 = vpack.c.bf16 %v984, %v984
  %v1007 = vpack.c.bf16 %v985, %v985
  %v1008 = vpack.c.bf16 %v986, %v986
  %v1009 = vpack.c.bf16 %v987, %v987
  %v1010 = vpack.c.bf16 %v988, %v988
  %v1011 = vpack.c.bf16 %v989, %v989
  %v1012 = vpack.c.bf16 %v990, %v990
  %v1013 = vpack.c.bf16 %v991, %v991
  %v1014 = vpack.c.bf16 %v992, %v992
  %1015 = vst.msk [vmem:[%s3 + $0x108] sm:$0xf] %vm252, %v993
  %1016 = vst.msk [vmem:[%s3 + $0x10c] sm:$0xf] %vm252, %v994
  %1017 = vst.msk [vmem:[%s3 + $0x110] sm:$0xf] %vm252, %v995
  %1018 = vst.msk [vmem:[%s3 + $0x114] sm:$0xf] %vm252, %v996
  %1019 = vst.msk [vmem:[%s3 + $0x118] sm:$0xf] %vm252, %v997
  %1020 = vst.msk [vmem:[%s3 + $0x11c] sm:$0xf] %vm252, %v998
  %1021 = vst.msk [vmem:[%s3 + $0x120] sm:$0xf] %vm252, %v999
  %1022 = vst.msk [vmem:[%s3 + $0x124] sm:$0xf] %vm252, %v1000
  %1023 = vst.msk [vmem:[%s3 + $0x128] sm:$0xf] %vm252, %v1001
  %1024 = vst.msk [vmem:[%s3 + $0x12c] sm:$0xf] %vm252, %v1002
  %1025 = vst.msk [vmem:[%s3 + $0x130] sm:$0xf] %vm252, %v1003
  %1026 = vst.msk [vmem:[%s3 + $0x134] sm:$0xf] %vm252, %v1004
  %1027 = vst.msk [vmem:[%s3 + $0x138] sm:$0xf] %vm252, %v1005
  %1028 = vst.msk [vmem:[%s3 + $0x13c] sm:$0xf] %vm252, %v1006
  %1029 = vst.msk [vmem:[%s3 + $0x140] sm:$0xf] %vm252, %v1007
  %1030 = vst.msk [vmem:[%s3 + $0x144] sm:$0xf] %vm252, %v1008
  %1031 = vst.msk [vmem:[%s3 + $0x148] sm:$0xf] %vm252, %v1009
  %1032 = vst.msk [vmem:[%s3 + $0x14c] sm:$0xf] %vm252, %v1010
  %1033 = vst.msk [vmem:[%s3 + $0x150] sm:$0xf] %vm252, %v1011
  %1034 = vst.msk [vmem:[%s3 + $0x154] sm:$0xf] %vm252, %v1012
  %1035 = vst.msk [vmem:[%s3 + $0x158] sm:$0xf] %vm252, %v1013
  %1036 = vst.msk [vmem:[%s3 + $0x15c] sm:$0xf] %vm252, %v1014
  %v1037 = vld [vmem:[%s0 + $0x160] sm:$0xf]
  %v1038 = vld [vmem:[%s0 + $0x164] sm:$0xf]
  %v1039 = vld [vmem:[%s0 + $0x168] sm:$0xf]
  %v1040 = vld [vmem:[%s0 + $0x16c] sm:$0xf]
  %v1041 = vld [vmem:[%s0 + $0x170] sm:$0xf]
  %v1042 = vld [vmem:[%s0 + $0x174] sm:$0xf]
  %v1043 = vld [vmem:[%s0 + $0x178] sm:$0xf]
  %v1044 = vld [vmem:[%s0 + $0x17c] sm:$0xf]
  %v1045 = vld [vmem:[%s0 + $0x180] sm:$0xf]
  %v1046 = vld [vmem:[%s0 + $0x184] sm:$0xf]
  %v1047 = vld [vmem:[%s0 + $0x188] sm:$0xf]
  %v1048 = vld [vmem:[%s0 + $0x18c] sm:$0xf]
  %v1049 = vld [vmem:[%s0 + $0x190] sm:$0xf]
  %v1050 = vld [vmem:[%s0 + $0x194] sm:$0xf]
  %v1051 = vld [vmem:[%s0 + $0x198] sm:$0xf]
  %v1052 = vld [vmem:[%s0 + $0x19c] sm:$0xf]
  %v1053 = vld [vmem:[%s0 + $0x1a0] sm:$0xf]
  %v1054 = vld [vmem:[%s0 + $0x1a4] sm:$0xf]
  %v1055 = vld [vmem:[%s0 + $0x1a8] sm:$0xf]
  %v1056 = vld [vmem:[%s0 + $0x1ac] sm:$0xf]
  %v1057 = vld [vmem:[%s0 + $0x1b0] sm:$0xf]
  %v1058 = vld [vmem:[%s0 + $0x1b4] sm:$0xf]
  %v1059 = vld [vmem:[%s1] sm:$0xf]
  %v1060 = vld [vmem:[%s1 + $0x4] sm:$0x1]
  %v1061 = vld [vmem:[%s2] sm:$0x1]
  %v1063 = vperm.slane %v1061, 0
  %v1087 = vunpack.c.l.b16 %v1037
  %v1088 = vunpack.c.l.b16 %v1038
  %v1089 = vunpack.c.l.b16 %v1039
  %v1090 = vunpack.c.l.b16 %v1040
  %v1091 = vunpack.c.l.b16 %v1041
  %v1092 = vunpack.c.l.b16 %v1042
  %v1093 = vunpack.c.l.b16 %v1043
  %v1094 = vunpack.c.l.b16 %v1044
  %v1095 = vunpack.c.l.b16 %v1045
  %v1096 = vunpack.c.l.b16 %v1046
  %v1097 = vunpack.c.l.b16 %v1047
  %v1098 = vunpack.c.l.b16 %v1048
  %v1099 = vunpack.c.l.b16 %v1049
  %v1100 = vunpack.c.l.b16 %v1050
  %v1101 = vunpack.c.l.b16 %v1051
  %v1102 = vunpack.c.l.b16 %v1052
  %v1103 = vunpack.c.l.b16 %v1053
  %v1104 = vunpack.c.l.b16 %v1054
  %v1105 = vunpack.c.l.b16 %v1055
  %v1106 = vunpack.c.l.b16 %v1056
  %v1107 = vunpack.c.l.b16 %v1057
  %v1108 = vunpack.c.l.b16 %v1058
  %v1109 = vpack.c.b16 %v1088, %v1087
  %v1110 = vpack.c.b16 %v1090, %v1089
  %v1111 = vpack.c.b16 %v1092, %v1091
  %v1112 = vpack.c.b16 %v1094, %v1093
  %v1113 = vpack.c.b16 %v1096, %v1095
  %v1114 = vpack.c.b16 %v1098, %v1097
  %v1115 = vpack.c.b16 %v1100, %v1099
  %v1116 = vpack.c.b16 %v1102, %v1101
  %v1117 = vpack.c.b16 %v1104, %v1103
  %v1118 = vpack.c.b16 %v1106, %v1105
  %v1119 = vpack.c.b16 %v1108, %v1107
  %v1122 = vunpack.c.l.b16 %v1059
  %v1123 = vunpack.c.l.b16 %v1060
  %v1124 = vpack.c.b16 %v1123, %v1122
  %v1126 = vsel %vm103, %v1109, 0
  %v1129 = vsel %vm103, %v1110, 0
  %v1132 = vsel %vm103, %v1111, 0
  %v1135 = vsel %vm103, %v1112, 0
  %v1138 = vsel %vm103, %v1113, 0
  %v1141 = vsel %vm103, %v1114, 0
  %v1144 = vsel %vm103, %v1115, 0
  %v1147 = vsel %vm103, %v1116, 0
  %v1150 = vsel %vm103, %v1117, 0
  %v1153 = vsel %vm103, %v1118, 0
  %v1156 = vsel %vm103, %v1119, 0
  %v1159 = vand.u32 %v1124, %v140
  %1161 = vmatpush.bf16.msra.mxu0 0
  %1162 = vmatpush.bf16.msra.mxu0 0
  %1163 = vmatpush.bf16.msra.mxu0 0
  %1164 = vmatpush.bf16.msra.mxu0 0
  %1165 = vmatpush.bf16.msra.mxu0 0
  %1166 = vmatpush.bf16.msra.mxu0 0
  %1167 = vmatpush.bf16.msra.mxu0 0
  %1168 = vmatpush.bf16.msra.mxu0 %v1159
  %1169 = vmatmul.bf16.gmra.mxu0 %v1126
  %v1170 = vpop.f32.mrf.mxu0
  %v1171 = vadd.f32 %v1063, %v1170
  %v1172 = vpop.f32.mrf.mxu0
  %v1173 = vadd.f32 %v1063, %v1172
  %1174 = vmatmul.bf16.gmra.mxu0 %v1129
  %v1175 = vpop.f32.mrf.mxu0
  %v1176 = vadd.f32 %v1063, %v1175
  %v1177 = vpop.f32.mrf.mxu0
  %v1178 = vadd.f32 %v1063, %v1177
  %1179 = vmatmul.bf16.gmra.mxu0 %v1132
  %v1180 = vpop.f32.mrf.mxu0
  %v1181 = vadd.f32 %v1063, %v1180
  %v1182 = vpop.f32.mrf.mxu0
  %v1183 = vadd.f32 %v1063, %v1182
  %1184 = vmatmul.bf16.gmra.mxu0 %v1135
  %v1185 = vpop.f32.mrf.mxu0
  %v1186 = vadd.f32 %v1063, %v1185
  %v1187 = vpop.f32.mrf.mxu0
  %v1188 = vadd.f32 %v1063, %v1187
  %1189 = vmatmul.bf16.gmra.mxu0 %v1138
  %v1190 = vpop.f32.mrf.mxu0
  %v1191 = vadd.f32 %v1063, %v1190
  %v1192 = vpop.f32.mrf.mxu0
  %v1193 = vadd.f32 %v1063, %v1192
  %1194 = vmatmul.bf16.gmra.mxu0 %v1141
  %v1195 = vpop.f32.mrf.mxu0
  %v1196 = vadd.f32 %v1063, %v1195
  %v1197 = vpop.f32.mrf.mxu0
  %v1198 = vadd.f32 %v1063, %v1197
  %1199 = vmatmul.bf16.gmra.mxu0 %v1144
  %v1200 = vpop.f32.mrf.mxu0
  %v1201 = vadd.f32 %v1063, %v1200
  %v1202 = vpop.f32.mrf.mxu0
  %v1203 = vadd.f32 %v1063, %v1202
  %1204 = vmatmul.bf16.gmra.mxu0 %v1147
  %v1205 = vpop.f32.mrf.mxu0
  %v1206 = vadd.f32 %v1063, %v1205
  %v1207 = vpop.f32.mrf.mxu0
  %v1208 = vadd.f32 %v1063, %v1207
  %1209 = vmatmul.bf16.gmra.mxu0 %v1150
  %v1210 = vpop.f32.mrf.mxu0
  %v1211 = vadd.f32 %v1063, %v1210
  %v1212 = vpop.f32.mrf.mxu0
  %v1213 = vadd.f32 %v1063, %v1212
  %1214 = vmatmul.bf16.gmra.mxu0 %v1153
  %v1215 = vpop.f32.mrf.mxu0
  %v1216 = vadd.f32 %v1063, %v1215
  %v1217 = vpop.f32.mrf.mxu0
  %v1218 = vadd.f32 %v1063, %v1217
  %1219 = vmatmul.bf16.gmra.mxu0 %v1156
  %v1220 = vpop.f32.mrf.mxu0
  %v1221 = vadd.f32 %v1063, %v1220
  %v1222 = vpop.f32.mrf.mxu0
  %v1223 = vadd.f32 %v1063, %v1222
  %1224 = vdwg.mxu0
  %v1225 = vmax.f32 %v1171, 0.0
  %v1226 = vmax.f32 %v1173, 0.0
  %v1227 = vmax.f32 %v1176, 0.0
  %v1228 = vmax.f32 %v1178, 0.0
  %v1229 = vmax.f32 %v1181, 0.0
  %v1230 = vmax.f32 %v1183, 0.0
  %v1231 = vmax.f32 %v1186, 0.0
  %v1232 = vmax.f32 %v1188, 0.0
  %v1233 = vmax.f32 %v1191, 0.0
  %v1234 = vmax.f32 %v1193, 0.0
  %v1235 = vmax.f32 %v1196, 0.0
  %v1236 = vmax.f32 %v1198, 0.0
  %v1237 = vmax.f32 %v1201, 0.0
  %v1238 = vmax.f32 %v1203, 0.0
  %v1239 = vmax.f32 %v1206, 0.0
  %v1240 = vmax.f32 %v1208, 0.0
  %v1241 = vmax.f32 %v1211, 0.0
  %v1242 = vmax.f32 %v1213, 0.0
  %v1243 = vmax.f32 %v1216, 0.0
  %v1244 = vmax.f32 %v1218, 0.0
  %v1245 = vmax.f32 %v1221, 0.0
  %v1246 = vmax.f32 %v1223, 0.0
  %v1247 = vpack.c.bf16 %v1225, %v1225
  %v1248 = vpack.c.bf16 %v1226, %v1226
  %v1249 = vpack.c.bf16 %v1227, %v1227
  %v1250 = vpack.c.bf16 %v1228, %v1228
  %v1251 = vpack.c.bf16 %v1229, %v1229
  %v1252 = vpack.c.bf16 %v1230, %v1230
  %v1253 = vpack.c.bf16 %v1231, %v1231
  %v1254 = vpack.c.bf16 %v1232, %v1232
  %v1255 = vpack.c.bf16 %v1233, %v1233
  %v1256 = vpack.c.bf16 %v1234, %v1234
  %v1257 = vpack.c.bf16 %v1235, %v1235
  %v1258 = vpack.c.bf16 %v1236, %v1236
  %v1259 = vpack.c.bf16 %v1237, %v1237
  %v1260 = vpack.c.bf16 %v1238, %v1238
  %v1261 = vpack.c.bf16 %v1239, %v1239
  %v1262 = vpack.c.bf16 %v1240, %v1240
  %v1263 = vpack.c.bf16 %v1241, %v1241
  %v1264 = vpack.c.bf16 %v1242, %v1242
  %v1265 = vpack.c.bf16 %v1243, %v1243
  %v1266 = vpack.c.bf16 %v1244, %v1244
  %v1267 = vpack.c.bf16 %v1245, %v1245
  %v1268 = vpack.c.bf16 %v1246, %v1246
  %1269 = vst.msk [vmem:[%s3 + $0x160] sm:$0xf] %vm252, %v1247
  %1270 = vst.msk [vmem:[%s3 + $0x164] sm:$0xf] %vm252, %v1248
  %1271 = vst.msk [vmem:[%s3 + $0x168] sm:$0xf] %vm252, %v1249
  %1272 = vst.msk [vmem:[%s3 + $0x16c] sm:$0xf] %vm252, %v1250
  %1273 = vst.msk [vmem:[%s3 + $0x170] sm:$0xf] %vm252, %v1251
  %1274 = vst.msk [vmem:[%s3 + $0x174] sm:$0xf] %vm252, %v1252
  %1275 = vst.msk [vmem:[%s3 + $0x178] sm:$0xf] %vm252, %v1253
  %1276 = vst.msk [vmem:[%s3 + $0x17c] sm:$0xf] %vm252, %v1254
  %1277 = vst.msk [vmem:[%s3 + $0x180] sm:$0xf] %vm252, %v1255
  %1278 = vst.msk [vmem:[%s3 + $0x184] sm:$0xf] %vm252, %v1256
  %1279 = vst.msk [vmem:[%s3 + $0x188] sm:$0xf] %vm252, %v1257
  %1280 = vst.msk [vmem:[%s3 + $0x18c] sm:$0xf] %vm252, %v1258
  %1281 = vst.msk [vmem:[%s3 + $0x190] sm:$0xf] %vm252, %v1259
  %1282 = vst.msk [vmem:[%s3 + $0x194] sm:$0xf] %vm252, %v1260
  %1283 = vst.msk [vmem:[%s3 + $0x198] sm:$0xf] %vm252, %v1261
  %1284 = vst.msk [vmem:[%s3 + $0x19c] sm:$0xf] %vm252, %v1262
  %1285 = vst.msk [vmem:[%s3 + $0x1a0] sm:$0xf] %vm252, %v1263
  %1286 = vst.msk [vmem:[%s3 + $0x1a4] sm:$0xf] %vm252, %v1264
  %1287 = vst.msk [vmem:[%s3 + $0x1a8] sm:$0xf] %vm252, %v1265
  %1288 = vst.msk [vmem:[%s3 + $0x1ac] sm:$0xf] %vm252, %v1266
  %1289 = vst.msk [vmem:[%s3 + $0x1b0] sm:$0xf] %vm252, %v1267
  %1290 = vst.msk [vmem:[%s3 + $0x1b4] sm:$0xf] %vm252, %v1268
  %v1291 = vld [vmem:[%s0 + $0x1b8] sm:$0xf]
  %v1292 = vld [vmem:[%s0 + $0x1bc] sm:$0xf]
  %v1293 = vld [vmem:[%s0 + $0x1c0] sm:$0xf]
  %v1294 = vld [vmem:[%s0 + $0x1c4] sm:$0xf]
  %v1295 = vld [vmem:[%s0 + $0x1c8] sm:$0xf]
  %v1296 = vld [vmem:[%s0 + $0x1cc] sm:$0xf]
  %v1297 = vld [vmem:[%s0 + $0x1d0] sm:$0xf]
  %v1298 = vld [vmem:[%s0 + $0x1d4] sm:$0xf]
  %v1299 = vld [vmem:[%s0 + $0x1d8] sm:$0xf]
  %v1300 = vld [vmem:[%s0 + $0x1dc] sm:$0xf]
  %v1301 = vld [vmem:[%s0 + $0x1e0] sm:$0xf]
  %v1302 = vld [vmem:[%s0 + $0x1e4] sm:$0xf]
  %v1303 = vld [vmem:[%s0 + $0x1e8] sm:$0xf]
  %v1304 = vld [vmem:[%s0 + $0x1ec] sm:$0xf]
  %v1305 = vld [vmem:[%s0 + $0x1f0] sm:$0xf]
  %v1306 = vld [vmem:[%s0 + $0x1f4] sm:$0xf]
  %v1307 = vld [vmem:[%s0 + $0x1f8] sm:$0xf]
  %v1308 = vld [vmem:[%s0 + $0x1fc] sm:$0xf]
  %v1309 = vld [vmem:[%s0 + $0x200] sm:$0xf]
  %v1310 = vld [vmem:[%s0 + $0x204] sm:$0xf]
  %v1311 = vld [vmem:[%s0 + $0x208] sm:$0xf]
  %v1312 = vld [vmem:[%s0 + $0x20c] sm:$0xf]
  %v1313 = vld [vmem:[%s1] sm:$0xf]
  %v1314 = vld [vmem:[%s1 + $0x4] sm:$0x1]
  %v1315 = vld [vmem:[%s2] sm:$0x1]
  %v1317 = vperm.slane %v1315, 0
  %v1341 = vunpack.c.l.b16 %v1291
  %v1342 = vunpack.c.l.b16 %v1292
  %v1343 = vunpack.c.l.b16 %v1293
  %v1344 = vunpack.c.l.b16 %v1294
  %v1345 = vunpack.c.l.b16 %v1295
  %v1346 = vunpack.c.l.b16 %v1296
  %v1347 = vunpack.c.l.b16 %v1297
  %v1348 = vunpack.c.l.b16 %v1298
  %v1349 = vunpack.c.l.b16 %v1299
  %v1350 = vunpack.c.l.b16 %v1300
  %v1351 = vunpack.c.l.b16 %v1301
  %v1352 = vunpack.c.l.b16 %v1302
  %v1353 = vunpack.c.l.b16 %v1303
  %v1354 = vunpack.c.l.b16 %v1304
  %v1355 = vunpack.c.l.b16 %v1305
  %v1356 = vunpack.c.l.b16 %v1306
  %v1357 = vunpack.c.l.b16 %v1307
  %v1358 = vunpack.c.l.b16 %v1308
  %v1359 = vunpack.c.l.b16 %v1309
  %v1360 = vunpack.c.l.b16 %v1310
  %v1361 = vunpack.c.l.b16 %v1311
  %v1362 = vunpack.c.l.b16 %v1312
  %v1363 = vpack.c.b16 %v1342, %v1341
  %v1364 = vpack.c.b16 %v1344, %v1343
  %v1365 = vpack.c.b16 %v1346, %v1345
  %v1366 = vpack.c.b16 %v1348, %v1347
  %v1367 = vpack.c.b16 %v1350, %v1349
  %v1368 = vpack.c.b16 %v1352, %v1351
  %v1369 = vpack.c.b16 %v1354, %v1353
  %v1370 = vpack.c.b16 %v1356, %v1355
  %v1371 = vpack.c.b16 %v1358, %v1357
  %v1372 = vpack.c.b16 %v1360, %v1359
  %v1373 = vpack.c.b16 %v1362, %v1361
  %v1376 = vunpack.c.l.b16 %v1313
  %v1377 = vunpack.c.l.b16 %v1314
  %v1378 = vpack.c.b16 %v1377, %v1376
  %v1380 = vsel %vm103, %v1363, 0
  %v1383 = vsel %vm103, %v1364, 0
  %v1386 = vsel %vm103, %v1365, 0
  %v1389 = vsel %vm103, %v1366, 0
  %v1392 = vsel %vm103, %v1367, 0
  %v1395 = vsel %vm103, %v1368, 0
  %v1398 = vsel %vm103, %v1369, 0
  %v1401 = vsel %vm103, %v1370, 0
  %v1404 = vsel %vm103, %v1371, 0
  %v1407 = vsel %vm103, %v1372, 0
  %v1410 = vsel %vm103, %v1373, 0
  %v1413 = vand.u32 %v1378, %v140
  %1415 = vmatpush.bf16.msra.mxu0 0
  %1416 = vmatpush.bf16.msra.mxu0 0
  %1417 = vmatpush.bf16.msra.mxu0 0
  %1418 = vmatpush.bf16.msra.mxu0 0
  %1419 = vmatpush.bf16.msra.mxu0 0
  %1420 = vmatpush.bf16.msra.mxu0 0
  %1421 = vmatpush.bf16.msra.mxu0 0
  %1422 = vmatpush.bf16.msra.mxu0 %v1413
  %1423 = vmatmul.bf16.gmra.mxu0 %v1380
  %v1424 = vpop.f32.mrf.mxu0
  %v1425 = vadd.f32 %v1317, %v1424
  %v1426 = vpop.f32.mrf.mxu0
  %v1427 = vadd.f32 %v1317, %v1426
  %1428 = vmatmul.bf16.gmra.mxu0 %v1383
  %v1429 = vpop.f32.mrf.mxu0
  %v1430 = vadd.f32 %v1317, %v1429
  %v1431 = vpop.f32.mrf.mxu0
  %v1432 = vadd.f32 %v1317, %v1431
  %1433 = vmatmul.bf16.gmra.mxu0 %v1386
  %v1434 = vpop.f32.mrf.mxu0
  %v1435 = vadd.f32 %v1317, %v1434
  %v1436 = vpop.f32.mrf.mxu0
  %v1437 = vadd.f32 %v1317, %v1436
  %1438 = vmatmul.bf16.gmra.mxu0 %v1389
  %v1439 = vpop.f32.mrf.mxu0
  %v1440 = vadd.f32 %v1317, %v1439
  %v1441 = vpop.f32.mrf.mxu0
  %v1442 = vadd.f32 %v1317, %v1441
  %1443 = vmatmul.bf16.gmra.mxu0 %v1392
  %v1444 = vpop.f32.mrf.mxu0
  %v1445 = vadd.f32 %v1317, %v1444
  %v1446 = vpop.f32.mrf.mxu0
  %v1447 = vadd.f32 %v1317, %v1446
  %1448 = vmatmul.bf16.gmra.mxu0 %v1395
  %v1449 = vpop.f32.mrf.mxu0
  %v1450 = vadd.f32 %v1317, %v1449
  %v1451 = vpop.f32.mrf.mxu0
  %v1452 = vadd.f32 %v1317, %v1451
  %1453 = vmatmul.bf16.gmra.mxu0 %v1398
  %v1454 = vpop.f32.mrf.mxu0
  %v1455 = vadd.f32 %v1317, %v1454
  %v1456 = vpop.f32.mrf.mxu0
  %v1457 = vadd.f32 %v1317, %v1456
  %1458 = vmatmul.bf16.gmra.mxu0 %v1401
  %v1459 = vpop.f32.mrf.mxu0
  %v1460 = vadd.f32 %v1317, %v1459
  %v1461 = vpop.f32.mrf.mxu0
  %v1462 = vadd.f32 %v1317, %v1461
  %1463 = vmatmul.bf16.gmra.mxu0 %v1404
  %v1464 = vpop.f32.mrf.mxu0
  %v1465 = vadd.f32 %v1317, %v1464
  %v1466 = vpop.f32.mrf.mxu0
  %v1467 = vadd.f32 %v1317, %v1466
  %1468 = vmatmul.bf16.gmra.mxu0 %v1407
  %v1469 = vpop.f32.mrf.mxu0
  %v1470 = vadd.f32 %v1317, %v1469
  %v1471 = vpop.f32.mrf.mxu0
  %v1472 = vadd.f32 %v1317, %v1471
  %1473 = vmatmul.bf16.gmra.mxu0 %v1410
  %v1474 = vpop.f32.mrf.mxu0
  %v1475 = vadd.f32 %v1317, %v1474
  %v1476 = vpop.f32.mrf.mxu0
  %v1477 = vadd.f32 %v1317, %v1476
  %1478 = vdwg.mxu0
  %v1479 = vmax.f32 %v1425, 0.0
  %v1480 = vmax.f32 %v1427, 0.0
  %v1481 = vmax.f32 %v1430, 0.0
  %v1482 = vmax.f32 %v1432, 0.0
  %v1483 = vmax.f32 %v1435, 0.0
  %v1484 = vmax.f32 %v1437, 0.0
  %v1485 = vmax.f32 %v1440, 0.0
  %v1486 = vmax.f32 %v1442, 0.0
  %v1487 = vmax.f32 %v1445, 0.0
  %v1488 = vmax.f32 %v1447, 0.0
  %v1489 = vmax.f32 %v1450, 0.0
  %v1490 = vmax.f32 %v1452, 0.0
  %v1491 = vmax.f32 %v1455, 0.0
  %v1492 = vmax.f32 %v1457, 0.0
  %v1493 = vmax.f32 %v1460, 0.0
  %v1494 = vmax.f32 %v1462, 0.0
  %v1495 = vmax.f32 %v1465, 0.0
  %v1496 = vmax.f32 %v1467, 0.0
  %v1497 = vmax.f32 %v1470, 0.0
  %v1498 = vmax.f32 %v1472, 0.0
  %v1499 = vmax.f32 %v1475, 0.0
  %v1500 = vmax.f32 %v1477, 0.0
  %v1501 = vpack.c.bf16 %v1479, %v1479
  %v1502 = vpack.c.bf16 %v1480, %v1480
  %v1503 = vpack.c.bf16 %v1481, %v1481
  %v1504 = vpack.c.bf16 %v1482, %v1482
  %v1505 = vpack.c.bf16 %v1483, %v1483
  %v1506 = vpack.c.bf16 %v1484, %v1484
  %v1507 = vpack.c.bf16 %v1485, %v1485
  %v1508 = vpack.c.bf16 %v1486, %v1486
  %v1509 = vpack.c.bf16 %v1487, %v1487
  %v1510 = vpack.c.bf16 %v1488, %v1488
  %v1511 = vpack.c.bf16 %v1489, %v1489
  %v1512 = vpack.c.bf16 %v1490, %v1490
  %v1513 = vpack.c.bf16 %v1491, %v1491
  %v1514 = vpack.c.bf16 %v1492, %v1492
  %v1515 = vpack.c.bf16 %v1493, %v1493
  %v1516 = vpack.c.bf16 %v1494, %v1494
  %v1517 = vpack.c.bf16 %v1495, %v1495
  %v1518 = vpack.c.bf16 %v1496, %v1496
  %v1519 = vpack.c.bf16 %v1497, %v1497
  %v1520 = vpack.c.bf16 %v1498, %v1498
  %v1521 = vpack.c.bf16 %v1499, %v1499
  %v1522 = vpack.c.bf16 %v1500, %v1500
  %1523 = vst.msk [vmem:[%s3 + $0x1b8] sm:$0xf] %vm252, %v1501
  %1524 = vst.msk [vmem:[%s3 + $0x1bc] sm:$0xf] %vm252, %v1502
  %1525 = vst.msk [vmem:[%s3 + $0x1c0] sm:$0xf] %vm252, %v1503
  %1526 = vst.msk [vmem:[%s3 + $0x1c4] sm:$0xf] %vm252, %v1504
  %1527 = vst.msk [vmem:[%s3 + $0x1c8] sm:$0xf] %vm252, %v1505
  %1528 = vst.msk [vmem:[%s3 + $0x1cc] sm:$0xf] %vm252, %v1506
  %1529 = vst.msk [vmem:[%s3 + $0x1d0] sm:$0xf] %vm252, %v1507
  %1530 = vst.msk [vmem:[%s3 + $0x1d4] sm:$0xf] %vm252, %v1508
  %1531 = vst.msk [vmem:[%s3 + $0x1d8] sm:$0xf] %vm252, %v1509
  %1532 = vst.msk [vmem:[%s3 + $0x1dc] sm:$0xf] %vm252, %v1510
  %1533 = vst.msk [vmem:[%s3 + $0x1e0] sm:$0xf] %vm252, %v1511
  %1534 = vst.msk [vmem:[%s3 + $0x1e4] sm:$0xf] %vm252, %v1512
  %1535 = vst.msk [vmem:[%s3 + $0x1e8] sm:$0xf] %vm252, %v1513
  %1536 = vst.msk [vmem:[%s3 + $0x1ec] sm:$0xf] %vm252, %v1514
  %1537 = vst.msk [vmem:[%s3 + $0x1f0] sm:$0xf] %vm252, %v1515
  %1538 = vst.msk [vmem:[%s3 + $0x1f4] sm:$0xf] %vm252, %v1516
  %1539 = vst.msk [vmem:[%s3 + $0x1f8] sm:$0xf] %vm252, %v1517
  %1540 = vst.msk [vmem:[%s3 + $0x1fc] sm:$0xf] %vm252, %v1518
  %1541 = vst.msk [vmem:[%s3 + $0x200] sm:$0xf] %vm252, %v1519
  %1542 = vst.msk [vmem:[%s3 + $0x204] sm:$0xf] %vm252, %v1520
  %1543 = vst.msk [vmem:[%s3 + $0x208] sm:$0xf] %vm252, %v1521
  %1544 = vst.msk [vmem:[%s3 + $0x20c] sm:$0xf] %vm252, %v1522
  %v1545 = vld [vmem:[%s0 + $0x210] sm:$0xf]
  %v1546 = vld [vmem:[%s0 + $0x214] sm:$0xf]
  %v1547 = vld [vmem:[%s0 + $0x218] sm:$0xf]
  %v1548 = vld [vmem:[%s0 + $0x21c] sm:$0xf]
  %v1549 = vld [vmem:[%s0 + $0x220] sm:$0xf]
  %v1550 = vld [vmem:[%s0 + $0x224] sm:$0xf]
  %v1551 = vld [vmem:[%s0 + $0x228] sm:$0xf]
  %v1552 = vld [vmem:[%s0 + $0x22c] sm:$0xf]
  %v1553 = vld [vmem:[%s0 + $0x230] sm:$0xf]
  %v1554 = vld [vmem:[%s0 + $0x234] sm:$0xf]
  %v1555 = vld [vmem:[%s0 + $0x238] sm:$0xf]
  %v1556 = vld [vmem:[%s0 + $0x23c] sm:$0xf]
  %v1557 = vld [vmem:[%s0 + $0x240] sm:$0xf]
  %v1558 = vld [vmem:[%s0 + $0x244] sm:$0xf]
  %v1559 = vld [vmem:[%s0 + $0x248] sm:$0xf]
  %v1560 = vld [vmem:[%s0 + $0x24c] sm:$0xf]
  %v1561 = vld [vmem:[%s0 + $0x250] sm:$0xf]
  %v1562 = vld [vmem:[%s0 + $0x254] sm:$0xf]
  %v1563 = vld [vmem:[%s0 + $0x258] sm:$0xf]
  %v1564 = vld [vmem:[%s0 + $0x25c] sm:$0xf]
  %v1565 = vld [vmem:[%s0 + $0x260] sm:$0xf]
  %v1566 = vld [vmem:[%s0 + $0x264] sm:$0xf]
  %v1567 = vld [vmem:[%s1] sm:$0xf]
  %v1568 = vld [vmem:[%s1 + $0x4] sm:$0x1]
  %v1569 = vld [vmem:[%s2] sm:$0x1]
  %v1571 = vperm.slane %v1569, 0
  %v1595 = vunpack.c.l.b16 %v1545
  %v1596 = vunpack.c.l.b16 %v1546
  %v1597 = vunpack.c.l.b16 %v1547
  %v1598 = vunpack.c.l.b16 %v1548
  %v1599 = vunpack.c.l.b16 %v1549
  %v1600 = vunpack.c.l.b16 %v1550
  %v1601 = vunpack.c.l.b16 %v1551
  %v1602 = vunpack.c.l.b16 %v1552
  %v1603 = vunpack.c.l.b16 %v1553
  %v1604 = vunpack.c.l.b16 %v1554
  %v1605 = vunpack.c.l.b16 %v1555
  %v1606 = vunpack.c.l.b16 %v1556
  %v1607 = vunpack.c.l.b16 %v1557
  %v1608 = vunpack.c.l.b16 %v1558
  %v1609 = vunpack.c.l.b16 %v1559
  %v1610 = vunpack.c.l.b16 %v1560
  %v1611 = vunpack.c.l.b16 %v1561
  %v1612 = vunpack.c.l.b16 %v1562
  %v1613 = vunpack.c.l.b16 %v1563
  %v1614 = vunpack.c.l.b16 %v1564
  %v1615 = vunpack.c.l.b16 %v1565
  %v1616 = vunpack.c.l.b16 %v1566
  %v1617 = vpack.c.b16 %v1596, %v1595
  %v1618 = vpack.c.b16 %v1598, %v1597
  %v1619 = vpack.c.b16 %v1600, %v1599
  %v1620 = vpack.c.b16 %v1602, %v1601
  %v1621 = vpack.c.b16 %v1604, %v1603
  %v1622 = vpack.c.b16 %v1606, %v1605
  %v1623 = vpack.c.b16 %v1608, %v1607
  %v1624 = vpack.c.b16 %v1610, %v1609
  %v1625 = vpack.c.b16 %v1612, %v1611
  %v1626 = vpack.c.b16 %v1614, %v1613
  %v1627 = vpack.c.b16 %v1616, %v1615
  %v1630 = vunpack.c.l.b16 %v1567
  %v1631 = vunpack.c.l.b16 %v1568
  %v1632 = vpack.c.b16 %v1631, %v1630
  %v1634 = vsel %vm103, %v1617, 0
  %v1637 = vsel %vm103, %v1618, 0
  %v1640 = vsel %vm103, %v1619, 0
  %v1643 = vsel %vm103, %v1620, 0
  %v1646 = vsel %vm103, %v1621, 0
  %v1649 = vsel %vm103, %v1622, 0
  %v1652 = vsel %vm103, %v1623, 0
  %v1655 = vsel %vm103, %v1624, 0
  %v1658 = vsel %vm103, %v1625, 0
  %v1661 = vsel %vm103, %v1626, 0
  %v1664 = vsel %vm103, %v1627, 0
  %v1667 = vand.u32 %v1632, %v140
  %1669 = vmatpush.bf16.msra.mxu0 0
  %1670 = vmatpush.bf16.msra.mxu0 0
  %1671 = vmatpush.bf16.msra.mxu0 0
  %1672 = vmatpush.bf16.msra.mxu0 0
  %1673 = vmatpush.bf16.msra.mxu0 0
  %1674 = vmatpush.bf16.msra.mxu0 0
  %1675 = vmatpush.bf16.msra.mxu0 0
  %1676 = vmatpush.bf16.msra.mxu0 %v1667
  %1677 = vmatmul.bf16.gmra.mxu0 %v1634
  %v1678 = vpop.f32.mrf.mxu0
  %v1679 = vadd.f32 %v1571, %v1678
  %v1680 = vpop.f32.mrf.mxu0
  %v1681 = vadd.f32 %v1571, %v1680
  %1682 = vmatmul.bf16.gmra.mxu0 %v1637
  %v1683 = vpop.f32.mrf.mxu0
  %v1684 = vadd.f32 %v1571, %v1683
  %v1685 = vpop.f32.mrf.mxu0
  %v1686 = vadd.f32 %v1571, %v1685
  %1687 = vmatmul.bf16.gmra.mxu0 %v1640
  %v1688 = vpop.f32.mrf.mxu0
  %v1689 = vadd.f32 %v1571, %v1688
  %v1690 = vpop.f32.mrf.mxu0
  %v1691 = vadd.f32 %v1571, %v1690
  %1692 = vmatmul.bf16.gmra.mxu0 %v1643
  %v1693 = vpop.f32.mrf.mxu0
  %v1694 = vadd.f32 %v1571, %v1693
  %v1695 = vpop.f32.mrf.mxu0
  %v1696 = vadd.f32 %v1571, %v1695
  %1697 = vmatmul.bf16.gmra.mxu0 %v1646
  %v1698 = vpop.f32.mrf.mxu0
  %v1699 = vadd.f32 %v1571, %v1698
  %v1700 = vpop.f32.mrf.mxu0
  %v1701 = vadd.f32 %v1571, %v1700
  %1702 = vmatmul.bf16.gmra.mxu0 %v1649
  %v1703 = vpop.f32.mrf.mxu0
  %v1704 = vadd.f32 %v1571, %v1703
  %v1705 = vpop.f32.mrf.mxu0
  %v1706 = vadd.f32 %v1571, %v1705
  %1707 = vmatmul.bf16.gmra.mxu0 %v1652
  %v1708 = vpop.f32.mrf.mxu0
  %v1709 = vadd.f32 %v1571, %v1708
  %v1710 = vpop.f32.mrf.mxu0
  %v1711 = vadd.f32 %v1571, %v1710
  %1712 = vmatmul.bf16.gmra.mxu0 %v1655
  %v1713 = vpop.f32.mrf.mxu0
  %v1714 = vadd.f32 %v1571, %v1713
  %v1715 = vpop.f32.mrf.mxu0
  %v1716 = vadd.f32 %v1571, %v1715
  %1717 = vmatmul.bf16.gmra.mxu0 %v1658
  %v1718 = vpop.f32.mrf.mxu0
  %v1719 = vadd.f32 %v1571, %v1718
  %v1720 = vpop.f32.mrf.mxu0
  %v1721 = vadd.f32 %v1571, %v1720
  %1722 = vmatmul.bf16.gmra.mxu0 %v1661
  %v1723 = vpop.f32.mrf.mxu0
  %v1724 = vadd.f32 %v1571, %v1723
  %v1725 = vpop.f32.mrf.mxu0
  %v1726 = vadd.f32 %v1571, %v1725
  %1727 = vmatmul.bf16.gmra.mxu0 %v1664
  %v1728 = vpop.f32.mrf.mxu0
  %v1729 = vadd.f32 %v1571, %v1728
  %v1730 = vpop.f32.mrf.mxu0
  %v1731 = vadd.f32 %v1571, %v1730
  %1732 = vdwg.mxu0
  %v1733 = vmax.f32 %v1679, 0.0
  %v1734 = vmax.f32 %v1681, 0.0
  %v1735 = vmax.f32 %v1684, 0.0
  %v1736 = vmax.f32 %v1686, 0.0
  %v1737 = vmax.f32 %v1689, 0.0
  %v1738 = vmax.f32 %v1691, 0.0
  %v1739 = vmax.f32 %v1694, 0.0
  %v1740 = vmax.f32 %v1696, 0.0
  %v1741 = vmax.f32 %v1699, 0.0
  %v1742 = vmax.f32 %v1701, 0.0
  %v1743 = vmax.f32 %v1704, 0.0
  %v1744 = vmax.f32 %v1706, 0.0
  %v1745 = vmax.f32 %v1709, 0.0
  %v1746 = vmax.f32 %v1711, 0.0
  %v1747 = vmax.f32 %v1714, 0.0
  %v1748 = vmax.f32 %v1716, 0.0
  %v1749 = vmax.f32 %v1719, 0.0
  %v1750 = vmax.f32 %v1721, 0.0
  %v1751 = vmax.f32 %v1724, 0.0
  %v1752 = vmax.f32 %v1726, 0.0
  %v1753 = vmax.f32 %v1729, 0.0
  %v1754 = vmax.f32 %v1731, 0.0
  %v1755 = vpack.c.bf16 %v1733, %v1733
  %v1756 = vpack.c.bf16 %v1734, %v1734
  %v1757 = vpack.c.bf16 %v1735, %v1735
  %v1758 = vpack.c.bf16 %v1736, %v1736
  %v1759 = vpack.c.bf16 %v1737, %v1737
  %v1760 = vpack.c.bf16 %v1738, %v1738
  %v1761 = vpack.c.bf16 %v1739, %v1739
  %v1762 = vpack.c.bf16 %v1740, %v1740
  %v1763 = vpack.c.bf16 %v1741, %v1741
  %v1764 = vpack.c.bf16 %v1742, %v1742
  %v1765 = vpack.c.bf16 %v1743, %v1743
  %v1766 = vpack.c.bf16 %v1744, %v1744
  %v1767 = vpack.c.bf16 %v1745, %v1745
  %v1768 = vpack.c.bf16 %v1746, %v1746
  %v1769 = vpack.c.bf16 %v1747, %v1747
  %v1770 = vpack.c.bf16 %v1748, %v1748
  %v1771 = vpack.c.bf16 %v1749, %v1749
  %v1772 = vpack.c.bf16 %v1750, %v1750
  %v1773 = vpack.c.bf16 %v1751, %v1751
  %v1774 = vpack.c.bf16 %v1752, %v1752
  %v1775 = vpack.c.bf16 %v1753, %v1753
  %v1776 = vpack.c.bf16 %v1754, %v1754
  %1777 = vst.msk [vmem:[%s3 + $0x210] sm:$0xf] %vm252, %v1755
  %1778 = vst.msk [vmem:[%s3 + $0x214] sm:$0xf] %vm252, %v1756
  %1779 = vst.msk [vmem:[%s3 + $0x218] sm:$0xf] %vm252, %v1757
  %1780 = vst.msk [vmem:[%s3 + $0x21c] sm:$0xf] %vm252, %v1758
  %1781 = vst.msk [vmem:[%s3 + $0x220] sm:$0xf] %vm252, %v1759
  %1782 = vst.msk [vmem:[%s3 + $0x224] sm:$0xf] %vm252, %v1760
  %1783 = vst.msk [vmem:[%s3 + $0x228] sm:$0xf] %vm252, %v1761
  %1784 = vst.msk [vmem:[%s3 + $0x22c] sm:$0xf] %vm252, %v1762
  %1785 = vst.msk [vmem:[%s3 + $0x230] sm:$0xf] %vm252, %v1763
  %1786 = vst.msk [vmem:[%s3 + $0x234] sm:$0xf] %vm252, %v1764
  %1787 = vst.msk [vmem:[%s3 + $0x238] sm:$0xf] %vm252, %v1765
  %1788 = vst.msk [vmem:[%s3 + $0x23c] sm:$0xf] %vm252, %v1766
  %1789 = vst.msk [vmem:[%s3 + $0x240] sm:$0xf] %vm252, %v1767
  %1790 = vst.msk [vmem:[%s3 + $0x244] sm:$0xf] %vm252, %v1768
  %1791 = vst.msk [vmem:[%s3 + $0x248] sm:$0xf] %vm252, %v1769
  %1792 = vst.msk [vmem:[%s3 + $0x24c] sm:$0xf] %vm252, %v1770
  %1793 = vst.msk [vmem:[%s3 + $0x250] sm:$0xf] %vm252, %v1771
  %1794 = vst.msk [vmem:[%s3 + $0x254] sm:$0xf] %vm252, %v1772
  %1795 = vst.msk [vmem:[%s3 + $0x258] sm:$0xf] %vm252, %v1773
  %1796 = vst.msk [vmem:[%s3 + $0x25c] sm:$0xf] %vm252, %v1774
  %1797 = vst.msk [vmem:[%s3 + $0x260] sm:$0xf] %vm252, %v1775
  %1798 = vst.msk [vmem:[%s3 + $0x264] sm:$0xf] %vm252, %v1776
  %v1799 = vld [vmem:[%s0 + $0x268] sm:$0xf]
  %v1800 = vld [vmem:[%s0 + $0x26c] sm:$0xf]
  %v1801 = vld [vmem:[%s0 + $0x270] sm:$0xf]
  %v1802 = vld [vmem:[%s0 + $0x274] sm:$0xf]
  %v1803 = vld [vmem:[%s0 + $0x278] sm:$0xf]
  %v1804 = vld [vmem:[%s0 + $0x27c] sm:$0xf]
  %v1805 = vld [vmem:[%s0 + $0x280] sm:$0xf]
  %v1806 = vld [vmem:[%s0 + $0x284] sm:$0xf]
  %v1807 = vld [vmem:[%s0 + $0x288] sm:$0xf]
  %v1808 = vld [vmem:[%s0 + $0x28c] sm:$0xf]
  %v1809 = vld [vmem:[%s0 + $0x290] sm:$0xf]
  %v1810 = vld [vmem:[%s0 + $0x294] sm:$0xf]
  %v1811 = vld [vmem:[%s0 + $0x298] sm:$0xf]
  %v1812 = vld [vmem:[%s0 + $0x29c] sm:$0xf]
  %v1813 = vld [vmem:[%s0 + $0x2a0] sm:$0xf]
  %v1814 = vld [vmem:[%s0 + $0x2a4] sm:$0xf]
  %v1815 = vld [vmem:[%s0 + $0x2a8] sm:$0xf]
  %v1816 = vld [vmem:[%s0 + $0x2ac] sm:$0xf]
  %v1817 = vld [vmem:[%s0 + $0x2b0] sm:$0xf]
  %v1818 = vld [vmem:[%s0 + $0x2b4] sm:$0xf]
  %v1819 = vld [vmem:[%s0 + $0x2b8] sm:$0xf]
  %v1820 = vld [vmem:[%s0 + $0x2bc] sm:$0xf]
  %v1821 = vld [vmem:[%s1] sm:$0xf]
  %v1822 = vld [vmem:[%s1 + $0x4] sm:$0x1]
  %v1823 = vld [vmem:[%s2] sm:$0x1]
  %v1825 = vperm.slane %v1823, 0
  %v1849 = vunpack.c.l.b16 %v1799
  %v1850 = vunpack.c.l.b16 %v1800
  %v1851 = vunpack.c.l.b16 %v1801
  %v1852 = vunpack.c.l.b16 %v1802
  %v1853 = vunpack.c.l.b16 %v1803
  %v1854 = vunpack.c.l.b16 %v1804
  %v1855 = vunpack.c.l.b16 %v1805
  %v1856 = vunpack.c.l.b16 %v1806
  %v1857 = vunpack.c.l.b16 %v1807
  %v1858 = vunpack.c.l.b16 %v1808
  %v1859 = vunpack.c.l.b16 %v1809
  %v1860 = vunpack.c.l.b16 %v1810
  %v1861 = vunpack.c.l.b16 %v1811
  %v1862 = vunpack.c.l.b16 %v1812
  %v1863 = vunpack.c.l.b16 %v1813
  %v1864 = vunpack.c.l.b16 %v1814
  %v1865 = vunpack.c.l.b16 %v1815
  %v1866 = vunpack.c.l.b16 %v1816
  %v1867 = vunpack.c.l.b16 %v1817
  %v1868 = vunpack.c.l.b16 %v1818
  %v1869 = vunpack.c.l.b16 %v1819
  %v1870 = vunpack.c.l.b16 %v1820
  %v1871 = vpack.c.b16 %v1850, %v1849
  %v1872 = vpack.c.b16 %v1852, %v1851
  %v1873 = vpack.c.b16 %v1854, %v1853
  %v1874 = vpack.c.b16 %v1856, %v1855
  %v1875 = vpack.c.b16 %v1858, %v1857
  %v1876 = vpack.c.b16 %v1860, %v1859
  %v1877 = vpack.c.b16 %v1862, %v1861
  %v1878 = vpack.c.b16 %v1864, %v1863
  %v1879 = vpack.c.b16 %v1866, %v1865
  %v1880 = vpack.c.b16 %v1868, %v1867
  %v1881 = vpack.c.b16 %v1870, %v1869
  %v1884 = vunpack.c.l.b16 %v1821
  %v1885 = vunpack.c.l.b16 %v1822
  %v1886 = vpack.c.b16 %v1885, %v1884
  %v1888 = vsel %vm103, %v1871, 0
  %v1891 = vsel %vm103, %v1872, 0
  %v1894 = vsel %vm103, %v1873, 0
  %v1897 = vsel %vm103, %v1874, 0
  %v1900 = vsel %vm103, %v1875, 0
  %v1903 = vsel %vm103, %v1876, 0
  %v1906 = vsel %vm103, %v1877, 0
  %v1909 = vsel %vm103, %v1878, 0
  %v1912 = vsel %vm103, %v1879, 0
  %v1915 = vsel %vm103, %v1880, 0
  %v1918 = vsel %vm103, %v1881, 0
  %v1921 = vand.u32 %v1886, %v140
  %1923 = vmatpush.bf16.msra.mxu0 0
  %1924 = vmatpush.bf16.msra.mxu0 0
  %1925 = vmatpush.bf16.msra.mxu0 0
  %1926 = vmatpush.bf16.msra.mxu0 0
  %1927 = vmatpush.bf16.msra.mxu0 0
  %1928 = vmatpush.bf16.msra.mxu0 0
  %1929 = vmatpush.bf16.msra.mxu0 0
  %1930 = vmatpush.bf16.msra.mxu0 %v1921
  %1931 = vmatmul.bf16.gmra.mxu0 %v1888
  %v1932 = vpop.f32.mrf.mxu0
  %v1933 = vadd.f32 %v1825, %v1932
  %v1934 = vpop.f32.mrf.mxu0
  %v1935 = vadd.f32 %v1825, %v1934
  %1936 = vmatmul.bf16.gmra.mxu0 %v1891
  %v1937 = vpop.f32.mrf.mxu0
  %v1938 = vadd.f32 %v1825, %v1937
  %v1939 = vpop.f32.mrf.mxu0
  %v1940 = vadd.f32 %v1825, %v1939
  %1941 = vmatmul.bf16.gmra.mxu0 %v1894
  %v1942 = vpop.f32.mrf.mxu0
  %v1943 = vadd.f32 %v1825, %v1942
  %v1944 = vpop.f32.mrf.mxu0
  %v1945 = vadd.f32 %v1825, %v1944
  %1946 = vmatmul.bf16.gmra.mxu0 %v1897
  %v1947 = vpop.f32.mrf.mxu0
  %v1948 = vadd.f32 %v1825, %v1947
  %v1949 = vpop.f32.mrf.mxu0
  %v1950 = vadd.f32 %v1825, %v1949
  %1951 = vmatmul.bf16.gmra.mxu0 %v1900
  %v1952 = vpop.f32.mrf.mxu0
  %v1953 = vadd.f32 %v1825, %v1952
  %v1954 = vpop.f32.mrf.mxu0
  %v1955 = vadd.f32 %v1825, %v1954
  %1956 = vmatmul.bf16.gmra.mxu0 %v1903
  %v1957 = vpop.f32.mrf.mxu0
  %v1958 = vadd.f32 %v1825, %v1957
  %v1959 = vpop.f32.mrf.mxu0
  %v1960 = vadd.f32 %v1825, %v1959
  %1961 = vmatmul.bf16.gmra.mxu0 %v1906
  %v1962 = vpop.f32.mrf.mxu0
  %v1963 = vadd.f32 %v1825, %v1962
  %v1964 = vpop.f32.mrf.mxu0
  %v1965 = vadd.f32 %v1825, %v1964
  %1966 = vmatmul.bf16.gmra.mxu0 %v1909
  %v1967 = vpop.f32.mrf.mxu0
  %v1968 = vadd.f32 %v1825, %v1967
  %v1969 = vpop.f32.mrf.mxu0
  %v1970 = vadd.f32 %v1825, %v1969
  %1971 = vmatmul.bf16.gmra.mxu0 %v1912
  %v1972 = vpop.f32.mrf.mxu0
  %v1973 = vadd.f32 %v1825, %v1972
  %v1974 = vpop.f32.mrf.mxu0
  %v1975 = vadd.f32 %v1825, %v1974
  %1976 = vmatmul.bf16.gmra.mxu0 %v1915
  %v1977 = vpop.f32.mrf.mxu0
  %v1978 = vadd.f32 %v1825, %v1977
  %v1979 = vpop.f32.mrf.mxu0
  %v1980 = vadd.f32 %v1825, %v1979
  %1981 = vmatmul.bf16.gmra.mxu0 %v1918
  %v1982 = vpop.f32.mrf.mxu0
  %v1983 = vadd.f32 %v1825, %v1982
  %v1984 = vpop.f32.mrf.mxu0
  %v1985 = vadd.f32 %v1825, %v1984
  %1986 = vdwg.mxu0
  %v1987 = vmax.f32 %v1933, 0.0
  %v1988 = vmax.f32 %v1935, 0.0
  %v1989 = vmax.f32 %v1938, 0.0
  %v1990 = vmax.f32 %v1940, 0.0
  %v1991 = vmax.f32 %v1943, 0.0
  %v1992 = vmax.f32 %v1945, 0.0
  %v1993 = vmax.f32 %v1948, 0.0
  %v1994 = vmax.f32 %v1950, 0.0
  %v1995 = vmax.f32 %v1953, 0.0
  %v1996 = vmax.f32 %v1955, 0.0
  %v1997 = vmax.f32 %v1958, 0.0
  %v1998 = vmax.f32 %v1960, 0.0
  %v1999 = vmax.f32 %v1963, 0.0
  %v2000 = vmax.f32 %v1965, 0.0
  %v2001 = vmax.f32 %v1968, 0.0
  %v2002 = vmax.f32 %v1970, 0.0
  %v2003 = vmax.f32 %v1973, 0.0
  %v2004 = vmax.f32 %v1975, 0.0
  %v2005 = vmax.f32 %v1978, 0.0
  %v2006 = vmax.f32 %v1980, 0.0
  %v2007 = vmax.f32 %v1983, 0.0
  %v2008 = vmax.f32 %v1985, 0.0
  %v2009 = vpack.c.bf16 %v1987, %v1987
  %v2010 = vpack.c.bf16 %v1988, %v1988
  %v2011 = vpack.c.bf16 %v1989, %v1989
  %v2012 = vpack.c.bf16 %v1990, %v1990
  %v2013 = vpack.c.bf16 %v1991, %v1991
  %v2014 = vpack.c.bf16 %v1992, %v1992
  %v2015 = vpack.c.bf16 %v1993, %v1993
  %v2016 = vpack.c.bf16 %v1994, %v1994
  %v2017 = vpack.c.bf16 %v1995, %v1995
  %v2018 = vpack.c.bf16 %v1996, %v1996
  %v2019 = vpack.c.bf16 %v1997, %v1997
  %v2020 = vpack.c.bf16 %v1998, %v1998
  %v2021 = vpack.c.bf16 %v1999, %v1999
  %v2022 = vpack.c.bf16 %v2000, %v2000
  %v2023 = vpack.c.bf16 %v2001, %v2001
  %v2024 = vpack.c.bf16 %v2002, %v2002
  %v2025 = vpack.c.bf16 %v2003, %v2003
  %v2026 = vpack.c.bf16 %v2004, %v2004
  %v2027 = vpack.c.bf16 %v2005, %v2005
  %v2028 = vpack.c.bf16 %v2006, %v2006
  %v2029 = vpack.c.bf16 %v2007, %v2007
  %v2030 = vpack.c.bf16 %v2008, %v2008
  %2031 = vst.msk [vmem:[%s3 + $0x268] sm:$0xf] %vm252, %v2009
  %2032 = vst.msk [vmem:[%s3 + $0x26c] sm:$0xf] %vm252, %v2010
  %2033 = vst.msk [vmem:[%s3 + $0x270] sm:$0xf] %vm252, %v2011
  %2034 = vst.msk [vmem:[%s3 + $0x274] sm:$0xf] %vm252, %v2012
  %2035 = vst.msk [vmem:[%s3 + $0x278] sm:$0xf] %vm252, %v2013
  %2036 = vst.msk [vmem:[%s3 + $0x27c] sm:$0xf] %vm252, %v2014
  %2037 = vst.msk [vmem:[%s3 + $0x280] sm:$0xf] %vm252, %v2015
  %2038 = vst.msk [vmem:[%s3 + $0x284] sm:$0xf] %vm252, %v2016
  %2039 = vst.msk [vmem:[%s3 + $0x288] sm:$0xf] %vm252, %v2017
  %2040 = vst.msk [vmem:[%s3 + $0x28c] sm:$0xf] %vm252, %v2018
  %2041 = vst.msk [vmem:[%s3 + $0x290] sm:$0xf] %vm252, %v2019
  %2042 = vst.msk [vmem:[%s3 + $0x294] sm:$0xf] %vm252, %v2020
  %2043 = vst.msk [vmem:[%s3 + $0x298] sm:$0xf] %vm252, %v2021
  %2044 = vst.msk [vmem:[%s3 + $0x29c] sm:$0xf] %vm252, %v2022
  %2045 = vst.msk [vmem:[%s3 + $0x2a0] sm:$0xf] %vm252, %v2023
  %2046 = vst.msk [vmem:[%s3 + $0x2a4] sm:$0xf] %vm252, %v2024
  %2047 = vst.msk [vmem:[%s3 + $0x2a8] sm:$0xf] %vm252, %v2025
  %2048 = vst.msk [vmem:[%s3 + $0x2ac] sm:$0xf] %vm252, %v2026
  %2049 = vst.msk [vmem:[%s3 + $0x2b0] sm:$0xf] %vm252, %v2027
  %2050 = vst.msk [vmem:[%s3 + $0x2b4] sm:$0xf] %vm252, %v2028
  %2051 = vst.msk [vmem:[%s3 + $0x2b8] sm:$0xf] %vm252, %v2029
  %2052 = vst.msk [vmem:[%s3 + $0x2bc] sm:$0xf] %vm252, %v2030
  // Predicated region
  $region14: #{cnn_forward.2} parent=0 // pred_check
    _
  $region15: #{cnn_forward.2} parent=0 // pred_check_branch
    %2054 = sbr.rel (0) target = $region17
  $region16: #{cnn_forward.2} parent=0 // pred_region
    _
  $region17: #{cnn_forward.2} parent=0 // pred_fallthru
    _
  // Predicated region
  $region18: #{cnn_forward.2} parent=0 // pred_check
    _
  $region19: #{cnn_forward.2} parent=0 // pred_check_branch
    %2056 = sbr.rel (0) target = $region21
  $region20: #{cnn_forward.2} parent=0 // pred_region
    _
  $region21: #{cnn_forward.2} parent=0 // pred_fallthru
    _

// kernel: cnn_forward.3
$region0: #{cnn_forward.3}
  #allocation0 [shape = 'u32[]', space=smem, size = 0x4, offset = 0x4, fixed_abs, tag = 'smem constant byte address 0x4 - core index']
  #allocation1 [shape = 'u32[72,128]{1,0:T(1,128)}', space=vmem, size = 0x9000, scoped, tag = 'internal scratch']
  %s0 = inlined_call_operand.vmem [shape: bf16[128,288], index: 0, kind: input, shape index: {}]
  %s1 = inlined_call_operand.vmem [shape: bf16[288,128], index: 1, kind: input, shape index: {}]
  %s2 = inlined_call_operand.vmem [shape: f32[1,128], index: 2, kind: input, shape index: {}]
  %s3 = inlined_call_operand.vmem [shape: bf16[2048,128], index: 3, kind: input, shape index: {}]
  %s4 = inlined_call_operand.vmem [shape: f32[1,128], index: 4, kind: input, shape index: {}]
  %s5 = inlined_call_operand.vmem [shape: bf16[128,128], index: 5, kind: input, shape index: {}]
  %s6 = inlined_call_operand.vmem [shape: f32[1,128], index: 6, kind: input, shape index: {}]
  %s7 = inlined_call_operand.vmem [shape: f32[8,128], index: 7, kind: output, shape index: {}]
  %s8 = sld [smem:[#allocation0]]
  $region38: #{cnn_forward.3} parent=0
    _
  %s10 = ssub.s32 1, %s8
  %s11 = scalar_select 0, %s10, %s8
  // Predicated region
  $region2: #{cnn_forward.3} parent=0 // pred_check
    _
  $region3: #{cnn_forward.3} parent=0 // pred_check_branch
    %13 = sbr.rel (0) target = $region5
  $region4: #{cnn_forward.3} parent=0 // pred_region
    _
  $region5: #{cnn_forward.3} parent=0 // pred_fallthru
    _
  // Predicated region
  $region6: #{cnn_forward.3} parent=0 // pred_check
    _
  $region7: #{cnn_forward.3} parent=0 // pred_check_branch
    %15 = sbr.rel (0) target = $region9
  $region8: #{cnn_forward.3} parent=0 // pred_region
    _
  $region9: #{cnn_forward.3} parent=0 // pred_fallthru
    _
  // Predicated region
  $region10: #{cnn_forward.3} parent=0 // pred_check
    _
  $region11: #{cnn_forward.3} parent=0 // pred_check_branch
    %17 = sbr.rel (0) target = $region13
  $region12: #{cnn_forward.3} parent=0 // pred_region
    _
  $region13: #{cnn_forward.3} parent=0 // pred_fallthru
    _
  // Predicated region
  $region14: #{cnn_forward.3} parent=0 // pred_check
    _
  $region15: #{cnn_forward.3} parent=0 // pred_check_branch
    %19 = sbr.rel (0) target = $region17
  $region16: #{cnn_forward.3} parent=0 // pred_region
    _
  $region17: #{cnn_forward.3} parent=0 // pred_fallthru
    _
  // Predicated region
  $region18: #{cnn_forward.3} parent=0 // pred_check
    _
  $region19: #{cnn_forward.3} parent=0 // pred_check_branch
    %21 = sbr.rel (0) target = $region21
  $region20: #{cnn_forward.3} parent=0 // pred_region
    _
  $region21: #{cnn_forward.3} parent=0 // pred_fallthru
    _
  // Predicated region
  $region22: #{cnn_forward.3} parent=0 // pred_check
    _
  $region23: #{cnn_forward.3} parent=0 // pred_check_branch
    %23 = sbr.rel (0) target = $region25
  $region24: #{cnn_forward.3} parent=0 // pred_region
    _
  $region25: #{cnn_forward.3} parent=0 // pred_fallthru
    _
  // Predicated region
  $region26: #{cnn_forward.3} parent=0 // pred_check
    _
  $region27: #{cnn_forward.3} parent=0 // pred_check_branch
    %25 = sbr.rel (0) target = $region29
  $region28: #{cnn_forward.3} parent=0 // pred_region
    _
  $region29: #{cnn_forward.3} parent=0 // pred_fallthru
    _
  %v27 = vld [vmem:[%s0] sm:$0xff]
  %v28 = vld [vmem:[%s0 + $0x8] sm:$0xf]
  %v29 = vld [vmem:[%s1] sm:$0xf]
  %v30 = vld [vmem:[%s1 + $0x4] sm:$0xf]
  %v31 = vld [vmem:[%s1 + $0x8] sm:$0xf]
  %v32 = vld [vmem:[%s1 + $0xc] sm:$0xf]
  %v33 = vld [vmem:[%s1 + $0x10] sm:$0xf]
  %v34 = vld [vmem:[%s1 + $0x14] sm:$0xf]
  %v35 = vld [vmem:[%s1 + $0x18] sm:$0xf]
  %v36 = vld [vmem:[%s1 + $0x1c] sm:$0xf]
  %v37 = vld [vmem:[%s1 + $0x20] sm:$0xf]
  %v38 = vld [vmem:[%s1 + $0x24] sm:$0xf]
  %v39 = vld [vmem:[%s1 + $0x28] sm:$0xf]
  %v40 = vld [vmem:[%s1 + $0x2c] sm:$0xf]
  %v41 = vld [vmem:[%s1 + $0x30] sm:$0xf]
  %v42 = vld [vmem:[%s1 + $0x34] sm:$0xf]
  %v43 = vld [vmem:[%s1 + $0x38] sm:$0xf]
  %v44 = vld [vmem:[%s1 + $0x3c] sm:$0xf]
  %v45 = vld [vmem:[%s1 + $0x40] sm:$0xf]
  %v46 = vld [vmem:[%s1 + $0x44] sm:$0xf]
  %v47 = vld [vmem:[%s1 + $0x48] sm:$0xf]
  %v48 = vld [vmem:[%s1 + $0x4c] sm:$0xf]
  %v49 = vld [vmem:[%s1 + $0x50] sm:$0xf]
  %v50 = vld [vmem:[%s1 + $0x54] sm:$0xf]
  %v51 = vld [vmem:[%s1 + $0x58] sm:$0xf]
  %v52 = vld [vmem:[%s1 + $0x5c] sm:$0xf]
  %v53 = vld [vmem:[%s1 + $0x60] sm:$0xf]
  %v54 = vld [vmem:[%s1 + $0x64] sm:$0xf]
  %v55 = vld [vmem:[%s1 + $0x68] sm:$0xf]
  %v56 = vld [vmem:[%s1 + $0x6c] sm:$0xf]
  %v57 = vld [vmem:[%s1 + $0x70] sm:$0xf]
  %v58 = vld [vmem:[%s1 + $0x74] sm:$0xf]
  %v59 = vld [vmem:[%s1 + $0x78] sm:$0xf]
  %v60 = vld [vmem:[%s1 + $0x7c] sm:$0xf]
  %v61 = vld [vmem:[%s1 + $0x80] sm:$0xf]
  %v62 = vld [vmem:[%s1 + $0x84] sm:$0xf]
  %v63 = vld [vmem:[%s1 + $0x88] sm:$0xf]
  %v64 = vld [vmem:[%s1 + $0x8c] sm:$0xf]
  %v65 = vld [vmem:[%s2] sm:$0x1]
  %v67 = vperm.slane %v65, 0
  %v71 = vunpack.c.l.b16 %v27
  %v72 = vunpack.c.h.b16 %v27
  %v73 = vunpack.c.l.b16 %v28
  %v74 = vpack.c.b16 %v71, %v71
  %v75 = vpack.c.b16 %v72, %v72
  %v76 = vpack.c.b16 %v73, %v73
  %v115 = vunpack.c.l.b16 %v29
  %v116 = vunpack.c.l.b16 %v30
  %v117 = vunpack.c.l.b16 %v31
  %v118 = vunpack.c.l.b16 %v32
  %v119 = vunpack.c.l.b16 %v33
  %v120 = vunpack.c.l.b16 %v34
  %v121 = vunpack.c.l.b16 %v35
  %v122 = vunpack.c.l.b16 %v36
  %v123 = vunpack.c.l.b16 %v37
  %v124 = vunpack.c.l.b16 %v38
  %v125 = vunpack.c.l.b16 %v39
  %v126 = vunpack.c.l.b16 %v40
  %v127 = vunpack.c.l.b16 %v41
  %v128 = vunpack.c.l.b16 %v42
  %v129 = vunpack.c.l.b16 %v43
  %v130 = vunpack.c.l.b16 %v44
  %v131 = vunpack.c.l.b16 %v45
  %v132 = vunpack.c.l.b16 %v46
  %v133 = vunpack.c.l.b16 %v47
  %v134 = vunpack.c.l.b16 %v48
  %v135 = vunpack.c.l.b16 %v49
  %v136 = vunpack.c.l.b16 %v50
  %v137 = vunpack.c.l.b16 %v51
  %v138 = vunpack.c.l.b16 %v52
  %v139 = vunpack.c.l.b16 %v53
  %v140 = vunpack.c.l.b16 %v54
  %v141 = vunpack.c.l.b16 %v55
  %v142 = vunpack.c.l.b16 %v56
  %v143 = vunpack.c.l.b16 %v57
  %v144 = vunpack.c.l.b16 %v58
  %v145 = vunpack.c.l.b16 %v59
  %v146 = vunpack.c.l.b16 %v60
  %v147 = vunpack.c.l.b16 %v61
  %v148 = vunpack.c.l.b16 %v62
  %v149 = vunpack.c.l.b16 %v63
  %v150 = vunpack.c.l.b16 %v64
  %v151 = vpack.c.b16 %v116, %v115
  %v152 = vpack.c.b16 %v118, %v117
  %v153 = vpack.c.b16 %v120, %v119
  %v154 = vpack.c.b16 %v122, %v121
  %v155 = vpack.c.b16 %v124, %v123
  %v156 = vpack.c.b16 %v126, %v125
  %v157 = vpack.c.b16 %v128, %v127
  %v158 = vpack.c.b16 %v130, %v129
  %v159 = vpack.c.b16 %v132, %v131
  %v160 = vpack.c.b16 %v134, %v133
  %v161 = vpack.c.b16 %v136, %v135
  %v162 = vpack.c.b16 %v138, %v137
  %v163 = vpack.c.b16 %v140, %v139
  %v164 = vpack.c.b16 %v142, %v141
  %v165 = vpack.c.b16 %v144, %v143
  %v166 = vpack.c.b16 %v146, %v145
  %v167 = vpack.c.b16 %v148, %v147
  %v168 = vpack.c.b16 %v150, %v149
  %vm187 = vcmask 261120
  %v189 = vsel %vm187, %v76, 0
  %191 = vmatpush.bf16.msra.mxu0 %v158
  %192 = vmatpush.bf16.msra.mxu0 %v157
  %193 = vmatpush.bf16.msra.mxu0 %v156
  %194 = vmatpush.bf16.msra.mxu0 %v155
  %195 = vmatpush.bf16.msra.mxu0 %v154
  %196 = vmatpush.bf16.msra.mxu0 %v153
  %197 = vmatpush.bf16.msra.mxu0 %v152
  %198 = vmatpush.bf16.msra.mxu0 %v151
  %199 = vmatmul.bf16.gmra.mxu0 %v74
  %v200 = vpop.f32.mrf.mxu0
  %v201 = vadd.f32 %v67, %v200
  %v202 = vpop.f32.mrf.mxu0
  %203 = vdwg.mxu0
  %204 = vmatpush.bf16.msra.mxu0 %v166
  %205 = vmatpush.bf16.msra.mxu0 %v165
  %206 = vmatpush.bf16.msra.mxu0 %v164
  %207 = vmatpush.bf16.msra.mxu0 %v163
  %208 = vmatpush.bf16.msra.mxu0 %v162
  %209 = vmatpush.bf16.msra.mxu0 %v161
  %210 = vmatpush.bf16.msra.mxu0 %v160
  %211 = vmatpush.bf16.msra.mxu0 %v159
  %212 = vmatmul.bf16.gmra.mxu0 %v75
  %v213 = vpop.f32.mrf.mxu0
  %v214 = vadd.f32 %v201, %v213
  %v215 = vpop.f32.mrf.mxu0
  %216 = vdwg.mxu0
  %217 = vmatpush.bf16.msra.mxu0 0
  %218 = vmatpush.bf16.msra.mxu0 0
  %219 = vmatpush.bf16.msra.mxu0 0
  %220 = vmatpush.bf16.msra.mxu0 0
  %221 = vmatpush.bf16.msra.mxu0 0
  %222 = vmatpush.bf16.msra.mxu0 0
  %223 = vmatpush.bf16.msra.mxu0 %v168
  %224 = vmatpush.bf16.msra.mxu0 %v167
  %225 = vmatmul.bf16.gmra.mxu0 %v189
  %v226 = vpop.f32.mrf.mxu0
  %v227 = vadd.f32 %v214, %v226
  %v228 = vpop.f32.mrf.mxu0
  %229 = vdwg.mxu0
  %v230 = vmax.f32 %v227, 0.0
  %v231 = vpack.c.bf16 %v230, %v230
  %v232 = vld [vmem:[%s0 + $0xc] sm:$0xff]
  %v233 = vld [vmem:[%s0 + $0x14] sm:$0xf]
  %v236 = vunpack.c.l.b16 %v232
  %v237 = vunpack.c.h.b16 %v232
  %v238 = vunpack.c.l.b16 %v233
  %v239 = vpack.c.b16 %v236, %v236
  %v240 = vpack.c.b16 %v237, %v237
  %v241 = vpack.c.b16 %v238, %v238
  %v245 = vsel %vm187, %v241, 0
  %247 = vmatpush.bf16.msra.mxu0 %v158
  %248 = vmatpush.bf16.msra.mxu0 %v157
  %249 = vmatpush.bf16.msra.mxu0 %v156
  %250 = vmatpush.bf16.msra.mxu0 %v155
  %251 = vmatpush.bf16.msra.mxu0 %v154
  %252 = vmatpush.bf16.msra.mxu0 %v153
  %253 = vmatpush.bf16.msra.mxu0 %v152
  %254 = vmatpush.bf16.msra.mxu0 %v151
  %255 = vmatmul.bf16.gmra.mxu0 %v239
  %v256 = vpop.f32.mrf.mxu0
  %v257 = vadd.f32 %v67, %v256
  %v258 = vpop.f32.mrf.mxu0
  %259 = vdwg.mxu0
  %260 = vmatpush.bf16.msra.mxu0 %v166
  %261 = vmatpush.bf16.msra.mxu0 %v165
  %262 = vmatpush.bf16.msra.mxu0 %v164
  %263 = vmatpush.bf16.msra.mxu0 %v163
  %264 = vmatpush.bf16.msra.mxu0 %v162
  %265 = vmatpush.bf16.msra.mxu0 %v161
  %266 = vmatpush.bf16.msra.mxu0 %v160
  %267 = vmatpush.bf16.msra.mxu0 %v159
  %268 = vmatmul.bf16.gmra.mxu0 %v240
  %v269 = vpop.f32.mrf.mxu0
  %v270 = vadd.f32 %v257, %v269
  %v271 = vpop.f32.mrf.mxu0
  %272 = vdwg.mxu0
  %273 = vmatpush.bf16.msra.mxu0 0
  %274 = vmatpush.bf16.msra.mxu0 0
  %275 = vmatpush.bf16.msra.mxu0 0
  %276 = vmatpush.bf16.msra.mxu0 0
  %277 = vmatpush.bf16.msra.mxu0 0
  %278 = vmatpush.bf16.msra.mxu0 0
  %279 = vmatpush.bf16.msra.mxu0 %v168
  %280 = vmatpush.bf16.msra.mxu0 %v167
  %281 = vmatmul.bf16.gmra.mxu0 %v245
  %v282 = vpop.f32.mrf.mxu0
  %v283 = vadd.f32 %v270, %v282
  %v284 = vpop.f32.mrf.mxu0
  %285 = vdwg.mxu0
  %v286 = vmax.f32 %v283, 0.0
  %v287 = vpack.c.bf16 %v286, %v286
  %v288 = vld [vmem:[%s0 + $0x18] sm:$0xff]
  %v289 = vld [vmem:[%s0 + $0x20] sm:$0xf]
  %v292 = vunpack.c.l.b16 %v288
  %v293 = vunpack.c.h.b16 %v288
  %v294 = vunpack.c.l.b16 %v289
  %v295 = vpack.c.b16 %v292, %v292
  %v296 = vpack.c.b16 %v293, %v293
  %v297 = vpack.c.b16 %v294, %v294
  %v301 = vsel %vm187, %v297, 0
  %303 = vmatpush.bf16.msra.mxu0 %v158
  %304 = vmatpush.bf16.msra.mxu0 %v157
  %305 = vmatpush.bf16.msra.mxu0 %v156
  %306 = vmatpush.bf16.msra.mxu0 %v155
  %307 = vmatpush.bf16.msra.mxu0 %v154
  %308 = vmatpush.bf16.msra.mxu0 %v153
  %309 = vmatpush.bf16.msra.mxu0 %v152
  %310 = vmatpush.bf16.msra.mxu0 %v151
  %311 = vmatmul.bf16.gmra.mxu0 %v295
  %v312 = vpop.f32.mrf.mxu0
  %v313 = vadd.f32 %v67, %v312
  %v314 = vpop.f32.mrf.mxu0
  %315 = vdwg.mxu0
  %316 = vmatpush.bf16.msra.mxu0 %v166
  %317 = vmatpush.bf16.msra.mxu0 %v165
  %318 = vmatpush.bf16.msra.mxu0 %v164
  %319 = vmatpush.bf16.msra.mxu0 %v163
  %320 = vmatpush.bf16.msra.mxu0 %v162
  %321 = vmatpush.bf16.msra.mxu0 %v161
  %322 = vmatpush.bf16.msra.mxu0 %v160
  %323 = vmatpush.bf16.msra.mxu0 %v159
  %324 = vmatmul.bf16.gmra.mxu0 %v296
  %v325 = vpop.f32.mrf.mxu0
  %v326 = vadd.f32 %v313, %v325
  %v327 = vpop.f32.mrf.mxu0
  %328 = vdwg.mxu0
  %329 = vmatpush.bf16.msra.mxu0 0
  %330 = vmatpush.bf16.msra.mxu0 0
  %331 = vmatpush.bf16.msra.mxu0 0
  %332 = vmatpush.bf16.msra.mxu0 0
  %333 = vmatpush.bf16.msra.mxu0 0
  %334 = vmatpush.bf16.msra.mxu0 0
  %335 = vmatpush.bf16.msra.mxu0 %v168
  %336 = vmatpush.bf16.msra.mxu0 %v167
  %337 = vmatmul.bf16.gmra.mxu0 %v301
  %v338 = vpop.f32.mrf.mxu0
  %v339 = vadd.f32 %v326, %v338
  %v340 = vpop.f32.mrf.mxu0
  %341 = vdwg.mxu0
  %v342 = vmax.f32 %v339, 0.0
  %v343 = vpack.c.bf16 %v342, %v342
  %v344 = vld [vmem:[%s0 + $0x24] sm:$0xff]
  %v345 = vld [vmem:[%s0 + $0x2c] sm:$0xf]
  %v348 = vunpack.c.l.b16 %v344
  %v349 = vunpack.c.h.b16 %v344
  %v350 = vunpack.c.l.b16 %v345
  %v351 = vpack.c.b16 %v348, %v348
  %v352 = vpack.c.b16 %v349, %v349
  %v353 = vpack.c.b16 %v350, %v350
  %v357 = vsel %vm187, %v353, 0
  %359 = vmatpush.bf16.msra.mxu0 %v158
  %360 = vmatpush.bf16.msra.mxu0 %v157
  %361 = vmatpush.bf16.msra.mxu0 %v156
  %362 = vmatpush.bf16.msra.mxu0 %v155
  %363 = vmatpush.bf16.msra.mxu0 %v154
  %364 = vmatpush.bf16.msra.mxu0 %v153
  %365 = vmatpush.bf16.msra.mxu0 %v152
  %366 = vmatpush.bf16.msra.mxu0 %v151
  %367 = vmatmul.bf16.gmra.mxu0 %v351
  %v368 = vpop.f32.mrf.mxu0
  %v369 = vadd.f32 %v67, %v368
  %v370 = vpop.f32.mrf.mxu0
  %371 = vdwg.mxu0
  %372 = vmatpush.bf16.msra.mxu0 %v166
  %373 = vmatpush.bf16.msra.mxu0 %v165
  %374 = vmatpush.bf16.msra.mxu0 %v164
  %375 = vmatpush.bf16.msra.mxu0 %v163
  %376 = vmatpush.bf16.msra.mxu0 %v162
  %377 = vmatpush.bf16.msra.mxu0 %v161
  %378 = vmatpush.bf16.msra.mxu0 %v160
  %379 = vmatpush.bf16.msra.mxu0 %v159
  %380 = vmatmul.bf16.gmra.mxu0 %v352
  %v381 = vpop.f32.mrf.mxu0
  %v382 = vadd.f32 %v369, %v381
  %v383 = vpop.f32.mrf.mxu0
  %384 = vdwg.mxu0
  %385 = vmatpush.bf16.msra.mxu0 0
  %386 = vmatpush.bf16.msra.mxu0 0
  %387 = vmatpush.bf16.msra.mxu0 0
  %388 = vmatpush.bf16.msra.mxu0 0
  %389 = vmatpush.bf16.msra.mxu0 0
  %390 = vmatpush.bf16.msra.mxu0 0
  %391 = vmatpush.bf16.msra.mxu0 %v168
  %392 = vmatpush.bf16.msra.mxu0 %v167
  %393 = vmatmul.bf16.gmra.mxu0 %v357
  %v394 = vpop.f32.mrf.mxu0
  %v395 = vadd.f32 %v382, %v394
  %v396 = vpop.f32.mrf.mxu0
  %397 = vdwg.mxu0
  %v398 = vmax.f32 %v395, 0.0
  %v399 = vpack.c.bf16 %v398, %v398
  %v400 = vld [vmem:[%s0 + $0x30] sm:$0xff]
  %v401 = vld [vmem:[%s0 + $0x38] sm:$0xf]
  %v404 = vunpack.c.l.b16 %v400
  %v405 = vunpack.c.h.b16 %v400
  %v406 = vunpack.c.l.b16 %v401
  %v407 = vpack.c.b16 %v404, %v404
  %v408 = vpack.c.b16 %v405, %v405
  %v409 = vpack.c.b16 %v406, %v406
  %v413 = vsel %vm187, %v409, 0
  %415 = vmatpush.bf16.msra.mxu0 %v158
  %416 = vmatpush.bf16.msra.mxu0 %v157
  %417 = vmatpush.bf16.msra.mxu0 %v156
  %418 = vmatpush.bf16.msra.mxu0 %v155
  %419 = vmatpush.bf16.msra.mxu0 %v154
  %420 = vmatpush.bf16.msra.mxu0 %v153
  %421 = vmatpush.bf16.msra.mxu0 %v152
  %422 = vmatpush.bf16.msra.mxu0 %v151
  %423 = vmatmul.bf16.gmra.mxu0 %v407
  %v424 = vpop.f32.mrf.mxu0
  %v425 = vadd.f32 %v67, %v424
  %v426 = vpop.f32.mrf.mxu0
  %427 = vdwg.mxu0
  %428 = vmatpush.bf16.msra.mxu0 %v166
  %429 = vmatpush.bf16.msra.mxu0 %v165
  %430 = vmatpush.bf16.msra.mxu0 %v164
  %431 = vmatpush.bf16.msra.mxu0 %v163
  %432 = vmatpush.bf16.msra.mxu0 %v162
  %433 = vmatpush.bf16.msra.mxu0 %v161
  %434 = vmatpush.bf16.msra.mxu0 %v160
  %435 = vmatpush.bf16.msra.mxu0 %v159
  %436 = vmatmul.bf16.gmra.mxu0 %v408
  %v437 = vpop.f32.mrf.mxu0
  %v438 = vadd.f32 %v425, %v437
  %v439 = vpop.f32.mrf.mxu0
  %440 = vdwg.mxu0
  %441 = vmatpush.bf16.msra.mxu0 0
  %442 = vmatpush.bf16.msra.mxu0 0
  %443 = vmatpush.bf16.msra.mxu0 0
  %444 = vmatpush.bf16.msra.mxu0 0
  %445 = vmatpush.bf16.msra.mxu0 0
  %446 = vmatpush.bf16.msra.mxu0 0
  %447 = vmatpush.bf16.msra.mxu0 %v168
  %448 = vmatpush.bf16.msra.mxu0 %v167
  %449 = vmatmul.bf16.gmra.mxu0 %v413
  %v450 = vpop.f32.mrf.mxu0
  %v451 = vadd.f32 %v438, %v450
  %v452 = vpop.f32.mrf.mxu0
  %453 = vdwg.mxu0
  %v454 = vmax.f32 %v451, 0.0
  %v455 = vpack.c.bf16 %v454, %v454
  %v456 = vld [vmem:[%s0 + $0x3c] sm:$0xff]
  %v457 = vld [vmem:[%s0 + $0x44] sm:$0xf]
  %v460 = vunpack.c.l.b16 %v456
  %v461 = vunpack.c.h.b16 %v456
  %v462 = vunpack.c.l.b16 %v457
  %v463 = vpack.c.b16 %v460, %v460
  %v464 = vpack.c.b16 %v461, %v461
  %v465 = vpack.c.b16 %v462, %v462
  %v469 = vsel %vm187, %v465, 0
  %471 = vmatpush.bf16.msra.mxu0 %v158
  %472 = vmatpush.bf16.msra.mxu0 %v157
  %473 = vmatpush.bf16.msra.mxu0 %v156
  %474 = vmatpush.bf16.msra.mxu0 %v155
  %475 = vmatpush.bf16.msra.mxu0 %v154
  %476 = vmatpush.bf16.msra.mxu0 %v153
  %477 = vmatpush.bf16.msra.mxu0 %v152
  %478 = vmatpush.bf16.msra.mxu0 %v151
  %479 = vmatmul.bf16.gmra.mxu0 %v463
  %v480 = vpop.f32.mrf.mxu0
  %v481 = vadd.f32 %v67, %v480
  %v482 = vpop.f32.mrf.mxu0
  %483 = vdwg.mxu0
  %484 = vmatpush.bf16.msra.mxu0 %v166
  %485 = vmatpush.bf16.msra.mxu0 %v165
  %486 = vmatpush.bf16.msra.mxu0 %v164
  %487 = vmatpush.bf16.msra.mxu0 %v163
  %488 = vmatpush.bf16.msra.mxu0 %v162
  %489 = vmatpush.bf16.msra.mxu0 %v161
  %490 = vmatpush.bf16.msra.mxu0 %v160
  %491 = vmatpush.bf16.msra.mxu0 %v159
  %492 = vmatmul.bf16.gmra.mxu0 %v464
  %v493 = vpop.f32.mrf.mxu0
  %v494 = vadd.f32 %v481, %v493
  %v495 = vpop.f32.mrf.mxu0
  %496 = vdwg.mxu0
  %497 = vmatpush.bf16.msra.mxu0 0
  %498 = vmatpush.bf16.msra.mxu0 0
  %499 = vmatpush.bf16.msra.mxu0 0
  %500 = vmatpush.bf16.msra.mxu0 0
  %501 = vmatpush.bf16.msra.mxu0 0
  %502 = vmatpush.bf16.msra.mxu0 0
  %503 = vmatpush.bf16.msra.mxu0 %v168
  %504 = vmatpush.bf16.msra.mxu0 %v167
  %505 = vmatmul.bf16.gmra.mxu0 %v469
  %v506 = vpop.f32.mrf.mxu0
  %v507 = vadd.f32 %v494, %v506
  %v508 = vpop.f32.mrf.mxu0
  %509 = vdwg.mxu0
  %v510 = vmax.f32 %v507, 0.0
  %v511 = vpack.c.bf16 %v510, %v510
  %v512 = vld [vmem:[%s0 + $0x48] sm:$0xff]
  %v513 = vld [vmem:[%s0 + $0x50] sm:$0xf]
  %v516 = vunpack.c.l.b16 %v512
  %v517 = vunpack.c.h.b16 %v512
  %v518 = vunpack.c.l.b16 %v513
  %v519 = vpack.c.b16 %v516, %v516
  %v520 = vpack.c.b16 %v517, %v517
  %v521 = vpack.c.b16 %v518, %v518
  %v525 = vsel %vm187, %v521, 0
  %527 = vmatpush.bf16.msra.mxu0 %v158
  %528 = vmatpush.bf16.msra.mxu0 %v157
  %529 = vmatpush.bf16.msra.mxu0 %v156
  %530 = vmatpush.bf16.msra.mxu0 %v155
  %531 = vmatpush.bf16.msra.mxu0 %v154
  %532 = vmatpush.bf16.msra.mxu0 %v153
  %533 = vmatpush.bf16.msra.mxu0 %v152
  %534 = vmatpush.bf16.msra.mxu0 %v151
  %535 = vmatmul.bf16.gmra.mxu0 %v519
  %v536 = vpop.f32.mrf.mxu0
  %v537 = vadd.f32 %v67, %v536
  %v538 = vpop.f32.mrf.mxu0
  %539 = vdwg.mxu0
  %540 = vmatpush.bf16.msra.mxu0 %v166
  %541 = vmatpush.bf16.msra.mxu0 %v165
  %542 = vmatpush.bf16.msra.mxu0 %v164
  %543 = vmatpush.bf16.msra.mxu0 %v163
  %544 = vmatpush.bf16.msra.mxu0 %v162
  %545 = vmatpush.bf16.msra.mxu0 %v161
  %546 = vmatpush.bf16.msra.mxu0 %v160
  %547 = vmatpush.bf16.msra.mxu0 %v159
  %548 = vmatmul.bf16.gmra.mxu0 %v520
  %v549 = vpop.f32.mrf.mxu0
  %v550 = vadd.f32 %v537, %v549
  %v551 = vpop.f32.mrf.mxu0
  %552 = vdwg.mxu0
  %553 = vmatpush.bf16.msra.mxu0 0
  %554 = vmatpush.bf16.msra.mxu0 0
  %555 = vmatpush.bf16.msra.mxu0 0
  %556 = vmatpush.bf16.msra.mxu0 0
  %557 = vmatpush.bf16.msra.mxu0 0
  %558 = vmatpush.bf16.msra.mxu0 0
  %559 = vmatpush.bf16.msra.mxu0 %v168
  %560 = vmatpush.bf16.msra.mxu0 %v167
  %561 = vmatmul.bf16.gmra.mxu0 %v525
  %v562 = vpop.f32.mrf.mxu0
  %v563 = vadd.f32 %v550, %v562
  %v564 = vpop.f32.mrf.mxu0
  %565 = vdwg.mxu0
  %v566 = vmax.f32 %v563, 0.0
  %v567 = vpack.c.bf16 %v566, %v566
  %v568 = vld [vmem:[%s0 + $0x54] sm:$0xff]
  %v569 = vld [vmem:[%s0 + $0x5c] sm:$0xf]
  %v572 = vunpack.c.l.b16 %v568
  %v573 = vunpack.c.h.b16 %v568
  %v574 = vunpack.c.l.b16 %v569
  %v575 = vpack.c.b16 %v572, %v572
  %v576 = vpack.c.b16 %v573, %v573
  %v577 = vpack.c.b16 %v574, %v574
  %v581 = vsel %vm187, %v577, 0
  %583 = vmatpush.bf16.msra.mxu0 %v158
  %584 = vmatpush.bf16.msra.mxu0 %v157
  %585 = vmatpush.bf16.msra.mxu0 %v156
  %586 = vmatpush.bf16.msra.mxu0 %v155
  %587 = vmatpush.bf16.msra.mxu0 %v154
  %588 = vmatpush.bf16.msra.mxu0 %v153
  %589 = vmatpush.bf16.msra.mxu0 %v152
  %590 = vmatpush.bf16.msra.mxu0 %v151
  %591 = vmatmul.bf16.gmra.mxu0 %v575
  %v592 = vpop.f32.mrf.mxu0
  %v593 = vadd.f32 %v67, %v592
  %v594 = vpop.f32.mrf.mxu0
  %595 = vdwg.mxu0
  %596 = vmatpush.bf16.msra.mxu0 %v166
  %597 = vmatpush.bf16.msra.mxu0 %v165
  %598 = vmatpush.bf16.msra.mxu0 %v164
  %599 = vmatpush.bf16.msra.mxu0 %v163
  %600 = vmatpush.bf16.msra.mxu0 %v162
  %601 = vmatpush.bf16.msra.mxu0 %v161
  %602 = vmatpush.bf16.msra.mxu0 %v160
  %603 = vmatpush.bf16.msra.mxu0 %v159
  %604 = vmatmul.bf16.gmra.mxu0 %v576
  %v605 = vpop.f32.mrf.mxu0
  %v606 = vadd.f32 %v593, %v605
  %v607 = vpop.f32.mrf.mxu0
  %608 = vdwg.mxu0
  %609 = vmatpush.bf16.msra.mxu0 0
  %610 = vmatpush.bf16.msra.mxu0 0
  %611 = vmatpush.bf16.msra.mxu0 0
  %612 = vmatpush.bf16.msra.mxu0 0
  %613 = vmatpush.bf16.msra.mxu0 0
  %614 = vmatpush.bf16.msra.mxu0 0
  %615 = vmatpush.bf16.msra.mxu0 %v168
  %616 = vmatpush.bf16.msra.mxu0 %v167
  %617 = vmatmul.bf16.gmra.mxu0 %v581
  %v618 = vpop.f32.mrf.mxu0
  %v619 = vadd.f32 %v606, %v618
  %v620 = vpop.f32.mrf.mxu0
  %621 = vdwg.mxu0
  %v622 = vmax.f32 %v619, 0.0
  %v623 = vpack.c.bf16 %v622, %v622
  %v624 = vld [vmem:[%s0 + $0x60] sm:$0xff]
  %v625 = vld [vmem:[%s0 + $0x68] sm:$0xf]
  %v628 = vunpack.c.l.b16 %v624
  %v629 = vunpack.c.h.b16 %v624
  %v630 = vunpack.c.l.b16 %v625
  %v631 = vpack.c.b16 %v628, %v628
  %v632 = vpack.c.b16 %v629, %v629
  %v633 = vpack.c.b16 %v630, %v630
  %v637 = vsel %vm187, %v633, 0
  %639 = vmatpush.bf16.msra.mxu0 %v158
  %640 = vmatpush.bf16.msra.mxu0 %v157
  %641 = vmatpush.bf16.msra.mxu0 %v156
  %642 = vmatpush.bf16.msra.mxu0 %v155
  %643 = vmatpush.bf16.msra.mxu0 %v154
  %644 = vmatpush.bf16.msra.mxu0 %v153
  %645 = vmatpush.bf16.msra.mxu0 %v152
  %646 = vmatpush.bf16.msra.mxu0 %v151
  %647 = vmatmul.bf16.gmra.mxu0 %v631
  %v648 = vpop.f32.mrf.mxu0
  %v649 = vadd.f32 %v67, %v648
  %v650 = vpop.f32.mrf.mxu0
  %651 = vdwg.mxu0
  %652 = vmatpush.bf16.msra.mxu0 %v166
  %653 = vmatpush.bf16.msra.mxu0 %v165
  %654 = vmatpush.bf16.msra.mxu0 %v164
  %655 = vmatpush.bf16.msra.mxu0 %v163
  %656 = vmatpush.bf16.msra.mxu0 %v162
  %657 = vmatpush.bf16.msra.mxu0 %v161
  %658 = vmatpush.bf16.msra.mxu0 %v160
  %659 = vmatpush.bf16.msra.mxu0 %v159
  %660 = vmatmul.bf16.gmra.mxu0 %v632
  %v661 = vpop.f32.mrf.mxu0
  %v662 = vadd.f32 %v649, %v661
  %v663 = vpop.f32.mrf.mxu0
  %664 = vdwg.mxu0
  %665 = vmatpush.bf16.msra.mxu0 0
  %666 = vmatpush.bf16.msra.mxu0 0
  %667 = vmatpush.bf16.msra.mxu0 0
  %668 = vmatpush.bf16.msra.mxu0 0
  %669 = vmatpush.bf16.msra.mxu0 0
  %670 = vmatpush.bf16.msra.mxu0 0
  %671 = vmatpush.bf16.msra.mxu0 %v168
  %672 = vmatpush.bf16.msra.mxu0 %v167
  %673 = vmatmul.bf16.gmra.mxu0 %v637
  %v674 = vpop.f32.mrf.mxu0
  %v675 = vadd.f32 %v662, %v674
  %v676 = vpop.f32.mrf.mxu0
  %677 = vdwg.mxu0
  %v678 = vmax.f32 %v675, 0.0
  %v679 = vpack.c.bf16 %v678, %v678
  %v680 = vld [vmem:[%s0 + $0x6c] sm:$0xff]
  %v681 = vld [vmem:[%s0 + $0x74] sm:$0xf]
  %v684 = vunpack.c.l.b16 %v680
  %v685 = vunpack.c.h.b16 %v680
  %v686 = vunpack.c.l.b16 %v681
  %v687 = vpack.c.b16 %v684, %v684
  %v688 = vpack.c.b16 %v685, %v685
  %v689 = vpack.c.b16 %v686, %v686
  %v693 = vsel %vm187, %v689, 0
  %695 = vmatpush.bf16.msra.mxu0 %v158
  %696 = vmatpush.bf16.msra.mxu0 %v157
  %697 = vmatpush.bf16.msra.mxu0 %v156
  %698 = vmatpush.bf16.msra.mxu0 %v155
  %699 = vmatpush.bf16.msra.mxu0 %v154
  %700 = vmatpush.bf16.msra.mxu0 %v153
  %701 = vmatpush.bf16.msra.mxu0 %v152
  %702 = vmatpush.bf16.msra.mxu0 %v151
  %703 = vmatmul.bf16.gmra.mxu0 %v687
  %v704 = vpop.f32.mrf.mxu0
  %v705 = vadd.f32 %v67, %v704
  %v706 = vpop.f32.mrf.mxu0
  %707 = vdwg.mxu0
  %708 = vmatpush.bf16.msra.mxu0 %v166
  %709 = vmatpush.bf16.msra.mxu0 %v165
  %710 = vmatpush.bf16.msra.mxu0 %v164
  %711 = vmatpush.bf16.msra.mxu0 %v163
  %712 = vmatpush.bf16.msra.mxu0 %v162
  %713 = vmatpush.bf16.msra.mxu0 %v161
  %714 = vmatpush.bf16.msra.mxu0 %v160
  %715 = vmatpush.bf16.msra.mxu0 %v159
  %716 = vmatmul.bf16.gmra.mxu0 %v688
  %v717 = vpop.f32.mrf.mxu0
  %v718 = vadd.f32 %v705, %v717
  %v719 = vpop.f32.mrf.mxu0
  %720 = vdwg.mxu0
  %721 = vmatpush.bf16.msra.mxu0 0
  %722 = vmatpush.bf16.msra.mxu0 0
  %723 = vmatpush.bf16.msra.mxu0 0
  %724 = vmatpush.bf16.msra.mxu0 0
  %725 = vmatpush.bf16.msra.mxu0 0
  %726 = vmatpush.bf16.msra.mxu0 0
  %727 = vmatpush.bf16.msra.mxu0 %v168
  %728 = vmatpush.bf16.msra.mxu0 %v167
  %729 = vmatmul.bf16.gmra.mxu0 %v693
  %v730 = vpop.f32.mrf.mxu0
  %v731 = vadd.f32 %v718, %v730
  %v732 = vpop.f32.mrf.mxu0
  %733 = vdwg.mxu0
  %v734 = vmax.f32 %v731, 0.0
  %v735 = vpack.c.bf16 %v734, %v734
  %v736 = vld [vmem:[%s0 + $0x78] sm:$0xff]
  %v737 = vld [vmem:[%s0 + $0x80] sm:$0xf]
  %v740 = vunpack.c.l.b16 %v736
  %v741 = vunpack.c.h.b16 %v736
  %v742 = vunpack.c.l.b16 %v737
  %v743 = vpack.c.b16 %v740, %v740
  %v744 = vpack.c.b16 %v741, %v741
  %v745 = vpack.c.b16 %v742, %v742
  %v749 = vsel %vm187, %v745, 0
  %751 = vmatpush.bf16.msra.mxu0 %v158
  %752 = vmatpush.bf16.msra.mxu0 %v157
  %753 = vmatpush.bf16.msra.mxu0 %v156
  %754 = vmatpush.bf16.msra.mxu0 %v155
  %755 = vmatpush.bf16.msra.mxu0 %v154
  %756 = vmatpush.bf16.msra.mxu0 %v153
  %757 = vmatpush.bf16.msra.mxu0 %v152
  %758 = vmatpush.bf16.msra.mxu0 %v151
  %759 = vmatmul.bf16.gmra.mxu0 %v743
  %v760 = vpop.f32.mrf.mxu0
  %v761 = vadd.f32 %v67, %v760
  %v762 = vpop.f32.mrf.mxu0
  %763 = vdwg.mxu0
  %764 = vmatpush.bf16.msra.mxu0 %v166
  %765 = vmatpush.bf16.msra.mxu0 %v165
  %766 = vmatpush.bf16.msra.mxu0 %v164
  %767 = vmatpush.bf16.msra.mxu0 %v163
  %768 = vmatpush.bf16.msra.mxu0 %v162
  %769 = vmatpush.bf16.msra.mxu0 %v161
  %770 = vmatpush.bf16.msra.mxu0 %v160
  %771 = vmatpush.bf16.msra.mxu0 %v159
  %772 = vmatmul.bf16.gmra.mxu0 %v744
  %v773 = vpop.f32.mrf.mxu0
  %v774 = vadd.f32 %v761, %v773
  %v775 = vpop.f32.mrf.mxu0
  %776 = vdwg.mxu0
  %777 = vmatpush.bf16.msra.mxu0 0
  %778 = vmatpush.bf16.msra.mxu0 0
  %779 = vmatpush.bf16.msra.mxu0 0
  %780 = vmatpush.bf16.msra.mxu0 0
  %781 = vmatpush.bf16.msra.mxu0 0
  %782 = vmatpush.bf16.msra.mxu0 0
  %783 = vmatpush.bf16.msra.mxu0 %v168
  %784 = vmatpush.bf16.msra.mxu0 %v167
  %785 = vmatmul.bf16.gmra.mxu0 %v749
  %v786 = vpop.f32.mrf.mxu0
  %v787 = vadd.f32 %v774, %v786
  %v788 = vpop.f32.mrf.mxu0
  %789 = vdwg.mxu0
  %v790 = vmax.f32 %v787, 0.0
  %v791 = vpack.c.bf16 %v790, %v790
  %v792 = vld [vmem:[%s0 + $0x84] sm:$0xff]
  %v793 = vld [vmem:[%s0 + $0x8c] sm:$0xf]
  %v796 = vunpack.c.l.b16 %v792
  %v797 = vunpack.c.h.b16 %v792
  %v798 = vunpack.c.l.b16 %v793
  %v799 = vpack.c.b16 %v796, %v796
  %v800 = vpack.c.b16 %v797, %v797
  %v801 = vpack.c.b16 %v798, %v798
  %v805 = vsel %vm187, %v801, 0
  %807 = vmatpush.bf16.msra.mxu0 %v158
  %808 = vmatpush.bf16.msra.mxu0 %v157
  %809 = vmatpush.bf16.msra.mxu0 %v156
  %810 = vmatpush.bf16.msra.mxu0 %v155
  %811 = vmatpush.bf16.msra.mxu0 %v154
  %812 = vmatpush.bf16.msra.mxu0 %v153
  %813 = vmatpush.bf16.msra.mxu0 %v152
  %814 = vmatpush.bf16.msra.mxu0 %v151
  %815 = vmatmul.bf16.gmra.mxu0 %v799
  %v816 = vpop.f32.mrf.mxu0
  %v817 = vadd.f32 %v67, %v816
  %v818 = vpop.f32.mrf.mxu0
  %819 = vdwg.mxu0
  %820 = vmatpush.bf16.msra.mxu0 %v166
  %821 = vmatpush.bf16.msra.mxu0 %v165
  %822 = vmatpush.bf16.msra.mxu0 %v164
  %823 = vmatpush.bf16.msra.mxu0 %v163
  %824 = vmatpush.bf16.msra.mxu0 %v162
  %825 = vmatpush.bf16.msra.mxu0 %v161
  %826 = vmatpush.bf16.msra.mxu0 %v160
  %827 = vmatpush.bf16.msra.mxu0 %v159
  %828 = vmatmul.bf16.gmra.mxu0 %v800
  %v829 = vpop.f32.mrf.mxu0
  %v830 = vadd.f32 %v817, %v829
  %v831 = vpop.f32.mrf.mxu0
  %832 = vdwg.mxu0
  %833 = vmatpush.bf16.msra.mxu0 0
  %834 = vmatpush.bf16.msra.mxu0 0
  %835 = vmatpush.bf16.msra.mxu0 0
  %836 = vmatpush.bf16.msra.mxu0 0
  %837 = vmatpush.bf16.msra.mxu0 0
  %838 = vmatpush.bf16.msra.mxu0 0
  %839 = vmatpush.bf16.msra.mxu0 %v168
  %840 = vmatpush.bf16.msra.mxu0 %v167
  %841 = vmatmul.bf16.gmra.mxu0 %v805
  %v842 = vpop.f32.mrf.mxu0
  %v843 = vadd.f32 %v830, %v842
  %v844 = vpop.f32.mrf.mxu0
  %845 = vdwg.mxu0
  %v846 = vmax.f32 %v843, 0.0
  %v847 = vpack.c.bf16 %v846, %v846
  %v848 = vld [vmem:[%s0 + $0x90] sm:$0xff]
  %v849 = vld [vmem:[%s0 + $0x98] sm:$0xf]
  %v852 = vunpack.c.l.b16 %v848
  %v853 = vunpack.c.h.b16 %v848
  %v854 = vunpack.c.l.b16 %v849
  %v855 = vpack.c.b16 %v852, %v852
  %v856 = vpack.c.b16 %v853, %v853
  %v857 = vpack.c.b16 %v854, %v854
  %v861 = vsel %vm187, %v857, 0
  %863 = vmatpush.bf16.msra.mxu0 %v158
  %864 = vmatpush.bf16.msra.mxu0 %v157
  %865 = vmatpush.bf16.msra.mxu0 %v156
  %866 = vmatpush.bf16.msra.mxu0 %v155
  %867 = vmatpush.bf16.msra.mxu0 %v154
  %868 = vmatpush.bf16.msra.mxu0 %v153
  %869 = vmatpush.bf16.msra.mxu0 %v152
  %870 = vmatpush.bf16.msra.mxu0 %v151
  %871 = vmatmul.bf16.gmra.mxu0 %v855
  %v872 = vpop.f32.mrf.mxu0
  %v873 = vadd.f32 %v67, %v872
  %v874 = vpop.f32.mrf.mxu0
  %875 = vdwg.mxu0
  %876 = vmatpush.bf16.msra.mxu0 %v166
  %877 = vmatpush.bf16.msra.mxu0 %v165
  %878 = vmatpush.bf16.msra.mxu0 %v164
  %879 = vmatpush.bf16.msra.mxu0 %v163
  %880 = vmatpush.bf16.msra.mxu0 %v162
  %881 = vmatpush.bf16.msra.mxu0 %v161
  %882 = vmatpush.bf16.msra.mxu0 %v160
  %883 = vmatpush.bf16.msra.mxu0 %v159
  %884 = vmatmul.bf16.gmra.mxu0 %v856
  %v885 = vpop.f32.mrf.mxu0
  %v886 = vadd.f32 %v873, %v885
  %v887 = vpop.f32.mrf.mxu0
  %888 = vdwg.mxu0
  %889 = vmatpush.bf16.msra.mxu0 0
  %890 = vmatpush.bf16.msra.mxu0 0
  %891 = vmatpush.bf16.msra.mxu0 0
  %892 = vmatpush.bf16.msra.mxu0 0
  %893 = vmatpush.bf16.msra.mxu0 0
  %894 = vmatpush.bf16.msra.mxu0 0
  %895 = vmatpush.bf16.msra.mxu0 %v168
  %896 = vmatpush.bf16.msra.mxu0 %v167
  %897 = vmatmul.bf16.gmra.mxu0 %v861
  %v898 = vpop.f32.mrf.mxu0
  %v899 = vadd.f32 %v886, %v898
  %v900 = vpop.f32.mrf.mxu0
  %901 = vdwg.mxu0
  %v902 = vmax.f32 %v899, 0.0
  %v903 = vpack.c.bf16 %v902, %v902
  %v904 = vld [vmem:[%s0 + $0x9c] sm:$0xff]
  %v905 = vld [vmem:[%s0 + $0xa4] sm:$0xf]
  %v908 = vunpack.c.l.b16 %v904
  %v909 = vunpack.c.h.b16 %v904
  %v910 = vunpack.c.l.b16 %v905
  %v911 = vpack.c.b16 %v908, %v908
  %v912 = vpack.c.b16 %v909, %v909
  %v913 = vpack.c.b16 %v910, %v910
  %v917 = vsel %vm187, %v913, 0
  %919 = vmatpush.bf16.msra.mxu0 %v158
  %920 = vmatpush.bf16.msra.mxu0 %v157
  %921 = vmatpush.bf16.msra.mxu0 %v156
  %922 = vmatpush.bf16.msra.mxu0 %v155
  %923 = vmatpush.bf16.msra.mxu0 %v154
  %924 = vmatpush.bf16.msra.mxu0 %v153
  %925 = vmatpush.bf16.msra.mxu0 %v152
  %926 = vmatpush.bf16.msra.mxu0 %v151
  %927 = vmatmul.bf16.gmra.mxu0 %v911
  %v928 = vpop.f32.mrf.mxu0
  %v929 = vadd.f32 %v67, %v928
  %v930 = vpop.f32.mrf.mxu0
  %931 = vdwg.mxu0
  %932 = vmatpush.bf16.msra.mxu0 %v166
  %933 = vmatpush.bf16.msra.mxu0 %v165
  %934 = vmatpush.bf16.msra.mxu0 %v164
  %935 = vmatpush.bf16.msra.mxu0 %v163
  %936 = vmatpush.bf16.msra.mxu0 %v162
  %937 = vmatpush.bf16.msra.mxu0 %v161
  %938 = vmatpush.bf16.msra.mxu0 %v160
  %939 = vmatpush.bf16.msra.mxu0 %v159
  %940 = vmatmul.bf16.gmra.mxu0 %v912
  %v941 = vpop.f32.mrf.mxu0
  %v942 = vadd.f32 %v929, %v941
  %v943 = vpop.f32.mrf.mxu0
  %944 = vdwg.mxu0
  %945 = vmatpush.bf16.msra.mxu0 0
  %946 = vmatpush.bf16.msra.mxu0 0
  %947 = vmatpush.bf16.msra.mxu0 0
  %948 = vmatpush.bf16.msra.mxu0 0
  %949 = vmatpush.bf16.msra.mxu0 0
  %950 = vmatpush.bf16.msra.mxu0 0
  %951 = vmatpush.bf16.msra.mxu0 %v168
  %952 = vmatpush.bf16.msra.mxu0 %v167
  %953 = vmatmul.bf16.gmra.mxu0 %v917
  %v954 = vpop.f32.mrf.mxu0
  %v955 = vadd.f32 %v942, %v954
  %v956 = vpop.f32.mrf.mxu0
  %957 = vdwg.mxu0
  %v958 = vmax.f32 %v955, 0.0
  %v959 = vpack.c.bf16 %v958, %v958
  %v960 = vld [vmem:[%s0 + $0xa8] sm:$0xff]
  %v961 = vld [vmem:[%s0 + $0xb0] sm:$0xf]
  %v964 = vunpack.c.l.b16 %v960
  %v965 = vunpack.c.h.b16 %v960
  %v966 = vunpack.c.l.b16 %v961
  %v967 = vpack.c.b16 %v964, %v964
  %v968 = vpack.c.b16 %v965, %v965
  %v969 = vpack.c.b16 %v966, %v966
  %v973 = vsel %vm187, %v969, 0
  %975 = vmatpush.bf16.msra.mxu0 %v158
  %976 = vmatpush.bf16.msra.mxu0 %v157
  %977 = vmatpush.bf16.msra.mxu0 %v156
  %978 = vmatpush.bf16.msra.mxu0 %v155
  %979 = vmatpush.bf16.msra.mxu0 %v154
  %980 = vmatpush.bf16.msra.mxu0 %v153
  %981 = vmatpush.bf16.msra.mxu0 %v152
  %982 = vmatpush.bf16.msra.mxu0 %v151
  %983 = vmatmul.bf16.gmra.mxu0 %v967
  %v984 = vpop.f32.mrf.mxu0
  %v985 = vadd.f32 %v67, %v984
  %v986 = vpop.f32.mrf.mxu0
  %987 = vdwg.mxu0
  %988 = vmatpush.bf16.msra.mxu0 %v166
  %989 = vmatpush.bf16.msra.mxu0 %v165
  %990 = vmatpush.bf16.msra.mxu0 %v164
  %991 = vmatpush.bf16.msra.mxu0 %v163
  %992 = vmatpush.bf16.msra.mxu0 %v162
  %993 = vmatpush.bf16.msra.mxu0 %v161
  %994 = vmatpush.bf16.msra.mxu0 %v160
  %995 = vmatpush.bf16.msra.mxu0 %v159
  %996 = vmatmul.bf16.gmra.mxu0 %v968
  %v997 = vpop.f32.mrf.mxu0
  %v998 = vadd.f32 %v985, %v997
  %v999 = vpop.f32.mrf.mxu0
  %1000 = vdwg.mxu0
  %1001 = vmatpush.bf16.msra.mxu0 0
  %1002 = vmatpush.bf16.msra.mxu0 0
  %1003 = vmatpush.bf16.msra.mxu0 0
  %1004 = vmatpush.bf16.msra.mxu0 0
  %1005 = vmatpush.bf16.msra.mxu0 0
  %1006 = vmatpush.bf16.msra.mxu0 0
  %1007 = vmatpush.bf16.msra.mxu0 %v168
  %1008 = vmatpush.bf16.msra.mxu0 %v167
  %1009 = vmatmul.bf16.gmra.mxu0 %v973
  %v1010 = vpop.f32.mrf.mxu0
  %v1011 = vadd.f32 %v998, %v1010
  %v1012 = vpop.f32.mrf.mxu0
  %1013 = vdwg.mxu0
  %v1014 = vmax.f32 %v1011, 0.0
  %v1015 = vpack.c.bf16 %v1014, %v1014
  %v1016 = vld [vmem:[%s0 + $0xb4] sm:$0xff]
  %v1017 = vld [vmem:[%s0 + $0xbc] sm:$0xf]
  %v1020 = vunpack.c.l.b16 %v1016
  %v1021 = vunpack.c.h.b16 %v1016
  %v1022 = vunpack.c.l.b16 %v1017
  %v1023 = vpack.c.b16 %v1020, %v1020
  %v1024 = vpack.c.b16 %v1021, %v1021
  %v1025 = vpack.c.b16 %v1022, %v1022
  %v1029 = vsel %vm187, %v1025, 0
  %1031 = vmatpush.bf16.msra.mxu0 %v158
  %1032 = vmatpush.bf16.msra.mxu0 %v157
  %1033 = vmatpush.bf16.msra.mxu0 %v156
  %1034 = vmatpush.bf16.msra.mxu0 %v155
  %1035 = vmatpush.bf16.msra.mxu0 %v154
  %1036 = vmatpush.bf16.msra.mxu0 %v153
  %1037 = vmatpush.bf16.msra.mxu0 %v152
  %1038 = vmatpush.bf16.msra.mxu0 %v151
  %1039 = vmatmul.bf16.gmra.mxu0 %v1023
  %v1040 = vpop.f32.mrf.mxu0
  %v1041 = vadd.f32 %v67, %v1040
  %v1042 = vpop.f32.mrf.mxu0
  %1043 = vdwg.mxu0
  %1044 = vmatpush.bf16.msra.mxu0 %v166
  %1045 = vmatpush.bf16.msra.mxu0 %v165
  %1046 = vmatpush.bf16.msra.mxu0 %v164
  %1047 = vmatpush.bf16.msra.mxu0 %v163
  %1048 = vmatpush.bf16.msra.mxu0 %v162
  %1049 = vmatpush.bf16.msra.mxu0 %v161
  %1050 = vmatpush.bf16.msra.mxu0 %v160
  %1051 = vmatpush.bf16.msra.mxu0 %v159
  %1052 = vmatmul.bf16.gmra.mxu0 %v1024
  %v1053 = vpop.f32.mrf.mxu0
  %v1054 = vadd.f32 %v1041, %v1053
  %v1055 = vpop.f32.mrf.mxu0
  %1056 = vdwg.mxu0
  %1057 = vmatpush.bf16.msra.mxu0 0
  %1058 = vmatpush.bf16.msra.mxu0 0
  %1059 = vmatpush.bf16.msra.mxu0 0
  %1060 = vmatpush.bf16.msra.mxu0 0
  %1061 = vmatpush.bf16.msra.mxu0 0
  %1062 = vmatpush.bf16.msra.mxu0 0
  %1063 = vmatpush.bf16.msra.mxu0 %v168
  %1064 = vmatpush.bf16.msra.mxu0 %v167
  %1065 = vmatmul.bf16.gmra.mxu0 %v1029
  %v1066 = vpop.f32.mrf.mxu0
  %v1067 = vadd.f32 %v1054, %v1066
  %v1068 = vpop.f32.mrf.mxu0
  %1069 = vdwg.mxu0
  %v1070 = vmax.f32 %v1067, 0.0
  %v1071 = vpack.c.bf16 %v1070, %v1070
  %v1072 = vld [vmem:[%s3] sm:$0xf]
  %v1073 = vld [vmem:[%s3 + $0x4] sm:$0xf]
  %v1074 = vld [vmem:[%s3 + $0x8] sm:$0xf]
  %v1075 = vld [vmem:[%s3 + $0xc] sm:$0xf]
  %v1076 = vld [vmem:[%s3 + $0x10] sm:$0xf]
  %v1077 = vld [vmem:[%s3 + $0x14] sm:$0xf]
  %v1078 = vld [vmem:[%s3 + $0x18] sm:$0xf]
  %v1079 = vld [vmem:[%s3 + $0x1c] sm:$0xf]
  %v1080 = vld [vmem:[%s3 + $0x20] sm:$0xf]
  %v1081 = vld [vmem:[%s3 + $0x24] sm:$0xf]
  %v1082 = vld [vmem:[%s3 + $0x28] sm:$0xf]
  %v1083 = vld [vmem:[%s3 + $0x2c] sm:$0xf]
  %v1084 = vld [vmem:[%s3 + $0x30] sm:$0xf]
  %v1085 = vld [vmem:[%s3 + $0x34] sm:$0xf]
  %v1086 = vld [vmem:[%s3 + $0x38] sm:$0xf]
  %v1087 = vld [vmem:[%s3 + $0x3c] sm:$0xf]
  %v1088 = vld [vmem:[%s3 + $0x40] sm:$0xf]
  %v1089 = vld [vmem:[%s3 + $0x44] sm:$0xf]
  %v1090 = vld [vmem:[%s3 + $0x48] sm:$0xf]
  %v1091 = vld [vmem:[%s3 + $0x4c] sm:$0xf]
  %v1092 = vld [vmem:[%s3 + $0x50] sm:$0xf]
  %v1093 = vld [vmem:[%s3 + $0x54] sm:$0xf]
  %v1094 = vld [vmem:[%s3 + $0x58] sm:$0xf]
  %v1095 = vld [vmem:[%s3 + $0x5c] sm:$0xf]
  %v1096 = vld [vmem:[%s3 + $0x60] sm:$0xf]
  %v1097 = vld [vmem:[%s3 + $0x64] sm:$0xf]
  %v1098 = vld [vmem:[%s3 + $0x68] sm:$0xf]
  %v1099 = vld [vmem:[%s3 + $0x6c] sm:$0xf]
  %v1100 = vld [vmem:[%s3 + $0x70] sm:$0xf]
  %v1101 = vld [vmem:[%s3 + $0x74] sm:$0xf]
  %v1102 = vld [vmem:[%s3 + $0x78] sm:$0xf]
  %v1103 = vld [vmem:[%s3 + $0x7c] sm:$0xf]
  %v1104 = vld [vmem:[%s3 + $0x80] sm:$0xf]
  %v1105 = vld [vmem:[%s3 + $0x84] sm:$0xf]
  %v1106 = vld [vmem:[%s3 + $0x88] sm:$0xf]
  %v1107 = vld [vmem:[%s3 + $0x8c] sm:$0xf]
  %v1108 = vld [vmem:[%s3 + $0x90] sm:$0xf]
  %v1109 = vld [vmem:[%s3 + $0x94] sm:$0xf]
  %v1110 = vld [vmem:[%s3 + $0x98] sm:$0xf]
  %v1111 = vld [vmem:[%s3 + $0x9c] sm:$0xf]
  %v1112 = vld [vmem:[%s3 + $0xa0] sm:$0xf]
  %v1113 = vld [vmem:[%s3 + $0xa4] sm:$0xf]
  %v1114 = vld [vmem:[%s3 + $0xa8] sm:$0xf]
  %v1115 = vld [vmem:[%s3 + $0xac] sm:$0xf]
  %v1116 = vld [vmem:[%s3 + $0xb0] sm:$0xf]
  %v1117 = vld [vmem:[%s3 + $0xb4] sm:$0xf]
  %v1118 = vld [vmem:[%s3 + $0xb8] sm:$0xf]
  %v1119 = vld [vmem:[%s3 + $0xbc] sm:$0xf]
  %v1120 = vld [vmem:[%s3 + $0xc0] sm:$0xf]
  %v1121 = vld [vmem:[%s3 + $0xc4] sm:$0xf]
  %v1122 = vld [vmem:[%s3 + $0xc8] sm:$0xf]
  %v1123 = vld [vmem:[%s3 + $0xcc] sm:$0xf]
  %v1124 = vld [vmem:[%s3 + $0xd0] sm:$0xf]
  %v1125 = vld [vmem:[%s3 + $0xd4] sm:$0xf]
  %v1126 = vld [vmem:[%s3 + $0xd8] sm:$0xf]
  %v1127 = vld [vmem:[%s3 + $0xdc] sm:$0xf]
  %v1128 = vld [vmem:[%s3 + $0xe0] sm:$0xf]
  %v1129 = vld [vmem:[%s3 + $0xe4] sm:$0xf]
  %v1130 = vld [vmem:[%s3 + $0xe8] sm:$0xf]
  %v1131 = vld [vmem:[%s3 + $0xec] sm:$0xf]
  %v1132 = vld [vmem:[%s3 + $0xf0] sm:$0xf]
  %v1133 = vld [vmem:[%s3 + $0xf4] sm:$0xf]
  %v1134 = vld [vmem:[%s3 + $0xf8] sm:$0xf]
  %v1135 = vld [vmem:[%s3 + $0xfc] sm:$0xf]
  %v1136 = vld [vmem:[%s3 + $0x100] sm:$0xf]
  %v1137 = vld [vmem:[%s3 + $0x104] sm:$0xf]
  %v1138 = vld [vmem:[%s3 + $0x108] sm:$0xf]
  %v1139 = vld [vmem:[%s3 + $0x10c] sm:$0xf]
  %v1140 = vld [vmem:[%s3 + $0x110] sm:$0xf]
  %v1141 = vld [vmem:[%s3 + $0x114] sm:$0xf]
  %v1142 = vld [vmem:[%s3 + $0x118] sm:$0xf]
  %v1143 = vld [vmem:[%s3 + $0x11c] sm:$0xf]
  %v1144 = vld [vmem:[%s3 + $0x120] sm:$0xf]
  %v1145 = vld [vmem:[%s3 + $0x124] sm:$0xf]
  %v1146 = vld [vmem:[%s3 + $0x128] sm:$0xf]
  %v1147 = vld [vmem:[%s3 + $0x12c] sm:$0xf]
  %v1148 = vld [vmem:[%s3 + $0x130] sm:$0xf]
  %v1149 = vld [vmem:[%s3 + $0x134] sm:$0xf]
  %v1150 = vld [vmem:[%s3 + $0x138] sm:$0xf]
  %v1151 = vld [vmem:[%s3 + $0x13c] sm:$0xf]
  %v1152 = vld [vmem:[%s3 + $0x140] sm:$0xf]
  %v1153 = vld [vmem:[%s3 + $0x144] sm:$0xf]
  %v1154 = vld [vmem:[%s3 + $0x148] sm:$0xf]
  %v1155 = vld [vmem:[%s3 + $0x14c] sm:$0xf]
  %v1156 = vld [vmem:[%s3 + $0x150] sm:$0xf]
  %v1157 = vld [vmem:[%s3 + $0x154] sm:$0xf]
  %v1158 = vld [vmem:[%s3 + $0x158] sm:$0xf]
  %v1159 = vld [vmem:[%s3 + $0x15c] sm:$0xf]
  %v1160 = vld [vmem:[%s3 + $0x160] sm:$0xf]
  %v1161 = vld [vmem:[%s3 + $0x164] sm:$0xf]
  %v1162 = vld [vmem:[%s3 + $0x168] sm:$0xf]
  %v1163 = vld [vmem:[%s3 + $0x16c] sm:$0xf]
  %v1164 = vld [vmem:[%s3 + $0x170] sm:$0xf]
  %v1165 = vld [vmem:[%s3 + $0x174] sm:$0xf]
  %v1166 = vld [vmem:[%s3 + $0x178] sm:$0xf]
  %v1167 = vld [vmem:[%s3 + $0x17c] sm:$0xf]
  %v1168 = vld [vmem:[%s3 + $0x180] sm:$0xf]
  %v1169 = vld [vmem:[%s3 + $0x184] sm:$0xf]
  %v1170 = vld [vmem:[%s3 + $0x188] sm:$0xf]
  %v1171 = vld [vmem:[%s3 + $0x18c] sm:$0xf]
  %v1172 = vld [vmem:[%s3 + $0x190] sm:$0xf]
  %v1173 = vld [vmem:[%s3 + $0x194] sm:$0xf]
  %v1174 = vld [vmem:[%s3 + $0x198] sm:$0xf]
  %v1175 = vld [vmem:[%s3 + $0x19c] sm:$0xf]
  %v1176 = vld [vmem:[%s3 + $0x1a0] sm:$0xf]
  %v1177 = vld [vmem:[%s3 + $0x1a4] sm:$0xf]
  %v1178 = vld [vmem:[%s3 + $0x1a8] sm:$0xf]
  %v1179 = vld [vmem:[%s3 + $0x1ac] sm:$0xf]
  %v1180 = vld [vmem:[%s3 + $0x1b0] sm:$0xf]
  %v1181 = vld [vmem:[%s3 + $0x1b4] sm:$0xf]
  %v1182 = vld [vmem:[%s3 + $0x1b8] sm:$0xf]
  %v1183 = vld [vmem:[%s3 + $0x1bc] sm:$0xf]
  %v1184 = vld [vmem:[%s3 + $0x1c0] sm:$0xf]
  %v1185 = vld [vmem:[%s3 + $0x1c4] sm:$0xf]
  %v1186 = vld [vmem:[%s3 + $0x1c8] sm:$0xf]
  %v1187 = vld [vmem:[%s3 + $0x1cc] sm:$0xf]
  %v1188 = vld [vmem:[%s3 + $0x1d0] sm:$0xf]
  %v1189 = vld [vmem:[%s3 + $0x1d4] sm:$0xf]
  %v1190 = vld [vmem:[%s3 + $0x1d8] sm:$0xf]
  %v1191 = vld [vmem:[%s3 + $0x1dc] sm:$0xf]
  %v1192 = vld [vmem:[%s3 + $0x1e0] sm:$0xf]
  %v1193 = vld [vmem:[%s3 + $0x1e4] sm:$0xf]
  %v1194 = vld [vmem:[%s3 + $0x1e8] sm:$0xf]
  %v1195 = vld [vmem:[%s3 + $0x1ec] sm:$0xf]
  %v1196 = vld [vmem:[%s3 + $0x1f0] sm:$0xf]
  %v1197 = vld [vmem:[%s3 + $0x1f4] sm:$0xf]
  %v1198 = vld [vmem:[%s3 + $0x1f8] sm:$0xf]
  %v1199 = vld [vmem:[%s3 + $0x1fc] sm:$0xf]
  %v1200 = vld [vmem:[%s3 + $0x200] sm:$0xf]
  %v1201 = vld [vmem:[%s3 + $0x204] sm:$0xf]
  %v1202 = vld [vmem:[%s3 + $0x208] sm:$0xf]
  %v1203 = vld [vmem:[%s3 + $0x20c] sm:$0xf]
  %v1204 = vld [vmem:[%s3 + $0x210] sm:$0xf]
  %v1205 = vld [vmem:[%s3 + $0x214] sm:$0xf]
  %v1206 = vld [vmem:[%s3 + $0x218] sm:$0xf]
  %v1207 = vld [vmem:[%s3 + $0x21c] sm:$0xf]
  %v1208 = vld [vmem:[%s3 + $0x220] sm:$0xf]
  %v1209 = vld [vmem:[%s3 + $0x224] sm:$0xf]
  %v1210 = vld [vmem:[%s3 + $0x228] sm:$0xf]
  %v1211 = vld [vmem:[%s3 + $0x22c] sm:$0xf]
  %v1212 = vld [vmem:[%s3 + $0x230] sm:$0xf]
  %v1213 = vld [vmem:[%s3 + $0x234] sm:$0xf]
  %v1214 = vld [vmem:[%s3 + $0x238] sm:$0xf]
  %v1215 = vld [vmem:[%s3 + $0x23c] sm:$0xf]
  %v1216 = vld [vmem:[%s3 + $0x240] sm:$0xf]
  %v1217 = vld [vmem:[%s3 + $0x244] sm:$0xf]
  %v1218 = vld [vmem:[%s3 + $0x248] sm:$0xf]
  %v1219 = vld [vmem:[%s3 + $0x24c] sm:$0xf]
  %v1220 = vld [vmem:[%s3 + $0x250] sm:$0xf]
  %v1221 = vld [vmem:[%s3 + $0x254] sm:$0xf]
  %v1222 = vld [vmem:[%s3 + $0x258] sm:$0xf]
  %v1223 = vld [vmem:[%s3 + $0x25c] sm:$0xf]
  %v1224 = vld [vmem:[%s3 + $0x260] sm:$0xf]
  %v1225 = vld [vmem:[%s3 + $0x264] sm:$0xf]
  %v1226 = vld [vmem:[%s3 + $0x268] sm:$0xf]
  %v1227 = vld [vmem:[%s3 + $0x26c] sm:$0xf]
  %v1228 = vld [vmem:[%s3 + $0x270] sm:$0xf]
  %v1229 = vld [vmem:[%s3 + $0x274] sm:$0xf]
  %v1230 = vld [vmem:[%s3 + $0x278] sm:$0xf]
  %v1231 = vld [vmem:[%s3 + $0x27c] sm:$0xf]
  %v1232 = vld [vmem:[%s3 + $0x280] sm:$0xf]
  %v1233 = vld [vmem:[%s3 + $0x284] sm:$0xf]
  %v1234 = vld [vmem:[%s3 + $0x288] sm:$0xf]
  %v1235 = vld [vmem:[%s3 + $0x28c] sm:$0xf]
  %v1236 = vld [vmem:[%s3 + $0x290] sm:$0xf]
  %v1237 = vld [vmem:[%s3 + $0x294] sm:$0xf]
  %v1238 = vld [vmem:[%s3 + $0x298] sm:$0xf]
  %v1239 = vld [vmem:[%s3 + $0x29c] sm:$0xf]
  %v1240 = vld [vmem:[%s3 + $0x2a0] sm:$0xf]
  %v1241 = vld [vmem:[%s3 + $0x2a4] sm:$0xf]
  %v1242 = vld [vmem:[%s3 + $0x2a8] sm:$0xf]
  %v1243 = vld [vmem:[%s3 + $0x2ac] sm:$0xf]
  %v1244 = vld [vmem:[%s3 + $0x2b0] sm:$0xf]
  %v1245 = vld [vmem:[%s3 + $0x2b4] sm:$0xf]
  %v1246 = vld [vmem:[%s3 + $0x2b8] sm:$0xf]
  %v1247 = vld [vmem:[%s3 + $0x2bc] sm:$0xf]
  %v1248 = vld [vmem:[%s3 + $0x2c0] sm:$0xf]
  %v1249 = vld [vmem:[%s3 + $0x2c4] sm:$0xf]
  %v1250 = vld [vmem:[%s3 + $0x2c8] sm:$0xf]
  %v1251 = vld [vmem:[%s3 + $0x2cc] sm:$0xf]
  %v1252 = vld [vmem:[%s3 + $0x2d0] sm:$0xf]
  %v1253 = vld [vmem:[%s3 + $0x2d4] sm:$0xf]
  %v1254 = vld [vmem:[%s3 + $0x2d8] sm:$0xf]
  %v1255 = vld [vmem:[%s3 + $0x2dc] sm:$0xf]
  %v1256 = vld [vmem:[%s3 + $0x2e0] sm:$0xf]
  %v1257 = vld [vmem:[%s3 + $0x2e4] sm:$0xf]
  %v1258 = vld [vmem:[%s3 + $0x2e8] sm:$0xf]
  %v1259 = vld [vmem:[%s3 + $0x2ec] sm:$0xf]
  %v1260 = vld [vmem:[%s3 + $0x2f0] sm:$0xf]
  %v1261 = vld [vmem:[%s3 + $0x2f4] sm:$0xf]
  %v1262 = vld [vmem:[%s3 + $0x2f8] sm:$0xf]
  %v1263 = vld [vmem:[%s3 + $0x2fc] sm:$0xf]
  %v1264 = vld [vmem:[%s3 + $0x300] sm:$0xf]
  %v1265 = vld [vmem:[%s3 + $0x304] sm:$0xf]
  %v1266 = vld [vmem:[%s3 + $0x308] sm:$0xf]
  %v1267 = vld [vmem:[%s3 + $0x30c] sm:$0xf]
  %v1268 = vld [vmem:[%s3 + $0x310] sm:$0xf]
  %v1269 = vld [vmem:[%s3 + $0x314] sm:$0xf]
  %v1270 = vld [vmem:[%s3 + $0x318] sm:$0xf]
  %v1271 = vld [vmem:[%s3 + $0x31c] sm:$0xf]
  %v1272 = vld [vmem:[%s3 + $0x320] sm:$0xf]
  %v1273 = vld [vmem:[%s3 + $0x324] sm:$0xf]
  %v1274 = vld [vmem:[%s3 + $0x328] sm:$0xf]
  %v1275 = vld [vmem:[%s3 + $0x32c] sm:$0xf]
  %v1276 = vld [vmem:[%s3 + $0x330] sm:$0xf]
  %v1277 = vld [vmem:[%s3 + $0x334] sm:$0xf]
  %v1278 = vld [vmem:[%s3 + $0x338] sm:$0xf]
  %v1279 = vld [vmem:[%s3 + $0x33c] sm:$0xf]
  %v1280 = vld [vmem:[%s3 + $0x340] sm:$0xf]
  %v1281 = vld [vmem:[%s3 + $0x344] sm:$0xf]
  %v1282 = vld [vmem:[%s3 + $0x348] sm:$0xf]
  %v1283 = vld [vmem:[%s3 + $0x34c] sm:$0xf]
  %v1284 = vld [vmem:[%s3 + $0x350] sm:$0xf]
  %v1285 = vld [vmem:[%s3 + $0x354] sm:$0xf]
  %v1286 = vld [vmem:[%s3 + $0x358] sm:$0xf]
  %v1287 = vld [vmem:[%s3 + $0x35c] sm:$0xf]
  %v1288 = vld [vmem:[%s3 + $0x360] sm:$0xf]
  %v1289 = vld [vmem:[%s3 + $0x364] sm:$0xf]
  %v1290 = vld [vmem:[%s3 + $0x368] sm:$0xf]
  %v1291 = vld [vmem:[%s3 + $0x36c] sm:$0xf]
  %v1292 = vld [vmem:[%s3 + $0x370] sm:$0xf]
  %v1293 = vld [vmem:[%s3 + $0x374] sm:$0xf]
  %v1294 = vld [vmem:[%s3 + $0x378] sm:$0xf]
  %v1295 = vld [vmem:[%s3 + $0x37c] sm:$0xf]
  %v1296 = vld [vmem:[%s3 + $0x380] sm:$0xf]
  %v1297 = vld [vmem:[%s3 + $0x384] sm:$0xf]
  %v1298 = vld [vmem:[%s3 + $0x388] sm:$0xf]
  %v1299 = vld [vmem:[%s3 + $0x38c] sm:$0xf]
  %v1300 = vld [vmem:[%s3 + $0x390] sm:$0xf]
  %v1301 = vld [vmem:[%s3 + $0x394] sm:$0xf]
  %v1302 = vld [vmem:[%s3 + $0x398] sm:$0xf]
  %v1303 = vld [vmem:[%s3 + $0x39c] sm:$0xf]
  %v1304 = vld [vmem:[%s3 + $0x3a0] sm:$0xf]
  %v1305 = vld [vmem:[%s3 + $0x3a4] sm:$0xf]
  %v1306 = vld [vmem:[%s3 + $0x3a8] sm:$0xf]
  %v1307 = vld [vmem:[%s3 + $0x3ac] sm:$0xf]
  %v1308 = vld [vmem:[%s3 + $0x3b0] sm:$0xf]
  %v1309 = vld [vmem:[%s3 + $0x3b4] sm:$0xf]
  %v1310 = vld [vmem:[%s3 + $0x3b8] sm:$0xf]
  %v1311 = vld [vmem:[%s3 + $0x3bc] sm:$0xf]
  %v1312 = vld [vmem:[%s3 + $0x3c0] sm:$0xf]
  %v1313 = vld [vmem:[%s3 + $0x3c4] sm:$0xf]
  %v1314 = vld [vmem:[%s3 + $0x3c8] sm:$0xf]
  %v1315 = vld [vmem:[%s3 + $0x3cc] sm:$0xf]
  %v1316 = vld [vmem:[%s3 + $0x3d0] sm:$0xf]
  %v1317 = vld [vmem:[%s3 + $0x3d4] sm:$0xf]
  %v1318 = vld [vmem:[%s3 + $0x3d8] sm:$0xf]
  %v1319 = vld [vmem:[%s3 + $0x3dc] sm:$0xf]
  %v1320 = vld [vmem:[%s3 + $0x3e0] sm:$0xf]
  %v1321 = vld [vmem:[%s3 + $0x3e4] sm:$0xf]
  %v1322 = vld [vmem:[%s3 + $0x3e8] sm:$0xf]
  %v1323 = vld [vmem:[%s3 + $0x3ec] sm:$0xf]
  %v1324 = vld [vmem:[%s3 + $0x3f0] sm:$0xf]
  %v1325 = vld [vmem:[%s3 + $0x3f4] sm:$0xf]
  %v1326 = vld [vmem:[%s3 + $0x3f8] sm:$0xf]
  %v1327 = vld [vmem:[%s3 + $0x3fc] sm:$0xf]
  %v1328 = vld [vmem:[%s4] sm:$0x1]
  %v1330 = vperm.slane %v1328, 0
  %v1588 = vunpack.c.l.b16 %v1072
  %v1589 = vunpack.c.l.b16 %v1073
  %v1590 = vunpack.c.l.b16 %v1074
  %v1591 = vunpack.c.l.b16 %v1075
  %v1592 = vunpack.c.l.b16 %v1076
  %v1593 = vunpack.c.l.b16 %v1077
  %v1594 = vunpack.c.l.b16 %v1078
  %v1595 = vunpack.c.l.b16 %v1079
  %v1596 = vunpack.c.l.b16 %v1080
  %v1597 = vunpack.c.l.b16 %v1081
  %v1598 = vunpack.c.l.b16 %v1082
  %v1599 = vunpack.c.l.b16 %v1083
  %v1600 = vunpack.c.l.b16 %v1084
  %v1601 = vunpack.c.l.b16 %v1085
  %v1602 = vunpack.c.l.b16 %v1086
  %v1603 = vunpack.c.l.b16 %v1087
  %v1604 = vunpack.c.l.b16 %v1088
  %v1605 = vunpack.c.l.b16 %v1089
  %v1606 = vunpack.c.l.b16 %v1090
  %v1607 = vunpack.c.l.b16 %v1091
  %v1608 = vunpack.c.l.b16 %v1092
  %v1609 = vunpack.c.l.b16 %v1093
  %v1610 = vunpack.c.l.b16 %v1094
  %v1611 = vunpack.c.l.b16 %v1095
  %v1612 = vunpack.c.l.b16 %v1096
  %v1613 = vunpack.c.l.b16 %v1097
  %v1614 = vunpack.c.l.b16 %v1098
  %v1615 = vunpack.c.l.b16 %v1099
  %v1616 = vunpack.c.l.b16 %v1100
  %v1617 = vunpack.c.l.b16 %v1101
  %v1618 = vunpack.c.l.b16 %v1102
  %v1619 = vunpack.c.l.b16 %v1103
  %v1620 = vunpack.c.l.b16 %v1104
  %v1621 = vunpack.c.l.b16 %v1105
  %v1622 = vunpack.c.l.b16 %v1106
  %v1623 = vunpack.c.l.b16 %v1107
  %v1624 = vunpack.c.l.b16 %v1108
  %v1625 = vunpack.c.l.b16 %v1109
  %v1626 = vunpack.c.l.b16 %v1110
  %v1627 = vunpack.c.l.b16 %v1111
  %v1628 = vunpack.c.l.b16 %v1112
  %v1629 = vunpack.c.l.b16 %v1113
  %v1630 = vunpack.c.l.b16 %v1114
  %v1631 = vunpack.c.l.b16 %v1115
  %v1632 = vunpack.c.l.b16 %v1116
  %v1633 = vunpack.c.l.b16 %v1117
  %v1634 = vunpack.c.l.b16 %v1118
  %v1635 = vunpack.c.l.b16 %v1119
  %v1636 = vunpack.c.l.b16 %v1120
  %v1637 = vunpack.c.l.b16 %v1121
  %v1638 = vunpack.c.l.b16 %v1122
  %v1639 = vunpack.c.l.b16 %v1123
  %v1640 = vunpack.c.l.b16 %v1124
  %v1641 = vunpack.c.l.b16 %v1125
  %v1642 = vunpack.c.l.b16 %v1126
  %v1643 = vunpack.c.l.b16 %v1127
  %v1644 = vunpack.c.l.b16 %v1128
  %v1645 = vunpack.c.l.b16 %v1129
  %v1646 = vunpack.c.l.b16 %v1130
  %v1647 = vunpack.c.l.b16 %v1131
  %v1648 = vunpack.c.l.b16 %v1132
  %v1649 = vunpack.c.l.b16 %v1133
  %v1650 = vunpack.c.l.b16 %v1134
  %v1651 = vunpack.c.l.b16 %v1135
  %v1652 = vunpack.c.l.b16 %v1136
  %v1653 = vunpack.c.l.b16 %v1137
  %v1654 = vunpack.c.l.b16 %v1138
  %v1655 = vunpack.c.l.b16 %v1139
  %v1656 = vunpack.c.l.b16 %v1140
  %v1657 = vunpack.c.l.b16 %v1141
  %v1658 = vunpack.c.l.b16 %v1142
  %v1659 = vunpack.c.l.b16 %v1143
  %v1660 = vunpack.c.l.b16 %v1144
  %v1661 = vunpack.c.l.b16 %v1145
  %v1662 = vunpack.c.l.b16 %v1146
  %v1663 = vunpack.c.l.b16 %v1147
  %v1664 = vunpack.c.l.b16 %v1148
  %v1665 = vunpack.c.l.b16 %v1149
  %v1666 = vunpack.c.l.b16 %v1150
  %v1667 = vunpack.c.l.b16 %v1151
  %v1668 = vunpack.c.l.b16 %v1152
  %v1669 = vunpack.c.l.b16 %v1153
  %v1670 = vunpack.c.l.b16 %v1154
  %v1671 = vunpack.c.l.b16 %v1155
  %v1672 = vunpack.c.l.b16 %v1156
  %v1673 = vunpack.c.l.b16 %v1157
  %v1674 = vunpack.c.l.b16 %v1158
  %v1675 = vunpack.c.l.b16 %v1159
  %v1676 = vunpack.c.l.b16 %v1160
  %v1677 = vunpack.c.l.b16 %v1161
  %v1678 = vunpack.c.l.b16 %v1162
  %v1679 = vunpack.c.l.b16 %v1163
  %v1680 = vunpack.c.l.b16 %v1164
  %v1681 = vunpack.c.l.b16 %v1165
  %v1682 = vunpack.c.l.b16 %v1166
  %v1683 = vunpack.c.l.b16 %v1167
  %v1684 = vunpack.c.l.b16 %v1168
  %v1685 = vunpack.c.l.b16 %v1169
  %v1686 = vunpack.c.l.b16 %v1170
  %v1687 = vunpack.c.l.b16 %v1171
  %v1688 = vunpack.c.l.b16 %v1172
  %v1689 = vunpack.c.l.b16 %v1173
  %v1690 = vunpack.c.l.b16 %v1174
  %v1691 = vunpack.c.l.b16 %v1175
  %v1692 = vunpack.c.l.b16 %v1176
  %v1693 = vunpack.c.l.b16 %v1177
  %v1694 = vunpack.c.l.b16 %v1178
  %v1695 = vunpack.c.l.b16 %v1179
  %v1696 = vunpack.c.l.b16 %v1180
  %v1697 = vunpack.c.l.b16 %v1181
  %v1698 = vunpack.c.l.b16 %v1182
  %v1699 = vunpack.c.l.b16 %v1183
  %v1700 = vunpack.c.l.b16 %v1184
  %v1701 = vunpack.c.l.b16 %v1185
  %v1702 = vunpack.c.l.b16 %v1186
  %v1703 = vunpack.c.l.b16 %v1187
  %v1704 = vunpack.c.l.b16 %v1188
  %v1705 = vunpack.c.l.b16 %v1189
  %v1706 = vunpack.c.l.b16 %v1190
  %v1707 = vunpack.c.l.b16 %v1191
  %v1708 = vunpack.c.l.b16 %v1192
  %v1709 = vunpack.c.l.b16 %v1193
  %v1710 = vunpack.c.l.b16 %v1194
  %v1711 = vunpack.c.l.b16 %v1195
  %v1712 = vunpack.c.l.b16 %v1196
  %v1713 = vunpack.c.l.b16 %v1197
  %v1714 = vunpack.c.l.b16 %v1198
  %v1715 = vunpack.c.l.b16 %v1199
  %v1716 = vunpack.c.l.b16 %v1200
  %v1717 = vunpack.c.l.b16 %v1201
  %v1718 = vunpack.c.l.b16 %v1202
  %v1719 = vunpack.c.l.b16 %v1203
  %v1720 = vunpack.c.l.b16 %v1204
  %v1721 = vunpack.c.l.b16 %v1205
  %v1722 = vunpack.c.l.b16 %v1206
  %v1723 = vunpack.c.l.b16 %v1207
  %v1724 = vunpack.c.l.b16 %v1208
  %v1725 = vunpack.c.l.b16 %v1209
  %v1726 = vunpack.c.l.b16 %v1210
  %v1727 = vunpack.c.l.b16 %v1211
  %v1728 = vunpack.c.l.b16 %v1212
  %v1729 = vunpack.c.l.b16 %v1213
  %v1730 = vunpack.c.l.b16 %v1214
  %v1731 = vunpack.c.l.b16 %v1215
  %v1732 = vunpack.c.l.b16 %v1216
  %v1733 = vunpack.c.l.b16 %v1217
  %v1734 = vunpack.c.l.b16 %v1218
  %v1735 = vunpack.c.l.b16 %v1219
  %v1736 = vunpack.c.l.b16 %v1220
  %v1737 = vunpack.c.l.b16 %v1221
  %v1738 = vunpack.c.l.b16 %v1222
  %v1739 = vunpack.c.l.b16 %v1223
  %v1740 = vunpack.c.l.b16 %v1224
  %v1741 = vunpack.c.l.b16 %v1225
  %v1742 = vunpack.c.l.b16 %v1226
  %v1743 = vunpack.c.l.b16 %v1227
  %v1744 = vunpack.c.l.b16 %v1228
  %v1745 = vunpack.c.l.b16 %v1229
  %v1746 = vunpack.c.l.b16 %v1230
  %v1747 = vunpack.c.l.b16 %v1231
  %v1748 = vunpack.c.l.b16 %v1232
  %v1749 = vunpack.c.l.b16 %v1233
  %v1750 = vunpack.c.l.b16 %v1234
  %v1751 = vunpack.c.l.b16 %v1235
  %v1752 = vunpack.c.l.b16 %v1236
  %v1753 = vunpack.c.l.b16 %v1237
  %v1754 = vunpack.c.l.b16 %v1238
  %v1755 = vunpack.c.l.b16 %v1239
  %v1756 = vunpack.c.l.b16 %v1240
  %v1757 = vunpack.c.l.b16 %v1241
  %v1758 = vunpack.c.l.b16 %v1242
  %v1759 = vunpack.c.l.b16 %v1243
  %v1760 = vunpack.c.l.b16 %v1244
  %v1761 = vunpack.c.l.b16 %v1245
  %v1762 = vunpack.c.l.b16 %v1246
  %v1763 = vunpack.c.l.b16 %v1247
  %v1764 = vunpack.c.l.b16 %v1248
  %v1765 = vunpack.c.l.b16 %v1249
  %v1766 = vunpack.c.l.b16 %v1250
  %v1767 = vunpack.c.l.b16 %v1251
  %v1768 = vunpack.c.l.b16 %v1252
  %v1769 = vunpack.c.l.b16 %v1253
  %v1770 = vunpack.c.l.b16 %v1254
  %v1771 = vunpack.c.l.b16 %v1255
  %v1772 = vunpack.c.l.b16 %v1256
  %v1773 = vunpack.c.l.b16 %v1257
  %v1774 = vunpack.c.l.b16 %v1258
  %v1775 = vunpack.c.l.b16 %v1259
  %v1776 = vunpack.c.l.b16 %v1260
  %v1777 = vunpack.c.l.b16 %v1261
  %v1778 = vunpack.c.l.b16 %v1262
  %v1779 = vunpack.c.l.b16 %v1263
  %v1780 = vunpack.c.l.b16 %v1264
  %v1781 = vunpack.c.l.b16 %v1265
  %v1782 = vunpack.c.l.b16 %v1266
  %v1783 = vunpack.c.l.b16 %v1267
  %v1784 = vunpack.c.l.b16 %v1268
  %v1785 = vunpack.c.l.b16 %v1269
  %v1786 = vunpack.c.l.b16 %v1270
  %v1787 = vunpack.c.l.b16 %v1271
  %v1788 = vunpack.c.l.b16 %v1272
  %v1789 = vunpack.c.l.b16 %v1273
  %v1790 = vunpack.c.l.b16 %v1274
  %v1791 = vunpack.c.l.b16 %v1275
  %v1792 = vunpack.c.l.b16 %v1276
  %v1793 = vunpack.c.l.b16 %v1277
  %v1794 = vunpack.c.l.b16 %v1278
  %v1795 = vunpack.c.l.b16 %v1279
  %v1796 = vunpack.c.l.b16 %v1280
  %v1797 = vunpack.c.l.b16 %v1281
  %v1798 = vunpack.c.l.b16 %v1282
  %v1799 = vunpack.c.l.b16 %v1283
  %v1800 = vunpack.c.l.b16 %v1284
  %v1801 = vunpack.c.l.b16 %v1285
  %v1802 = vunpack.c.l.b16 %v1286
  %v1803 = vunpack.c.l.b16 %v1287
  %v1804 = vunpack.c.l.b16 %v1288
  %v1805 = vunpack.c.l.b16 %v1289
  %v1806 = vunpack.c.l.b16 %v1290
  %v1807 = vunpack.c.l.b16 %v1291
  %v1808 = vunpack.c.l.b16 %v1292
  %v1809 = vunpack.c.l.b16 %v1293
  %v1810 = vunpack.c.l.b16 %v1294
  %v1811 = vunpack.c.l.b16 %v1295
  %v1812 = vunpack.c.l.b16 %v1296
  %v1813 = vunpack.c.l.b16 %v1297
  %v1814 = vunpack.c.l.b16 %v1298
  %v1815 = vunpack.c.l.b16 %v1299
  %v1816 = vunpack.c.l.b16 %v1300
  %v1817 = vunpack.c.l.b16 %v1301
  %v1818 = vunpack.c.l.b16 %v1302
  %v1819 = vunpack.c.l.b16 %v1303
  %v1820 = vunpack.c.l.b16 %v1304
  %v1821 = vunpack.c.l.b16 %v1305
  %v1822 = vunpack.c.l.b16 %v1306
  %v1823 = vunpack.c.l.b16 %v1307
  %v1824 = vunpack.c.l.b16 %v1308
  %v1825 = vunpack.c.l.b16 %v1309
  %v1826 = vunpack.c.l.b16 %v1310
  %v1827 = vunpack.c.l.b16 %v1311
  %v1828 = vunpack.c.l.b16 %v1312
  %v1829 = vunpack.c.l.b16 %v1313
  %v1830 = vunpack.c.l.b16 %v1314
  %v1831 = vunpack.c.l.b16 %v1315
  %v1832 = vunpack.c.l.b16 %v1316
  %v1833 = vunpack.c.l.b16 %v1317
  %v1834 = vunpack.c.l.b16 %v1318
  %v1835 = vunpack.c.l.b16 %v1319
  %v1836 = vunpack.c.l.b16 %v1320
  %v1837 = vunpack.c.l.b16 %v1321
  %v1838 = vunpack.c.l.b16 %v1322
  %v1839 = vunpack.c.l.b16 %v1323
  %v1840 = vunpack.c.l.b16 %v1324
  %v1841 = vunpack.c.l.b16 %v1325
  %v1842 = vunpack.c.l.b16 %v1326
  %v1843 = vunpack.c.l.b16 %v1327
  %v1844 = vpack.c.b16 %v1589, %v1588
  %v1845 = vpack.c.b16 %v1591, %v1590
  %v1846 = vpack.c.b16 %v1593, %v1592
  %v1847 = vpack.c.b16 %v1595, %v1594
  %v1848 = vpack.c.b16 %v1597, %v1596
  %v1849 = vpack.c.b16 %v1599, %v1598
  %v1850 = vpack.c.b16 %v1601, %v1600
  %v1851 = vpack.c.b16 %v1603, %v1602
  %v1852 = vpack.c.b16 %v1605, %v1604
  %v1853 = vpack.c.b16 %v1607, %v1606
  %v1854 = vpack.c.b16 %v1609, %v1608
  %v1855 = vpack.c.b16 %v1611, %v1610
  %v1856 = vpack.c.b16 %v1613, %v1612
  %v1857 = vpack.c.b16 %v1615, %v1614
  %v1858 = vpack.c.b16 %v1617, %v1616
  %v1859 = vpack.c.b16 %v1619, %v1618
  %v1860 = vpack.c.b16 %v1621, %v1620
  %v1861 = vpack.c.b16 %v1623, %v1622
  %v1862 = vpack.c.b16 %v1625, %v1624
  %v1863 = vpack.c.b16 %v1627, %v1626
  %v1864 = vpack.c.b16 %v1629, %v1628
  %v1865 = vpack.c.b16 %v1631, %v1630
  %v1866 = vpack.c.b16 %v1633, %v1632
  %v1867 = vpack.c.b16 %v1635, %v1634
  %v1868 = vpack.c.b16 %v1637, %v1636
  %v1869 = vpack.c.b16 %v1639, %v1638
  %v1870 = vpack.c.b16 %v1641, %v1640
  %v1871 = vpack.c.b16 %v1643, %v1642
  %v1872 = vpack.c.b16 %v1645, %v1644
  %v1873 = vpack.c.b16 %v1647, %v1646
  %v1874 = vpack.c.b16 %v1649, %v1648
  %v1875 = vpack.c.b16 %v1651, %v1650
  %v1876 = vpack.c.b16 %v1653, %v1652
  %v1877 = vpack.c.b16 %v1655, %v1654
  %v1878 = vpack.c.b16 %v1657, %v1656
  %v1879 = vpack.c.b16 %v1659, %v1658
  %v1880 = vpack.c.b16 %v1661, %v1660
  %v1881 = vpack.c.b16 %v1663, %v1662
  %v1882 = vpack.c.b16 %v1665, %v1664
  %v1883 = vpack.c.b16 %v1667, %v1666
  %v1884 = vpack.c.b16 %v1669, %v1668
  %v1885 = vpack.c.b16 %v1671, %v1670
  %v1886 = vpack.c.b16 %v1673, %v1672
  %v1887 = vpack.c.b16 %v1675, %v1674
  %v1888 = vpack.c.b16 %v1677, %v1676
  %v1889 = vpack.c.b16 %v1679, %v1678
  %v1890 = vpack.c.b16 %v1681, %v1680
  %v1891 = vpack.c.b16 %v1683, %v1682
  %v1892 = vpack.c.b16 %v1685, %v1684
  %v1893 = vpack.c.b16 %v1687, %v1686
  %v1894 = vpack.c.b16 %v1689, %v1688
  %v1895 = vpack.c.b16 %v1691, %v1690
  %v1896 = vpack.c.b16 %v1693, %v1692
  %v1897 = vpack.c.b16 %v1695, %v1694
  %v1898 = vpack.c.b16 %v1697, %v1696
  %v1899 = vpack.c.b16 %v1699, %v1698
  %v1900 = vpack.c.b16 %v1701, %v1700
  %v1901 = vpack.c.b16 %v1703, %v1702
  %v1902 = vpack.c.b16 %v1705, %v1704
  %v1903 = vpack.c.b16 %v1707, %v1706
  %v1904 = vpack.c.b16 %v1709, %v1708
  %v1905 = vpack.c.b16 %v1711, %v1710
  %v1906 = vpack.c.b16 %v1713, %v1712
  %v1907 = vpack.c.b16 %v1715, %v1714
  %v1908 = vpack.c.b16 %v1717, %v1716
  %v1909 = vpack.c.b16 %v1719, %v1718
  %v1910 = vpack.c.b16 %v1721, %v1720
  %v1911 = vpack.c.b16 %v1723, %v1722
  %v1912 = vpack.c.b16 %v1725, %v1724
  %v1913 = vpack.c.b16 %v1727, %v1726
  %v1914 = vpack.c.b16 %v1729, %v1728
  %v1915 = vpack.c.b16 %v1731, %v1730
  %v1916 = vpack.c.b16 %v1733, %v1732
  %v1917 = vpack.c.b16 %v1735, %v1734
  %v1918 = vpack.c.b16 %v1737, %v1736
  %v1919 = vpack.c.b16 %v1739, %v1738
  %v1920 = vpack.c.b16 %v1741, %v1740
  %v1921 = vpack.c.b16 %v1743, %v1742
  %v1922 = vpack.c.b16 %v1745, %v1744
  %v1923 = vpack.c.b16 %v1747, %v1746
  %v1924 = vpack.c.b16 %v1749, %v1748
  %v1925 = vpack.c.b16 %v1751, %v1750
  %v1926 = vpack.c.b16 %v1753, %v1752
  %v1927 = vpack.c.b16 %v1755, %v1754
  %v1928 = vpack.c.b16 %v1757, %v1756
  %v1929 = vpack.c.b16 %v1759, %v1758
  %v1930 = vpack.c.b16 %v1761, %v1760
  %v1931 = vpack.c.b16 %v1763, %v1762
  %v1932 = vpack.c.b16 %v1765, %v1764
  %v1933 = vpack.c.b16 %v1767, %v1766
  %v1934 = vpack.c.b16 %v1769, %v1768
  %v1935 = vpack.c.b16 %v1771, %v1770
  %v1936 = vpack.c.b16 %v1773, %v1772
  %v1937 = vpack.c.b16 %v1775, %v1774
  %v1938 = vpack.c.b16 %v1777, %v1776
  %v1939 = vpack.c.b16 %v1779, %v1778
  %v1940 = vpack.c.b16 %v1781, %v1780
  %v1941 = vpack.c.b16 %v1783, %v1782
  %v1942 = vpack.c.b16 %v1785, %v1784
  %v1943 = vpack.c.b16 %v1787, %v1786
  %v1944 = vpack.c.b16 %v1789, %v1788
  %v1945 = vpack.c.b16 %v1791, %v1790
  %v1946 = vpack.c.b16 %v1793, %v1792
  %v1947 = vpack.c.b16 %v1795, %v1794
  %v1948 = vpack.c.b16 %v1797, %v1796
  %v1949 = vpack.c.b16 %v1799, %v1798
  %v1950 = vpack.c.b16 %v1801, %v1800
  %v1951 = vpack.c.b16 %v1803, %v1802
  %v1952 = vpack.c.b16 %v1805, %v1804
  %v1953 = vpack.c.b16 %v1807, %v1806
  %v1954 = vpack.c.b16 %v1809, %v1808
  %v1955 = vpack.c.b16 %v1811, %v1810
  %v1956 = vpack.c.b16 %v1813, %v1812
  %v1957 = vpack.c.b16 %v1815, %v1814
  %v1958 = vpack.c.b16 %v1817, %v1816
  %v1959 = vpack.c.b16 %v1819, %v1818
  %v1960 = vpack.c.b16 %v1821, %v1820
  %v1961 = vpack.c.b16 %v1823, %v1822
  %v1962 = vpack.c.b16 %v1825, %v1824
  %v1963 = vpack.c.b16 %v1827, %v1826
  %v1964 = vpack.c.b16 %v1829, %v1828
  %v1965 = vpack.c.b16 %v1831, %v1830
  %v1966 = vpack.c.b16 %v1833, %v1832
  %v1967 = vpack.c.b16 %v1835, %v1834
  %v1968 = vpack.c.b16 %v1837, %v1836
  %v1969 = vpack.c.b16 %v1839, %v1838
  %v1970 = vpack.c.b16 %v1841, %v1840
  %v1971 = vpack.c.b16 %v1843, %v1842
  %2100 = vmatpush.bf16.msra.mxu0 %v1851
  %2101 = vmatpush.bf16.msra.mxu0 %v1850
  %2102 = vmatpush.bf16.msra.mxu0 %v1849
  %2103 = vmatpush.bf16.msra.mxu0 %v1848
  %2104 = vmatpush.bf16.msra.mxu0 %v1847
  %2105 = vmatpush.bf16.msra.mxu0 %v1846
  %2106 = vmatpush.bf16.msra.mxu0 %v1845
  %2107 = vmatpush.bf16.msra.mxu0 %v1844
  %2108 = vmatmul.bf16.gmra.mxu0 %v231
  %v2109 = vpop.f32.mrf.mxu0
  %v2110 = vadd.f32 %v1330, %v2109
  %v2111 = vpop.f32.mrf.mxu0
  %2112 = vdwg.mxu0
  %2113 = vmatpush.bf16.msra.mxu0 %v1859
  %2114 = vmatpush.bf16.msra.mxu0 %v1858
  %2115 = vmatpush.bf16.msra.mxu0 %v1857
  %2116 = vmatpush.bf16.msra.mxu0 %v1856
  %2117 = vmatpush.bf16.msra.mxu0 %v1855
  %2118 = vmatpush.bf16.msra.mxu0 %v1854
  %2119 = vmatpush.bf16.msra.mxu0 %v1853
  %2120 = vmatpush.bf16.msra.mxu0 %v1852
  %2121 = vmatmul.bf16.gmra.mxu0 %v287
  %v2122 = vpop.f32.mrf.mxu0
  %v2123 = vadd.f32 %v2110, %v2122
  %v2124 = vpop.f32.mrf.mxu0
  %2125 = vdwg.mxu0
  %2126 = vmatpush.bf16.msra.mxu0 %v1867
  %2127 = vmatpush.bf16.msra.mxu0 %v1866
  %2128 = vmatpush.bf16.msra.mxu0 %v1865
  %2129 = vmatpush.bf16.msra.mxu0 %v1864
  %2130 = vmatpush.bf16.msra.mxu0 %v1863
  %2131 = vmatpush.bf16.msra.mxu0 %v1862
  %2132 = vmatpush.bf16.msra.mxu0 %v1861
  %2133 = vmatpush.bf16.msra.mxu0 %v1860
  %2134 = vmatmul.bf16.gmra.mxu0 %v343
  %v2135 = vpop.f32.mrf.mxu0
  %v2136 = vadd.f32 %v2123, %v2135
  %v2137 = vpop.f32.mrf.mxu0
  %2138 = vdwg.mxu0
  %2139 = vmatpush.bf16.msra.mxu0 %v1875
  %2140 = vmatpush.bf16.msra.mxu0 %v1874
  %2141 = vmatpush.bf16.msra.mxu0 %v1873
  %2142 = vmatpush.bf16.msra.mxu0 %v1872
  %2143 = vmatpush.bf16.msra.mxu0 %v1871
  %2144 = vmatpush.bf16.msra.mxu0 %v1870
  %2145 = vmatpush.bf16.msra.mxu0 %v1869
  %2146 = vmatpush.bf16.msra.mxu0 %v1868
  %2147 = vmatmul.bf16.gmra.mxu0 %v399
  %v2148 = vpop.f32.mrf.mxu0
  %v2149 = vadd.f32 %v2136, %v2148
  %v2150 = vpop.f32.mrf.mxu0
  %2151 = vdwg.mxu0
  %2152 = vmatpush.bf16.msra.mxu0 %v1883
  %2153 = vmatpush.bf16.msra.mxu0 %v1882
  %2154 = vmatpush.bf16.msra.mxu0 %v1881
  %2155 = vmatpush.bf16.msra.mxu0 %v1880
  %2156 = vmatpush.bf16.msra.mxu0 %v1879
  %2157 = vmatpush.bf16.msra.mxu0 %v1878
  %2158 = vmatpush.bf16.msra.mxu0 %v1877
  %2159 = vmatpush.bf16.msra.mxu0 %v1876
  %2160 = vmatmul.bf16.gmra.mxu0 %v455
  %v2161 = vpop.f32.mrf.mxu0
  %v2162 = vadd.f32 %v2149, %v2161
  %v2163 = vpop.f32.mrf.mxu0
  %2164 = vdwg.mxu0
  %2165 = vmatpush.bf16.msra.mxu0 %v1891
  %2166 = vmatpush.bf16.msra.mxu0 %v1890
  %2167 = vmatpush.bf16.msra.mxu0 %v1889
  %2168 = vmatpush.bf16.msra.mxu0 %v1888
  %2169 = vmatpush.bf16.msra.mxu0 %v1887
  %2170 = vmatpush.bf16.msra.mxu0 %v1886
  %2171 = vmatpush.bf16.msra.mxu0 %v1885
  %2172 = vmatpush.bf16.msra.mxu0 %v1884
  %2173 = vmatmul.bf16.gmra.mxu0 %v511
  %v2174 = vpop.f32.mrf.mxu0
  %v2175 = vadd.f32 %v2162, %v2174
  %v2176 = vpop.f32.mrf.mxu0
  %2177 = vdwg.mxu0
  %2178 = vmatpush.bf16.msra.mxu0 %v1899
  %2179 = vmatpush.bf16.msra.mxu0 %v1898
  %2180 = vmatpush.bf16.msra.mxu0 %v1897
  %2181 = vmatpush.bf16.msra.mxu0 %v1896
  %2182 = vmatpush.bf16.msra.mxu0 %v1895
  %2183 = vmatpush.bf16.msra.mxu0 %v1894
  %2184 = vmatpush.bf16.msra.mxu0 %v1893
  %2185 = vmatpush.bf16.msra.mxu0 %v1892
  %2186 = vmatmul.bf16.gmra.mxu0 %v567
  %v2187 = vpop.f32.mrf.mxu0
  %v2188 = vadd.f32 %v2175, %v2187
  %v2189 = vpop.f32.mrf.mxu0
  %2190 = vdwg.mxu0
  %2191 = vmatpush.bf16.msra.mxu0 %v1907
  %2192 = vmatpush.bf16.msra.mxu0 %v1906
  %2193 = vmatpush.bf16.msra.mxu0 %v1905
  %2194 = vmatpush.bf16.msra.mxu0 %v1904
  %2195 = vmatpush.bf16.msra.mxu0 %v1903
  %2196 = vmatpush.bf16.msra.mxu0 %v1902
  %2197 = vmatpush.bf16.msra.mxu0 %v1901
  %2198 = vmatpush.bf16.msra.mxu0 %v1900
  %2199 = vmatmul.bf16.gmra.mxu0 %v623
  %v2200 = vpop.f32.mrf.mxu0
  %v2201 = vadd.f32 %v2188, %v2200
  %v2202 = vpop.f32.mrf.mxu0
  %2203 = vdwg.mxu0
  %2204 = vmatpush.bf16.msra.mxu0 %v1915
  %2205 = vmatpush.bf16.msra.mxu0 %v1914
  %2206 = vmatpush.bf16.msra.mxu0 %v1913
  %2207 = vmatpush.bf16.msra.mxu0 %v1912
  %2208 = vmatpush.bf16.msra.mxu0 %v1911
  %2209 = vmatpush.bf16.msra.mxu0 %v1910
  %2210 = vmatpush.bf16.msra.mxu0 %v1909
  %2211 = vmatpush.bf16.msra.mxu0 %v1908
  %2212 = vmatmul.bf16.gmra.mxu0 %v679
  %v2213 = vpop.f32.mrf.mxu0
  %v2214 = vadd.f32 %v2201, %v2213
  %v2215 = vpop.f32.mrf.mxu0
  %2216 = vdwg.mxu0
  %2217 = vmatpush.bf16.msra.mxu0 %v1923
  %2218 = vmatpush.bf16.msra.mxu0 %v1922
  %2219 = vmatpush.bf16.msra.mxu0 %v1921
  %2220 = vmatpush.bf16.msra.mxu0 %v1920
  %2221 = vmatpush.bf16.msra.mxu0 %v1919
  %2222 = vmatpush.bf16.msra.mxu0 %v1918
  %2223 = vmatpush.bf16.msra.mxu0 %v1917
  %2224 = vmatpush.bf16.msra.mxu0 %v1916
  %2225 = vmatmul.bf16.gmra.mxu0 %v735
  %v2226 = vpop.f32.mrf.mxu0
  %v2227 = vadd.f32 %v2214, %v2226
  %v2228 = vpop.f32.mrf.mxu0
  %2229 = vdwg.mxu0
  %2230 = vmatpush.bf16.msra.mxu0 %v1931
  %2231 = vmatpush.bf16.msra.mxu0 %v1930
  %2232 = vmatpush.bf16.msra.mxu0 %v1929
  %2233 = vmatpush.bf16.msra.mxu0 %v1928
  %2234 = vmatpush.bf16.msra.mxu0 %v1927
  %2235 = vmatpush.bf16.msra.mxu0 %v1926
  %2236 = vmatpush.bf16.msra.mxu0 %v1925
  %2237 = vmatpush.bf16.msra.mxu0 %v1924
  %2238 = vmatmul.bf16.gmra.mxu0 %v791
  %v2239 = vpop.f32.mrf.mxu0
  %v2240 = vadd.f32 %v2227, %v2239
  %v2241 = vpop.f32.mrf.mxu0
  %2242 = vdwg.mxu0
  %2243 = vmatpush.bf16.msra.mxu0 %v1939
  %2244 = vmatpush.bf16.msra.mxu0 %v1938
  %2245 = vmatpush.bf16.msra.mxu0 %v1937
  %2246 = vmatpush.bf16.msra.mxu0 %v1936
  %2247 = vmatpush.bf16.msra.mxu0 %v1935
  %2248 = vmatpush.bf16.msra.mxu0 %v1934
  %2249 = vmatpush.bf16.msra.mxu0 %v1933
  %2250 = vmatpush.bf16.msra.mxu0 %v1932
  %2251 = vmatmul.bf16.gmra.mxu0 %v847
  %v2252 = vpop.f32.mrf.mxu0
  %v2253 = vadd.f32 %v2240, %v2252
  %v2254 = vpop.f32.mrf.mxu0
  %2255 = vdwg.mxu0
  %2256 = vmatpush.bf16.msra.mxu0 %v1947
  %2257 = vmatpush.bf16.msra.mxu0 %v1946
  %2258 = vmatpush.bf16.msra.mxu0 %v1945
  %2259 = vmatpush.bf16.msra.mxu0 %v1944
  %2260 = vmatpush.bf16.msra.mxu0 %v1943
  %2261 = vmatpush.bf16.msra.mxu0 %v1942
  %2262 = vmatpush.bf16.msra.mxu0 %v1941
  %2263 = vmatpush.bf16.msra.mxu0 %v1940
  %2264 = vmatmul.bf16.gmra.mxu0 %v903
  %v2265 = vpop.f32.mrf.mxu0
  %v2266 = vadd.f32 %v2253, %v2265
  %v2267 = vpop.f32.mrf.mxu0
  %2268 = vdwg.mxu0
  %2269 = vmatpush.bf16.msra.mxu0 %v1955
  %2270 = vmatpush.bf16.msra.mxu0 %v1954
  %2271 = vmatpush.bf16.msra.mxu0 %v1953
  %2272 = vmatpush.bf16.msra.mxu0 %v1952
  %2273 = vmatpush.bf16.msra.mxu0 %v1951
  %2274 = vmatpush.bf16.msra.mxu0 %v1950
  %2275 = vmatpush.bf16.msra.mxu0 %v1949
  %2276 = vmatpush.bf16.msra.mxu0 %v1948
  %2277 = vmatmul.bf16.gmra.mxu0 %v959
  %v2278 = vpop.f32.mrf.mxu0
  %v2279 = vadd.f32 %v2266, %v2278
  %v2280 = vpop.f32.mrf.mxu0
  %2281 = vdwg.mxu0
  %2282 = vmatpush.bf16.msra.mxu0 %v1963
  %2283 = vmatpush.bf16.msra.mxu0 %v1962
  %2284 = vmatpush.bf16.msra.mxu0 %v1961
  %2285 = vmatpush.bf16.msra.mxu0 %v1960
  %2286 = vmatpush.bf16.msra.mxu0 %v1959
  %2287 = vmatpush.bf16.msra.mxu0 %v1958
  %2288 = vmatpush.bf16.msra.mxu0 %v1957
  %2289 = vmatpush.bf16.msra.mxu0 %v1956
  %2290 = vmatmul.bf16.gmra.mxu0 %v1015
  %v2291 = vpop.f32.mrf.mxu0
  %v2292 = vadd.f32 %v2279, %v2291
  %v2293 = vpop.f32.mrf.mxu0
  %2294 = vdwg.mxu0
  %2295 = vmatpush.bf16.msra.mxu0 %v1971
  %2296 = vmatpush.bf16.msra.mxu0 %v1970
  %2297 = vmatpush.bf16.msra.mxu0 %v1969
  %2298 = vmatpush.bf16.msra.mxu0 %v1968
  %2299 = vmatpush.bf16.msra.mxu0 %v1967
  %2300 = vmatpush.bf16.msra.mxu0 %v1966
  %2301 = vmatpush.bf16.msra.mxu0 %v1965
  %2302 = vmatpush.bf16.msra.mxu0 %v1964
  %2303 = vmatmul.bf16.gmra.mxu0 %v1071
  %v2304 = vpop.f32.mrf.mxu0
  %v2305 = vadd.f32 %v2292, %v2304
  %v2306 = vpop.f32.mrf.mxu0
  %2307 = vdwg.mxu0
  %v2308 = vmax.f32 %v2305, 0.0
  %v2309 = vpack.c.bf16 %v2308, %v2308
  %v2310 = vld [vmem:[%s5] sm:$0xf]
  %v2311 = vld [vmem:[%s5 + $0x4] sm:$0xf]
  %v2312 = vld [vmem:[%s5 + $0x8] sm:$0xf]
  %v2313 = vld [vmem:[%s5 + $0xc] sm:$0xf]
  %v2314 = vld [vmem:[%s5 + $0x10] sm:$0xf]
  %v2315 = vld [vmem:[%s5 + $0x14] sm:$0xf]
  %v2316 = vld [vmem:[%s5 + $0x18] sm:$0xf]
  %v2317 = vld [vmem:[%s5 + $0x1c] sm:$0xf]
  %v2318 = vld [vmem:[%s5 + $0x20] sm:$0xf]
  %v2319 = vld [vmem:[%s5 + $0x24] sm:$0xf]
  %v2320 = vld [vmem:[%s5 + $0x28] sm:$0xf]
  %v2321 = vld [vmem:[%s5 + $0x2c] sm:$0xf]
  %v2322 = vld [vmem:[%s5 + $0x30] sm:$0xf]
  %v2323 = vld [vmem:[%s5 + $0x34] sm:$0xf]
  %v2324 = vld [vmem:[%s5 + $0x38] sm:$0xf]
  %v2325 = vld [vmem:[%s5 + $0x3c] sm:$0xf]
  %v2326 = vld [vmem:[%s6] sm:$0x1]
  %v2328 = vperm.slane %v2326, 0
  %v2346 = vunpack.c.l.b16 %v2310
  %v2347 = vunpack.c.l.b16 %v2311
  %v2348 = vunpack.c.l.b16 %v2312
  %v2349 = vunpack.c.l.b16 %v2313
  %v2350 = vunpack.c.l.b16 %v2314
  %v2351 = vunpack.c.l.b16 %v2315
  %v2352 = vunpack.c.l.b16 %v2316
  %v2353 = vunpack.c.l.b16 %v2317
  %v2354 = vunpack.c.l.b16 %v2318
  %v2355 = vunpack.c.l.b16 %v2319
  %v2356 = vunpack.c.l.b16 %v2320
  %v2357 = vunpack.c.l.b16 %v2321
  %v2358 = vunpack.c.l.b16 %v2322
  %v2359 = vunpack.c.l.b16 %v2323
  %v2360 = vunpack.c.l.b16 %v2324
  %v2361 = vunpack.c.l.b16 %v2325
  %v2362 = vpack.c.b16 %v2347, %v2346
  %v2363 = vpack.c.b16 %v2349, %v2348
  %v2364 = vpack.c.b16 %v2351, %v2350
  %v2365 = vpack.c.b16 %v2353, %v2352
  %v2366 = vpack.c.b16 %v2355, %v2354
  %v2367 = vpack.c.b16 %v2357, %v2356
  %v2368 = vpack.c.b16 %v2359, %v2358
  %v2369 = vpack.c.b16 %v2361, %v2360
  %2378 = vmatpush.bf16.msra.mxu0 %v2369
  %2379 = vmatpush.bf16.msra.mxu0 %v2368
  %2380 = vmatpush.bf16.msra.mxu0 %v2367
  %2381 = vmatpush.bf16.msra.mxu0 %v2366
  %2382 = vmatpush.bf16.msra.mxu0 %v2365
  %2383 = vmatpush.bf16.msra.mxu0 %v2364
  %2384 = vmatpush.bf16.msra.mxu0 %v2363
  %2385 = vmatpush.bf16.msra.mxu0 %v2362
  %2386 = vmatmul.bf16.gmra.mxu0 %v2309
  %v2387 = vpop.f32.mrf.mxu0
  %v2388 = vadd.f32 %v2328, %v2387
  %v2389 = vpop.f32.mrf.mxu0
  %2390 = vdwg.mxu0
  %2391 = vst [vmem:[%s7] sm:$0xff] %v2388
  // Predicated region
  $region30: #{cnn_forward.3} parent=0 // pred_check
    _
  $region31: #{cnn_forward.3} parent=0 // pred_check_branch
    %2393 = sbr.rel (0) target = $region33
  $region32: #{cnn_forward.3} parent=0 // pred_region
    _
  $region33: #{cnn_forward.3} parent=0 // pred_fallthru
    _
  // Predicated region
  $region34: #{cnn_forward.3} parent=0 // pred_check
    _
  $region35: #{cnn_forward.3} parent=0 // pred_check_branch
    %2395 = sbr.rel (0) target = $region37
  $region36: #{cnn_forward.3} parent=0 // pred_region
    _
  $region37: #{cnn_forward.3} parent=0 // pred_fallthru
    _

</llo_original>
